<compile_context>
chip_gen: v5e
topology: v5e:2x2
jax: 0.10.0
libtpu: 0.0.40
codegen_flags: <defaults>
</compile_context>

<pallas_src>
import functools

import jax
import jax.numpy as jnp
from jax.experimental import pallas as pl
from jax.experimental.pallas import tpu as pltpu


def _round_up(x, m):
    return ((x + m - 1) // m) * m


# ----------------------------------------------------------------------------
# Fast path: lane-dense packed (H, W*C) layout, stride == 1
# ----------------------------------------------------------------------------
def _make_lane_dense_kernel(H, W, Cin, Cexp, Cout, K1, K2, use_residual):
    p1, p2 = K1 // 2, K2 // 2
    Ho1, Wo1 = H, W            # 'same' conv, stride 1
    Ho2, Wo2 = Ho1, Wo1
    WC_in = W * Cin
    WC1 = W * Cexp             # packed lane width of the expanded activations
    WC_out = Wo2 * Cout

    # Interior store offsets: sublane-aligned rows, lane-aligned columns.
    RT1 = _round_up(p1, 8)
    LT1 = _round_up(p1 * Cexp, 128)
    RT2 = _round_up(p2, 8)
    LT2 = _round_up(p2 * Cexp, 128)
    pad1_shape = (RT1 + H + p1, LT1 + WC1 + p1 * Cexp)
    pad2_shape = (RT2 + Ho1 + p2, LT2 + Wo1 * Cexp + p2 * Cexp)

    def zero_halo(ref, rt, lt, h, wl, p, c):
        # Zero only the halo strips inside the tap read window; the interior
        # [rt:rt+h, lt:lt+wl] is fully rewritten each step.
        if p == 0:
            return
        pc = p * c
        lo, hi = lt - pc, lt + wl + pc
        ref[rt - p:rt, lo:hi] = jnp.zeros((p, hi - lo), jnp.float32)
        ref[rt + h:rt + h + p, lo:hi] = jnp.zeros((p, hi - lo), jnp.float32)
        ref[rt:rt + h, lo:lt] = jnp.zeros((h, pc), jnp.float32)
        ref[rt:rt + h, lt + wl:hi] = jnp.zeros((h, pc), jnp.float32)

    def kernel(x_ref, wexp_ref, bexp_ref, wdw1_ref, bdw1_ref,
               wdw2_ref, bdw2_ref, wproj_ref, bproj_ref, o_ref,
               pad1_ref, pad2_ref):
        x = x_ref[0]                                     # (H, W*Cin), lane-dense

        # --- conv_pw_exp: 1x1 conv as block-diagonal matmul, BN folded, ReLU --
        y = jnp.dot(x, wexp_ref[...], preferred_element_type=jnp.float32)
        y = jnp.maximum(y + bexp_ref[...], 0.0)          # (H, W*Cexp)

        # --- conv_dw1: depthwise K1xK1, stride 1, BN folded, ReLU -------------
        zero_halo(pad1_ref, RT1, LT1, H, WC1, p1, Cexp)
        pad1_ref[RT1:RT1 + H, LT1:LT1 + WC1] = y         # aligned, unmasked store
        acc = jnp.broadcast_to(bdw1_ref[...], (Ho1, Wo1 * Cexp))
        for ky in range(K1):
            r0 = RT1 - p1 + ky
            for kx in range(K1):
                l0 = LT1 + (kx - p1) * Cexp
                acc = acc + (pad1_ref[r0:r0 + Ho1, l0:l0 + Wo1 * Cexp]
                             * wdw1_ref[ky * K1 + kx:ky * K1 + kx + 1, :])
        y = jnp.maximum(acc, 0.0)                        # (Ho1, Wo1*Cexp)

        # --- conv_dw2: depthwise K2xK2, stride 1, BN folded, ReLU -------------
        zero_halo(pad2_ref, RT2, LT2, Ho1, Wo1 * Cexp, p2, Cexp)
        pad2_ref[RT2:RT2 + Ho1, LT2:LT2 + Wo1 * Cexp] = y
        acc = jnp.broadcast_to(bdw2_ref[...], (Ho2, Wo2 * Cexp))
        for ky in range(K2):
            r0 = RT2 - p2 + ky
            for kx in range(K2):
                l0 = LT2 + (kx - p2) * Cexp
                acc = acc + (pad2_ref[r0:r0 + Ho2, l0:l0 + Wo2 * Cexp]
                             * wdw2_ref[ky * K2 + kx:ky * K2 + kx + 1, :])
        y = jnp.maximum(acc, 0.0)                        # (Ho2, Wo2*Cexp)

        # --- conv_pw_proj: 1x1 conv (block-diag), BN folded, no activation ----
        z = jnp.dot(y, wproj_ref[...],
                    preferred_element_type=jnp.float32) + bproj_ref[...]
        if use_residual:
            z = z + x                                    # same packed layout
        o_ref[0] = z.astype(o_ref.dtype)                 # (Ho, Wo*Cout): 128 lanes

    return kernel, (Ho2, Wo2, pad1_shape, pad2_shape)


def _run_lane_dense(x_nhwc, params, k1, k2):
    N, H, W, Cin = x_nhwc.shape
    Cexp = params["w_exp"].shape[1]
    Cout = params["w_proj"].shape[1]
    use_residual = (Cin == Cout)          # stride == 1 on this path
    kernel, (Ho, Wo, pad1_shape, pad2_shape) = _make_lane_dense_kernel(
        H, W, Cin, Cexp, Cout, k1, k2, use_residual)

    f32 = jnp.float32
    # 1x1 convs in the packed (h, w*c) layout -> block-diagonal weights.
    wbd_exp = jnp.kron(jnp.eye(W, dtype=f32), params["w_exp"])     # (W*Cin, W*Cexp)
    wbd_proj = jnp.kron(jnp.eye(Wo, dtype=f32), params["w_proj"])  # (Wo*Cexp, Wo*Cout)
    # Per-channel vectors tiled across W so they broadcast in the packed layout.
    bexp_t = jnp.tile(params["b_exp"], (1, W))
    wdw1_t = jnp.tile(params["w_dw1"].reshape(k1 * k1, Cexp), (1, Wo))
    bdw1_t = jnp.tile(params["b_dw1"], (1, Wo))
    wdw2_t = jnp.tile(params["w_dw2"].reshape(k2 * k2, Cexp), (1, Wo))
    bdw2_t = jnp.tile(params["b_dw2"], (1, Wo))
    bproj_t = jnp.tile(params["b_proj"], (1, Wo))

    x2d = x_nhwc.reshape(N, H, W * Cin)   # free: row-major collapse of (W, Cin)

    flops = 2 * N * (H * W * Cin * Cexp + Ho * Wo * Cexp * Cout
                     + (k1 * k1 + k2 * k2) * Ho * Wo * Cexp)
    bytes_accessed = 4 * (N * H * W * Cin + N * Ho * Wo * Cout
                          + wbd_exp.size + wbd_proj.size
                          + wdw1_t.size + wdw2_t.size)

    grid_spec = pltpu.PrefetchScalarGridSpec(
        num_scalar_prefetch=0,
        grid=(N,),
        in_specs=[
            pl.BlockSpec((1, H, W * Cin), lambda b: (b, 0, 0)),
            pl.BlockSpec((W * Cin, W * Cexp), lambda b: (0, 0)),
            pl.BlockSpec((1, W * Cexp), lambda b: (0, 0)),
            pl.BlockSpec((k1 * k1, Wo * Cexp), lambda b: (0, 0)),
            pl.BlockSpec((1, Wo * Cexp), lambda b: (0, 0)),
            pl.BlockSpec((k2 * k2, Wo * Cexp), lambda b: (0, 0)),
            pl.BlockSpec((1, Wo * Cexp), lambda b: (0, 0)),
            pl.BlockSpec((Wo * Cexp, Wo * Cout), lambda b: (0, 0)),
            pl.BlockSpec((1, Wo * Cout), lambda b: (0, 0)),
        ],
        out_specs=pl.BlockSpec((1, Ho, Wo * Cout), lambda b: (b, 0, 0)),
        scratch_shapes=[
            pltpu.VMEM(pad1_shape, jnp.float32),
            pltpu.VMEM(pad2_shape, jnp.float32),
        ],
    )
    out = pl.pallas_call(
        kernel,
        out_shape=jax.ShapeDtypeStruct((N, Ho, Wo * Cout), x_nhwc.dtype),
        grid_spec=grid_spec,
        compiler_params=pltpu.CompilerParams(
            dimension_semantics=("parallel",)),
        cost_estimate=pl.CostEstimate(flops=flops, transcendentals=0,
                                      bytes_accessed=bytes_accessed),
    )(x2d, wbd_exp, bexp_t, wdw1_t, bdw1_t, wdw2_t, bdw2_t, wbd_proj, bproj_t)
    return out.reshape(N, Ho, Wo, Cout)


# ----------------------------------------------------------------------------
# General fallback: channel-major layout, handles stride >= 2 / large channels
# ----------------------------------------------------------------------------
def _make_general_kernel(H, W, Cin, Cexp, Cout, K1, K2, stride, use_residual):
    p1, p2 = K1 // 2, K2 // 2
    Ho1 = (H + 2 * p1 - K1) // stride + 1
    Wo1 = (W + 2 * p1 - K1) // stride + 1
    Ho2, Wo2 = Ho1, Wo1        # dw2 is a stride-1 'same' conv
    WL1 = _round_up(p1, 8)     # left W padding rounded to sublane multiple
    WL2 = _round_up(p2, 8)

    def zero_halo3(ref, p, h_in, w_in, wl, C):
        if p == 0:
            return
        lo, hi = wl - p, wl + w_in + p
        ref[0:p, lo:hi, :] = jnp.zeros((p, hi - lo, C), jnp.float32)
        ref[p + h_in:2 * p + h_in, lo:hi, :] = jnp.zeros((p, hi - lo, C), jnp.float32)
        ref[p:p + h_in, lo:wl, :] = jnp.zeros((h_in, p, C), jnp.float32)
        ref[p:p + h_in, wl + w_in:hi, :] = jnp.zeros((h_in, p, C), jnp.float32)

    def kernel(x_ref, wexp_ref, bexp_ref, wdw1_ref, bdw1_ref,
               wdw2_ref, bdw2_ref, wproj_ref, bproj_ref, o_ref,
               pad1_ref, pad2_ref):
        x = x_ref[0]                                     # (H, W, Cin)

        # --- conv_pw_exp: 1x1 conv == channel matmul, BN folded, ReLU --------
        y = jnp.dot(x.reshape(H * W, Cin), wexp_ref[...],
                    preferred_element_type=jnp.float32)
        y = jnp.maximum(y + bexp_ref[...], 0.0).reshape(H, W, Cexp)

        # --- conv_dw1: depthwise K1xK1, stride S, BN folded, ReLU ------------
        zero_halo3(pad1_ref, p1, H, W, WL1, Cexp)
        pad1_ref[p1:p1 + H, WL1:WL1 + W, :] = y          # sublane-aligned store
        wdw1 = wdw1_ref[...]
        acc = jnp.broadcast_to(bdw1_ref[...], (Ho1, Wo1, Cexp))
        for ky in range(K1):
            for kx in range(K1):
                c0 = WL1 - p1 + kx
                if stride == 1:
                    patch = pad1_ref[ky:ky + Ho1, c0:c0 + Wo1, :]
                else:
                    patch = pad1_ref[pl.ds(ky, Ho1, stride=stride),
                                     pl.ds(c0, Wo1, stride=stride), :]
                acc = acc + patch * wdw1[ky, kx, :]
        y = jnp.maximum(acc, 0.0)

        # --- conv_dw2: depthwise K2xK2, stride 1, BN folded, ReLU ------------
        zero_halo3(pad2_ref, p2, Ho1, Wo1, WL2, Cexp)
        pad2_ref[p2:p2 + Ho1, WL2:WL2 + Wo1, :] = y
        wdw2 = wdw2_ref[...]
        acc = jnp.broadcast_to(bdw2_ref[...], (Ho2, Wo2, Cexp))
        for ky in range(K2):
            for kx in range(K2):
                c0 = WL2 - p2 + kx
                patch = pad2_ref[ky:ky + Ho2, c0:c0 + Wo2, :]
                acc = acc + patch * wdw2[ky, kx, :]
        y = jnp.maximum(acc, 0.0)

        # --- conv_pw_proj: 1x1 conv, BN folded, no activation ----------------
        z = jnp.dot(y.reshape(Ho2 * Wo2, Cexp), wproj_ref[...],
                    preferred_element_type=jnp.float32)
        z = (z + bproj_ref[...]).reshape(Ho2, Wo2, Cout)
        if use_residual:
            z = z + x
        o_ref[0] = z.astype(o_ref.dtype)

    return kernel, (Ho2, Wo2, p1, p2, Ho1, Wo1, WL1, WL2)


def _run_general(x_nhwc, params, stride, k1, k2):
    N, H, W, Cin = x_nhwc.shape
    Cexp = params["w_exp"].shape[1]
    Cout = params["w_proj"].shape[1]
    use_residual = (stride == 1) and (Cin == Cout)
    kernel, (Ho, Wo, p1, p2, Ho1, Wo1, WL1, WL2) = _make_general_kernel(
        H, W, Cin, Cexp, Cout, k1, k2, stride, use_residual)

    flops = 2 * N * (H * W * Cin * Cexp + Ho * Wo * Cexp * Cout
                     + (k1 * k1 * Ho1 * Wo1 + k2 * k2 * Ho * Wo) * Cexp)
    bytes_accessed = 4 * (N * H * W * Cin + N * Ho * Wo * Cout
                          + Cin * Cexp + Cexp * Cout
                          + (k1 * k1 + k2 * k2) * Cexp)

    grid_spec = pltpu.PrefetchScalarGridSpec(
        num_scalar_prefetch=0,
        grid=(N,),
        in_specs=[
            pl.BlockSpec((1, H, W, Cin), lambda b: (b, 0, 0, 0)),
            pl.BlockSpec((Cin, Cexp), lambda b: (0, 0)),
            pl.BlockSpec((1, Cexp), lambda b: (0, 0)),
            pl.BlockSpec((k1, k1, Cexp), lambda b: (0, 0, 0)),
            pl.BlockSpec((1, Cexp), lambda b: (0, 0)),
            pl.BlockSpec((k2, k2, Cexp), lambda b: (0, 0, 0)),
            pl.BlockSpec((1, Cexp), lambda b: (0, 0)),
            pl.BlockSpec((Cexp, Cout), lambda b: (0, 0)),
            pl.BlockSpec((1, Cout), lambda b: (0, 0)),
        ],
        out_specs=pl.BlockSpec((1, Ho, Wo, Cout), lambda b: (b, 0, 0, 0)),
        scratch_shapes=[
            pltpu.VMEM((2 * p1 + H, WL1 + W + p1, Cexp), jnp.float32),
            pltpu.VMEM((2 * p2 + Ho1, WL2 + Wo1 + p2, Cexp), jnp.float32),
        ],
    )
    return pl.pallas_call(
        kernel,
        out_shape=jax.ShapeDtypeStruct((N, Ho, Wo, Cout), x_nhwc.dtype),
        grid_spec=grid_spec,
        compiler_params=pltpu.CompilerParams(
            dimension_semantics=("parallel",)),
        cost_estimate=pl.CostEstimate(flops=flops, transcendentals=0,
                                      bytes_accessed=bytes_accessed),
    )(x_nhwc,
      params["w_exp"], params["b_exp"],
      params["w_dw1"], params["b_dw1"],
      params["w_dw2"], params["b_dw2"],
      params["w_proj"], params["b_proj"])


# ----------------------------------------------------------------------------
# Public wrapper
# ----------------------------------------------------------------------------
@functools.partial(jax.jit, static_argnames=("stride", "k1", "k2"))
def mnv4_extra_dw_block(x_nhwc, params, *, stride, k1, k2):
    """x_nhwc: (N, H, W, Cin) float32. Returns (N, Ho, Wo, Cout) NHWC."""
    N, H, W, Cin = x_nhwc.shape
    Cexp = params["w_exp"].shape[1]
    Cout = params["w_proj"].shape[1]
    lane_dense_ok = (stride == 1 and k1 % 2 == 1 and k2 % 2 == 1
                     and W * max(Cin, Cexp, Cout) <= 2048)
    if lane_dense_ok:
        return _run_lane_dense(x_nhwc, params, k1, k2)
    return _run_general(x_nhwc, params, stride, k1, k2)


# ----------------------------------------------------------------------------
# Parameter construction (deterministic) with BatchNorm folding
# ----------------------------------------------------------------------------
def _fold_bn(w, gamma, beta, mean, var, eps=1e-5, depthwise=False):
    s = gamma / jnp.sqrt(var + eps)
    b = beta - mean * s
    if depthwise:
        w_f = w * s            # (K, K, C) * (C,)
    else:
        w_f = w * s[None, :]   # (Cin, Cout) * (Cout,)
    return w_f.astype(jnp.float32), b.reshape(1, -1).astype(jnp.float32)


def make_params(key, cin, cexp, cout, k1, k2):
    ks = jax.random.split(key, 20)

    def bn(i, c):
        gamma = 1.0 + 0.1 * jax.random.normal(ks[i], (c,), jnp.float32)
        beta = 0.05 * jax.random.normal(ks[i + 1], (c,), jnp.float32)
        mean = 0.1 * jax.random.normal(ks[i + 2], (c,), jnp.float32)
        var = 0.5 + jax.random.uniform(ks[i + 3], (c,), jnp.float32)
        return gamma, beta, mean, var

    w_exp = 0.1 * jax.random.normal(ks[0], (cin, cexp), jnp.float32)
    w_dw1 = 0.1 * jax.random.normal(ks[1], (k1, k1, cexp), jnp.float32)
    w_dw2 = 0.1 * jax.random.normal(ks[2], (k2, k2, cexp), jnp.float32)
    w_proj = 0.1 * jax.random.normal(ks[3], (cexp, cout), jnp.float32)

    w_exp_f, b_exp = _fold_bn(w_exp, *bn(4, cexp))
    w_dw1_f, b_dw1 = _fold_bn(w_dw1, *bn(8, cexp), depthwise=True)
    w_dw2_f, b_dw2 = _fold_bn(w_dw2, *bn(12, cexp), depthwise=True)
    w_proj_f, b_proj = _fold_bn(w_proj, *bn(16, cout))

    return dict(w_exp=w_exp_f, b_exp=b_exp,
                w_dw1=w_dw1_f, b_dw1=b_dw1,
                w_dw2=w_dw2_f, b_dw2=b_dw2,
                w_proj=w_proj_f, b_proj=b_proj)


# ----------------------------------------------------------------------------
# Pure-JAX reference (for correctness check)
# ----------------------------------------------------------------------------
def reference_block(x, params, *, stride, k1, k2):
    def pw(x, w, b, relu):
        y = jnp.einsum("nhwc,cd->nhwd", x, w) + b.reshape(1, 1, 1, -1)
        return jnp.maximum(y, 0.0) if relu else y

    def dw(x, w, b, s, relu):
        K = w.shape[0]
        y = jax.lax.conv_general_dilated(
            x, w[:, :, None, :],                       # HWIO, I=1 (depthwise)
            window_strides=(s, s),
            padding=[(K // 2, K // 2), (K // 2, K // 2)],
            dimension_numbers=("NHWC", "HWIO", "NHWC"),
            feature_group_count=x.shape[-1])
        y = y + b.reshape(1, 1, 1, -1)
        return jnp.maximum(y, 0.0) if relu else y

    shortcut = x
    y = pw(x, params["w_exp"], params["b_exp"], True)
    y = dw(y, params["w_dw1"], params["b_dw1"], stride, True)
    y = dw(y, params["w_dw2"], params["b_dw2"], 1, True)
    y = pw(y, params["w_proj"], params["b_proj"], False)
    if stride == 1 and x.shape[-1] == y.shape[-1]:
        y = y + shortcut
    return y


# ----------------------------------------------------------------------------
if __name__ == "__main__":
    N, Cin, Cout, Cexp = 2, 8, 8, 16
    H = W = 16
    K1, K2 = 3, 5

    key = jax.random.PRNGKey(0)
    kp, kx = jax.random.split(key)
    params = make_params(kp, Cin, Cexp, Cout, K1, K2)

    # PyTorch-convention NCHW input, transposed to the kernels' NHWC layout.
    x_nchw = jax.random.normal(kx, (N, Cin, H, W), jnp.float32)
    x_nhwc = jnp.transpose(x_nchw, (0, 2, 3, 1))

    # --- stride = 1: residual active, lane-dense fast path ------------------
    out1 = jax.block_until_ready(
        mnv4_extra_dw_block(x_nhwc, params, stride=1, k1=K1, k2=K2))
    ref1 = jax.block_until_ready(
        reference_block(x_nhwc, params, stride=1, k1=K1, k2=K2))
    assert out1.shape == ref1.shape, (out1.shape, ref1.shape)
    err1 = float(jnp.max(jnp.abs(out1 - ref1)))
    if err1 > 2e-2:
        raise RuntimeError(f"stride=1 Pallas kernel mismatch vs reference: {err1}")

    # --- stride = 2: downsampling block, general channel-major path ---------
    out2 = jax.block_until_ready(
        mnv4_extra_dw_block(x_nhwc, params, stride=2, k1=K1, k2=K2))
    ref2 = jax.block_until_ready(
        reference_block(x_nhwc, params, stride=2, k1=K1, k2=K2))
    assert out2.shape == ref2.shape, (out2.shape, ref2.shape)
    err2 = float(jnp.max(jnp.abs(out2 - ref2)))
    if err2 > 2e-2:
        raise RuntimeError(f"stride=2 Pallas kernel mismatch vs reference: {err2}")

    print("KERNEL_OK")
</pallas_src>

<mosaic_0001>
module attributes {stable_mosaic.version = 11 : i64} {
  func.func @kernel(%arg0: i32, %arg1: memref<1x16x128xf32, #tpu.memory_space<vmem>>, %arg2: memref<128x256xf32, #tpu.memory_space<vmem>>, %arg3: memref<1x256xf32, #tpu.memory_space<vmem>>, %arg4: memref<9x256xf32, #tpu.memory_space<vmem>>, %arg5: memref<1x256xf32, #tpu.memory_space<vmem>>, %arg6: memref<25x256xf32, #tpu.memory_space<vmem>>, %arg7: memref<1x256xf32, #tpu.memory_space<vmem>>, %arg8: memref<256x128xf32, #tpu.memory_space<vmem>>, %arg9: memref<1x128xf32, #tpu.memory_space<vmem>>, %arg10: memref<1x16x128xf32, #tpu.memory_space<vmem>>, %arg11: memref<25x400xf32, #tpu.memory_space<vmem>>, %arg12: memref<26x416xf32, #tpu.memory_space<vmem>>) attributes {dimension_semantics = [#tpu.dimension_semantics<parallel>], iteration_bounds = array<i64: 2>, scalar_prefetch = 0 : i64, scratch_operands = 2 : i64, tpu.core_type = #tpu.core_type<tc>, window_params = [{transform_indices = @transform_0, window_bounds = array<i64: 1, 16, 128>}, {pipeline_mode = #tpu.pipeline_mode<synchronous>, transform_indices = @transform_1, window_bounds = array<i64: 128, 256>}, {pipeline_mode = #tpu.pipeline_mode<synchronous>, transform_indices = @transform_2, window_bounds = array<i64: 1, 256>}, {pipeline_mode = #tpu.pipeline_mode<synchronous>, transform_indices = @transform_3, window_bounds = array<i64: 9, 256>}, {pipeline_mode = #tpu.pipeline_mode<synchronous>, transform_indices = @transform_4, window_bounds = array<i64: 1, 256>}, {pipeline_mode = #tpu.pipeline_mode<synchronous>, transform_indices = @transform_5, window_bounds = array<i64: 25, 256>}, {pipeline_mode = #tpu.pipeline_mode<synchronous>, transform_indices = @transform_6, window_bounds = array<i64: 1, 256>}, {pipeline_mode = #tpu.pipeline_mode<synchronous>, transform_indices = @transform_7, window_bounds = array<i64: 256, 128>}, {pipeline_mode = #tpu.pipeline_mode<synchronous>, transform_indices = @transform_8, window_bounds = array<i64: 1, 128>}, {transform_indices = @transform_9, window_bounds = array<i64: 1, 16, 128>}]} {
    %c0 = arith.constant 0 : index
    %c0_0 = arith.constant 0 : index
    %c0_1 = arith.constant 0 : index
    %0 = vector.load %arg1[%c0, %c0_0, %c0_1] : memref<1x16x128xf32, #tpu.memory_space<vmem>>, vector<1x16x128xf32>
    %1 = vector.shape_cast %0 : vector<1x16x128xf32> to vector<16x128xf32>
    %c0_2 = arith.constant 0 : index
    %c0_3 = arith.constant 0 : index
    %2 = vector.load %arg2[%c0_2, %c0_3] : memref<128x256xf32, #tpu.memory_space<vmem>>, vector<128x256xf32>
    %cst = arith.constant dense<0.000000e+00> : vector<16x256xf32>
    %3 = tpu.matmul %1, %2, %cst {dimension_numbers = #tpu.dot_dimension_numbers<[1], [0], [0], [1], [0, 0, 1, 1], [], []>} : vector<16x128xf32>, vector<128x256xf32>, vector<16x256xf32> -> vector<16x256xf32>
    %c0_4 = arith.constant 0 : index
    %c0_5 = arith.constant 0 : index
    %4 = vector.load %arg3[%c0_4, %c0_5] : memref<1x256xf32, #tpu.memory_space<vmem>>, vector<1x256xf32>
    %5 = vector.broadcast %4 : vector<1x256xf32> to vector<16x256xf32>
    %6 = arith.addf %3, %5 : vector<16x256xf32>
    %cst_6 = arith.constant 0.000000e+00 : f32
    %7 = vector.broadcast %cst_6 : f32 to vector<16x256xf32>
    %8 = arith.maximumf %6, %7 : vector<16x256xf32>
    %cst_7 = arith.constant 0.000000e+00 : f32
    %9 = vector.broadcast %cst_7 : f32 to vector<1x288xf32>
    %c7 = arith.constant 7 : index
    %c112 = arith.constant 112 : index
    %10 = vector.load %arg11[%c7, %c112] : memref<25x400xf32, #tpu.memory_space<vmem>>, vector<1x288xf32>
    tpu.vector_store %arg11[%c7, %c112], %9 {strides = array<i32>} : memref<25x400xf32, #tpu.memory_space<vmem>>, vector<1x288xf32>,
    %cst_8 = arith.constant 0.000000e+00 : f32
    %11 = vector.broadcast %cst_8 : f32 to vector<1x288xf32>
    %c24 = arith.constant 24 : index
    %c112_9 = arith.constant 112 : index
    %12 = vector.load %arg11[%c24, %c112_9] : memref<25x400xf32, #tpu.memory_space<vmem>>, vector<1x288xf32>
    tpu.vector_store %arg11[%c24, %c112_9], %11 {strides = array<i32>} : memref<25x400xf32, #tpu.memory_space<vmem>>, vector<1x288xf32>,
    %cst_10 = arith.constant 0.000000e+00 : f32
    %13 = vector.broadcast %cst_10 : f32 to vector<16x16xf32>
    %c8 = arith.constant 8 : index
    %c112_11 = arith.constant 112 : index
    %14 = vector.load %arg11[%c8, %c112_11] : memref<25x400xf32, #tpu.memory_space<vmem>>, vector<16x16xf32>
    tpu.vector_store %arg11[%c8, %c112_11], %13 {strides = array<i32>} : memref<25x400xf32, #tpu.memory_space<vmem>>, vector<16x16xf32>,
    %cst_12 = arith.constant 0.000000e+00 : f32
    %15 = vector.broadcast %cst_12 : f32 to vector<16x16xf32>
    %c8_13 = arith.constant 8 : index
    %c384 = arith.constant 384 : index
    %16 = vector.load %arg11[%c8_13, %c384] : memref<25x400xf32, #tpu.memory_space<vmem>>, vector<16x16xf32>
    tpu.vector_store %arg11[%c8_13, %c384], %15 {strides = array<i32>} : memref<25x400xf32, #tpu.memory_space<vmem>>, vector<16x16xf32>,
    %c8_14 = arith.constant 8 : index
    %c128 = arith.constant 128 : index
    %17 = vector.load %arg11[%c8_14, %c128] : memref<25x400xf32, #tpu.memory_space<vmem>>, vector<16x256xf32>
    tpu.vector_store %arg11[%c8_14, %c128], %8 {strides = array<i32>} : memref<25x400xf32, #tpu.memory_space<vmem>>, vector<16x256xf32>,
    %c0_15 = arith.constant 0 : index
    %c0_16 = arith.constant 0 : index
    %18 = vector.load %arg5[%c0_15, %c0_16] : memref<1x256xf32, #tpu.memory_space<vmem>>, vector<1x256xf32>
    %19 = vector.shape_cast %18 : vector<1x256xf32> to vector<1x256xf32>
    %20 = vector.broadcast %19 : vector<1x256xf32> to vector<16x256xf32>
    %c7_17 = arith.constant 7 : index
    %c112_18 = arith.constant 112 : index
    %21 = vector.load %arg11[%c7_17, %c112_18] : memref<25x400xf32, #tpu.memory_space<vmem>>, vector<16x256xf32>
    %c0_19 = arith.constant 0 : index
    %c0_20 = arith.constant 0 : index
    %22 = vector.load %arg4[%c0_19, %c0_20] : memref<9x256xf32, #tpu.memory_space<vmem>>, vector<1x256xf32>
    %23 = vector.broadcast %22 : vector<1x256xf32> to vector<16x256xf32>
    %24 = arith.mulf %21, %23 : vector<16x256xf32>
    %25 = arith.addf %20, %24 : vector<16x256xf32>
    %c7_21 = arith.constant 7 : index
    %c128_22 = arith.constant 128 : index
    %26 = vector.load %arg11[%c7_21, %c128_22] : memref<25x400xf32, #tpu.memory_space<vmem>>, vector<16x256xf32>
    %c1 = arith.constant 1 : index
    %c0_23 = arith.constant 0 : index
    %27 = vector.load %arg4[%c1, %c0_23] : memref<9x256xf32, #tpu.memory_space<vmem>>, vector<1x256xf32>
    %28 = vector.broadcast %27 : vector<1x256xf32> to vector<16x256xf32>
    %29 = arith.mulf %26, %28 : vector<16x256xf32>
    %30 = arith.addf %25, %29 : vector<16x256xf32>
    %c7_24 = arith.constant 7 : index
    %c144 = arith.constant 144 : index
    %31 = vector.load %arg11[%c7_24, %c144] : memref<25x400xf32, #tpu.memory_space<vmem>>, vector<16x256xf32>
    %c2 = arith.constant 2 : index
    %c0_25 = arith.constant 0 : index
    %32 = vector.load %arg4[%c2, %c0_25] : memref<9x256xf32, #tpu.memory_space<vmem>>, vector<1x256xf32>
    %33 = vector.broadcast %32 : vector<1x256xf32> to vector<16x256xf32>
    %34 = arith.mulf %31, %33 : vector<16x256xf32>
    %35 = arith.addf %30, %34 : vector<16x256xf32>
    %c8_26 = arith.constant 8 : index
    %c112_27 = arith.constant 112 : index
    %36 = vector.load %arg11[%c8_26, %c112_27] : memref<25x400xf32, #tpu.memory_space<vmem>>, vector<16x256xf32>
    %c3 = arith.constant 3 : index
    %c0_28 = arith.constant 0 : index
    %37 = vector.load %arg4[%c3, %c0_28] : memref<9x256xf32, #tpu.memory_space<vmem>>, vector<1x256xf32>
    %38 = vector.broadcast %37 : vector<1x256xf32> to vector<16x256xf32>
    %39 = arith.mulf %36, %38 : vector<16x256xf32>
    %40 = arith.addf %35, %39 : vector<16x256xf32>
    %c8_29 = arith.constant 8 : index
    %c128_30 = arith.constant 128 : index
    %41 = vector.load %arg11[%c8_29, %c128_30] : memref<25x400xf32, #tpu.memory_space<vmem>>, vector<16x256xf32>
    %c4 = arith.constant 4 : index
    %c0_31 = arith.constant 0 : index
    %42 = vector.load %arg4[%c4, %c0_31] : memref<9x256xf32, #tpu.memory_space<vmem>>, vector<1x256xf32>
    %43 = vector.broadcast %42 : vector<1x256xf32> to vector<16x256xf32>
    %44 = arith.mulf %41, %43 : vector<16x256xf32>
    %45 = arith.addf %40, %44 : vector<16x256xf32>
    %c8_32 = arith.constant 8 : index
    %c144_33 = arith.constant 144 : index
    %46 = vector.load %arg11[%c8_32, %c144_33] : memref<25x400xf32, #tpu.memory_space<vmem>>, vector<16x256xf32>
    %c5 = arith.constant 5 : index
    %c0_34 = arith.constant 0 : index
    %47 = vector.load %arg4[%c5, %c0_34] : memref<9x256xf32, #tpu.memory_space<vmem>>, vector<1x256xf32>
    %48 = vector.broadcast %47 : vector<1x256xf32> to vector<16x256xf32>
    %49 = arith.mulf %46, %48 : vector<16x256xf32>
    %50 = arith.addf %45, %49 : vector<16x256xf32>
    %c9 = arith.constant 9 : index
    %c112_35 = arith.constant 112 : index
    %51 = vector.load %arg11[%c9, %c112_35] : memref<25x400xf32, #tpu.memory_space<vmem>>, vector<16x256xf32>
    %c6 = arith.constant 6 : index
    %c0_36 = arith.constant 0 : index
    %52 = vector.load %arg4[%c6, %c0_36] : memref<9x256xf32, #tpu.memory_space<vmem>>, vector<1x256xf32>
    %53 = vector.broadcast %52 : vector<1x256xf32> to vector<16x256xf32>
    %54 = arith.mulf %51, %53 : vector<16x256xf32>
    %55 = arith.addf %50, %54 : vector<16x256xf32>
    %c9_37 = arith.constant 9 : index
    %c128_38 = arith.constant 128 : index
    %56 = vector.load %arg11[%c9_37, %c128_38] : memref<25x400xf32, #tpu.memory_space<vmem>>, vector<16x256xf32>
    %c7_39 = arith.constant 7 : index
    %c0_40 = arith.constant 0 : index
    %57 = vector.load %arg4[%c7_39, %c0_40] : memref<9x256xf32, #tpu.memory_space<vmem>>, vector<1x256xf32>
    %58 = vector.broadcast %57 : vector<1x256xf32> to vector<16x256xf32>
    %59 = arith.mulf %56, %58 : vector<16x256xf32>
    %60 = arith.addf %55, %59 : vector<16x256xf32>
    %c9_41 = arith.constant 9 : index
    %c144_42 = arith.constant 144 : index
    %61 = vector.load %arg11[%c9_41, %c144_42] : memref<25x400xf32, #tpu.memory_space<vmem>>, vector<16x256xf32>
    %c8_43 = arith.constant 8 : index
    %c0_44 = arith.constant 0 : index
    %62 = vector.load %arg4[%c8_43, %c0_44] : memref<9x256xf32, #tpu.memory_space<vmem>>, vector<1x256xf32>
    %63 = vector.broadcast %62 : vector<1x256xf32> to vector<16x256xf32>
    %64 = arith.mulf %61, %63 : vector<16x256xf32>
    %65 = arith.addf %60, %64 : vector<16x256xf32>
    %cst_45 = arith.constant 0.000000e+00 : f32
    %66 = vector.broadcast %cst_45 : f32 to vector<16x256xf32>
    %67 = arith.maximumf %65, %66 : vector<16x256xf32>
    %cst_46 = arith.constant 0.000000e+00 : f32
    %68 = vector.broadcast %cst_46 : f32 to vector<2x320xf32>
    %c6_47 = arith.constant 6 : index
    %c96 = arith.constant 96 : index
    %69 = vector.load %arg12[%c6_47, %c96] : memref<26x416xf32, #tpu.memory_space<vmem>>, vector<2x320xf32>
    tpu.vector_store %arg12[%c6_47, %c96], %68 {strides = array<i32>} : memref<26x416xf32, #tpu.memory_space<vmem>>, vector<2x320xf32>,
    %cst_48 = arith.constant 0.000000e+00 : f32
    %70 = vector.broadcast %cst_48 : f32 to vector<2x320xf32>
    %c24_49 = arith.constant 24 : index
    %c96_50 = arith.constant 96 : index
    %71 = vector.load %arg12[%c24_49, %c96_50] : memref<26x416xf32, #tpu.memory_space<vmem>>, vector<2x320xf32>
    tpu.vector_store %arg12[%c24_49, %c96_50], %70 {strides = array<i32>} : memref<26x416xf32, #tpu.memory_space<vmem>>, vector<2x320xf32>,
    %cst_51 = arith.constant 0.000000e+00 : f32
    %72 = vector.broadcast %cst_51 : f32 to vector<16x32xf32>
    %c8_52 = arith.constant 8 : index
    %c96_53 = arith.constant 96 : index
    %73 = vector.load %arg12[%c8_52, %c96_53] : memref<26x416xf32, #tpu.memory_space<vmem>>, vector<16x32xf32>
    tpu.vector_store %arg12[%c8_52, %c96_53], %72 {strides = array<i32>} : memref<26x416xf32, #tpu.memory_space<vmem>>, vector<16x32xf32>,
    %cst_54 = arith.constant 0.000000e+00 : f32
    %74 = vector.broadcast %cst_54 : f32 to vector<16x32xf32>
    %c8_55 = arith.constant 8 : index
    %c384_56 = arith.constant 384 : index
    %75 = vector.load %arg12[%c8_55, %c384_56] : memref<26x416xf32, #tpu.memory_space<vmem>>, vector<16x32xf32>
    tpu.vector_store %arg12[%c8_55, %c384_56], %74 {strides = array<i32>} : memref<26x416xf32, #tpu.memory_space<vmem>>, vector<16x32xf32>,
    %c8_57 = arith.constant 8 : index
    %c128_58 = arith.constant 128 : index
    %76 = vector.load %arg12[%c8_57, %c128_58] : memref<26x416xf32, #tpu.memory_space<vmem>>, vector<16x256xf32>
    tpu.vector_store %arg12[%c8_57, %c128_58], %67 {strides = array<i32>} : memref<26x416xf32, #tpu.memory_space<vmem>>, vector<16x256xf32>,
    %c0_59 = arith.constant 0 : index
    %c0_60 = arith.constant 0 : index
    %77 = vector.load %arg7[%c0_59, %c0_60] : memref<1x256xf32, #tpu.memory_space<vmem>>, vector<1x256xf32>
    %78 = vector.shape_cast %77 : vector<1x256xf32> to vector<1x256xf32>
    %79 = vector.broadcast %78 : vector<1x256xf32> to vector<16x256xf32>
    %c6_61 = arith.constant 6 : index
    %c96_62 = arith.constant 96 : index
    %80 = vector.load %arg12[%c6_61, %c96_62] : memref<26x416xf32, #tpu.memory_space<vmem>>, vector<16x256xf32>
    %c0_63 = arith.constant 0 : index
    %c0_64 = arith.constant 0 : index
    %81 = vector.load %arg6[%c0_63, %c0_64] : memref<25x256xf32, #tpu.memory_space<vmem>>, vector<1x256xf32>
    %82 = vector.broadcast %81 : vector<1x256xf32> to vector<16x256xf32>
    %83 = arith.mulf %80, %82 : vector<16x256xf32>
    %84 = arith.addf %79, %83 : vector<16x256xf32>
    %c6_65 = arith.constant 6 : index
    %c112_66 = arith.constant 112 : index
    %85 = vector.load %arg12[%c6_65, %c112_66] : memref<26x416xf32, #tpu.memory_space<vmem>>, vector<16x256xf32>
    %c1_67 = arith.constant 1 : index
    %c0_68 = arith.constant 0 : index
    %86 = vector.load %arg6[%c1_67, %c0_68] : memref<25x256xf32, #tpu.memory_space<vmem>>, vector<1x256xf32>
    %87 = vector.broadcast %86 : vector<1x256xf32> to vector<16x256xf32>
    %88 = arith.mulf %85, %87 : vector<16x256xf32>
    %89 = arith.addf %84, %88 : vector<16x256xf32>
    %c6_69 = arith.constant 6 : index
    %c128_70 = arith.constant 128 : index
    %90 = vector.load %arg12[%c6_69, %c128_70] : memref<26x416xf32, #tpu.memory_space<vmem>>, vector<16x256xf32>
    %c2_71 = arith.constant 2 : index
    %c0_72 = arith.constant 0 : index
    %91 = vector.load %arg6[%c2_71, %c0_72] : memref<25x256xf32, #tpu.memory_space<vmem>>, vector<1x256xf32>
    %92 = vector.broadcast %91 : vector<1x256xf32> to vector<16x256xf32>
    %93 = arith.mulf %90, %92 : vector<16x256xf32>
    %94 = arith.addf %89, %93 : vector<16x256xf32>
    %c6_73 = arith.constant 6 : index
    %c144_74 = arith.constant 144 : index
    %95 = vector.load %arg12[%c6_73, %c144_74] : memref<26x416xf32, #tpu.memory_space<vmem>>, vector<16x256xf32>
    %c3_75 = arith.constant 3 : index
    %c0_76 = arith.constant 0 : index
    %96 = vector.load %arg6[%c3_75, %c0_76] : memref<25x256xf32, #tpu.memory_space<vmem>>, vector<1x256xf32>
    %97 = vector.broadcast %96 : vector<1x256xf32> to vector<16x256xf32>
    %98 = arith.mulf %95, %97 : vector<16x256xf32>
    %99 = arith.addf %94, %98 : vector<16x256xf32>
    %c6_77 = arith.constant 6 : index
    %c160 = arith.constant 160 : index
    %100 = vector.load %arg12[%c6_77, %c160] : memref<26x416xf32, #tpu.memory_space<vmem>>, vector<16x256xf32>
    %c4_78 = arith.constant 4 : index
    %c0_79 = arith.constant 0 : index
    %101 = vector.load %arg6[%c4_78, %c0_79] : memref<25x256xf32, #tpu.memory_space<vmem>>, vector<1x256xf32>
    %102 = vector.broadcast %101 : vector<1x256xf32> to vector<16x256xf32>
    %103 = arith.mulf %100, %102 : vector<16x256xf32>
    %104 = arith.addf %99, %103 : vector<16x256xf32>
    %c7_80 = arith.constant 7 : index
    %c96_81 = arith.constant 96 : index
    %105 = vector.load %arg12[%c7_80, %c96_81] : memref<26x416xf32, #tpu.memory_space<vmem>>, vector<16x256xf32>
    %c5_82 = arith.constant 5 : index
    %c0_83 = arith.constant 0 : index
    %106 = vector.load %arg6[%c5_82, %c0_83] : memref<25x256xf32, #tpu.memory_space<vmem>>, vector<1x256xf32>
    %107 = vector.broadcast %106 : vector<1x256xf32> to vector<16x256xf32>
    %108 = arith.mulf %105, %107 : vector<16x256xf32>
    %109 = arith.addf %104, %108 : vector<16x256xf32>
    %c7_84 = arith.constant 7 : index
    %c112_85 = arith.constant 112 : index
    %110 = vector.load %arg12[%c7_84, %c112_85] : memref<26x416xf32, #tpu.memory_space<vmem>>, vector<16x256xf32>
    %c6_86 = arith.constant 6 : index
    %c0_87 = arith.constant 0 : index
    %111 = vector.load %arg6[%c6_86, %c0_87] : memref<25x256xf32, #tpu.memory_space<vmem>>, vector<1x256xf32>
    %112 = vector.broadcast %111 : vector<1x256xf32> to vector<16x256xf32>
    %113 = arith.mulf %110, %112 : vector<16x256xf32>
    %114 = arith.addf %109, %113 : vector<16x256xf32>
    %c7_88 = arith.constant 7 : index
    %c128_89 = arith.constant 128 : index
    %115 = vector.load %arg12[%c7_88, %c128_89] : memref<26x416xf32, #tpu.memory_space<vmem>>, vector<16x256xf32>
    %c7_90 = arith.constant 7 : index
    %c0_91 = arith.constant 0 : index
    %116 = vector.load %arg6[%c7_90, %c0_91] : memref<25x256xf32, #tpu.memory_space<vmem>>, vector<1x256xf32>
    %117 = vector.broadcast %116 : vector<1x256xf32> to vector<16x256xf32>
    %118 = arith.mulf %115, %117 : vector<16x256xf32>
    %119 = arith.addf %114, %118 : vector<16x256xf32>
    %c7_92 = arith.constant 7 : index
    %c144_93 = arith.constant 144 : index
    %120 = vector.load %arg12[%c7_92, %c144_93] : memref<26x416xf32, #tpu.memory_space<vmem>>, vector<16x256xf32>
    %c8_94 = arith.constant 8 : index
    %c0_95 = arith.constant 0 : index
    %121 = vector.load %arg6[%c8_94, %c0_95] : memref<25x256xf32, #tpu.memory_space<vmem>>, vector<1x256xf32>
    %122 = vector.broadcast %121 : vector<1x256xf32> to vector<16x256xf32>
    %123 = arith.mulf %120, %122 : vector<16x256xf32>
    %124 = arith.addf %119, %123 : vector<16x256xf32>
    %c7_96 = arith.constant 7 : index
    %c160_97 = arith.constant 160 : index
    %125 = vector.load %arg12[%c7_96, %c160_97] : memref<26x416xf32, #tpu.memory_space<vmem>>, vector<16x256xf32>
    %c9_98 = arith.constant 9 : index
    %c0_99 = arith.constant 0 : index
    %126 = vector.load %arg6[%c9_98, %c0_99] : memref<25x256xf32, #tpu.memory_space<vmem>>, vector<1x256xf32>
    %127 = vector.broadcast %126 : vector<1x256xf32> to vector<16x256xf32>
    %128 = arith.mulf %125, %127 : vector<16x256xf32>
    %129 = arith.addf %124, %128 : vector<16x256xf32>
    %c8_100 = arith.constant 8 : index
    %c96_101 = arith.constant 96 : index
    %130 = vector.load %arg12[%c8_100, %c96_101] : memref<26x416xf32, #tpu.memory_space<vmem>>, vector<16x256xf32>
    %c10 = arith.constant 10 : index
    %c0_102 = arith.constant 0 : index
    %131 = vector.load %arg6[%c10, %c0_102] : memref<25x256xf32, #tpu.memory_space<vmem>>, vector<1x256xf32>
    %132 = vector.broadcast %131 : vector<1x256xf32> to vector<16x256xf32>
    %133 = arith.mulf %130, %132 : vector<16x256xf32>
    %134 = arith.addf %129, %133 : vector<16x256xf32>
    %c8_103 = arith.constant 8 : index
    %c112_104 = arith.constant 112 : index
    %135 = vector.load %arg12[%c8_103, %c112_104] : memref<26x416xf32, #tpu.memory_space<vmem>>, vector<16x256xf32>
    %c11 = arith.constant 11 : index
    %c0_105 = arith.constant 0 : index
    %136 = vector.load %arg6[%c11, %c0_105] : memref<25x256xf32, #tpu.memory_space<vmem>>, vector<1x256xf32>
    %137 = vector.broadcast %136 : vector<1x256xf32> to vector<16x256xf32>
    %138 = arith.mulf %135, %137 : vector<16x256xf32>
    %139 = arith.addf %134, %138 : vector<16x256xf32>
    %c8_106 = arith.constant 8 : index
    %c128_107 = arith.constant 128 : index
    %140 = vector.load %arg12[%c8_106, %c128_107] : memref<26x416xf32, #tpu.memory_space<vmem>>, vector<16x256xf32>
    %c12 = arith.constant 12 : index
    %c0_108 = arith.constant 0 : index
    %141 = vector.load %arg6[%c12, %c0_108] : memref<25x256xf32, #tpu.memory_space<vmem>>, vector<1x256xf32>
    %142 = vector.broadcast %141 : vector<1x256xf32> to vector<16x256xf32>
    %143 = arith.mulf %140, %142 : vector<16x256xf32>
    %144 = arith.addf %139, %143 : vector<16x256xf32>
    %c8_109 = arith.constant 8 : index
    %c144_110 = arith.constant 144 : index
    %145 = vector.load %arg12[%c8_109, %c144_110] : memref<26x416xf32, #tpu.memory_space<vmem>>, vector<16x256xf32>
    %c13 = arith.constant 13 : index
    %c0_111 = arith.constant 0 : index
    %146 = vector.load %arg6[%c13, %c0_111] : memref<25x256xf32, #tpu.memory_space<vmem>>, vector<1x256xf32>
    %147 = vector.broadcast %146 : vector<1x256xf32> to vector<16x256xf32>
    %148 = arith.mulf %145, %147 : vector<16x256xf32>
    %149 = arith.addf %144, %148 : vector<16x256xf32>
    %c8_112 = arith.constant 8 : index
    %c160_113 = arith.constant 160 : index
    %150 = vector.load %arg12[%c8_112, %c160_113] : memref<26x416xf32, #tpu.memory_space<vmem>>, vector<16x256xf32>
    %c14 = arith.constant 14 : index
    %c0_114 = arith.constant 0 : index
    %151 = vector.load %arg6[%c14, %c0_114] : memref<25x256xf32, #tpu.memory_space<vmem>>, vector<1x256xf32>
    %152 = vector.broadcast %151 : vector<1x256xf32> to vector<16x256xf32>
    %153 = arith.mulf %150, %152 : vector<16x256xf32>
    %154 = arith.addf %149, %153 : vector<16x256xf32>
    %c9_115 = arith.constant 9 : index
    %c96_116 = arith.constant 96 : index
    %155 = vector.load %arg12[%c9_115, %c96_116] : memref<26x416xf32, #tpu.memory_space<vmem>>, vector<16x256xf32>
    %c15 = arith.constant 15 : index
    %c0_117 = arith.constant 0 : index
    %156 = vector.load %arg6[%c15, %c0_117] : memref<25x256xf32, #tpu.memory_space<vmem>>, vector<1x256xf32>
    %157 = vector.broadcast %156 : vector<1x256xf32> to vector<16x256xf32>
    %158 = arith.mulf %155, %157 : vector<16x256xf32>
    %159 = arith.addf %154, %158 : vector<16x256xf32>
    %c9_118 = arith.constant 9 : index
    %c112_119 = arith.constant 112 : index
    %160 = vector.load %arg12[%c9_118, %c112_119] : memref<26x416xf32, #tpu.memory_space<vmem>>, vector<16x256xf32>
    %c16 = arith.constant 16 : index
    %c0_120 = arith.constant 0 : index
    %161 = vector.load %arg6[%c16, %c0_120] : memref<25x256xf32, #tpu.memory_space<vmem>>, vector<1x256xf32>
    %162 = vector.broadcast %161 : vector<1x256xf32> to vector<16x256xf32>
    %163 = arith.mulf %160, %162 : vector<16x256xf32>
    %164 = arith.addf %159, %163 : vector<16x256xf32>
    %c9_121 = arith.constant 9 : index
    %c128_122 = arith.constant 128 : index
    %165 = vector.load %arg12[%c9_121, %c128_122] : memref<26x416xf32, #tpu.memory_space<vmem>>, vector<16x256xf32>
    %c17 = arith.constant 17 : index
    %c0_123 = arith.constant 0 : index
    %166 = vector.load %arg6[%c17, %c0_123] : memref<25x256xf32, #tpu.memory_space<vmem>>, vector<1x256xf32>
    %167 = vector.broadcast %166 : vector<1x256xf32> to vector<16x256xf32>
    %168 = arith.mulf %165, %167 : vector<16x256xf32>
    %169 = arith.addf %164, %168 : vector<16x256xf32>
    %c9_124 = arith.constant 9 : index
    %c144_125 = arith.constant 144 : index
    %170 = vector.load %arg12[%c9_124, %c144_125] : memref<26x416xf32, #tpu.memory_space<vmem>>, vector<16x256xf32>
    %c18 = arith.constant 18 : index
    %c0_126 = arith.constant 0 : index
    %171 = vector.load %arg6[%c18, %c0_126] : memref<25x256xf32, #tpu.memory_space<vmem>>, vector<1x256xf32>
    %172 = vector.broadcast %171 : vector<1x256xf32> to vector<16x256xf32>
    %173 = arith.mulf %170, %172 : vector<16x256xf32>
    %174 = arith.addf %169, %173 : vector<16x256xf32>
    %c9_127 = arith.constant 9 : index
    %c160_128 = arith.constant 160 : index
    %175 = vector.load %arg12[%c9_127, %c160_128] : memref<26x416xf32, #tpu.memory_space<vmem>>, vector<16x256xf32>
    %c19 = arith.constant 19 : index
    %c0_129 = arith.constant 0 : index
    %176 = vector.load %arg6[%c19, %c0_129] : memref<25x256xf32, #tpu.memory_space<vmem>>, vector<1x256xf32>
    %177 = vector.broadcast %176 : vector<1x256xf32> to vector<16x256xf32>
    %178 = arith.mulf %175, %177 : vector<16x256xf32>
    %179 = arith.addf %174, %178 : vector<16x256xf32>
    %c10_130 = arith.constant 10 : index
    %c96_131 = arith.constant 96 : index
    %180 = vector.load %arg12[%c10_130, %c96_131] : memref<26x416xf32, #tpu.memory_space<vmem>>, vector<16x256xf32>
    %c20 = arith.constant 20 : index
    %c0_132 = arith.constant 0 : index
    %181 = vector.load %arg6[%c20, %c0_132] : memref<25x256xf32, #tpu.memory_space<vmem>>, vector<1x256xf32>
    %182 = vector.broadcast %181 : vector<1x256xf32> to vector<16x256xf32>
    %183 = arith.mulf %180, %182 : vector<16x256xf32>
    %184 = arith.addf %179, %183 : vector<16x256xf32>
    %c10_133 = arith.constant 10 : index
    %c112_134 = arith.constant 112 : index
    %185 = vector.load %arg12[%c10_133, %c112_134] : memref<26x416xf32, #tpu.memory_space<vmem>>, vector<16x256xf32>
    %c21 = arith.constant 21 : index
    %c0_135 = arith.constant 0 : index
    %186 = vector.load %arg6[%c21, %c0_135] : memref<25x256xf32, #tpu.memory_space<vmem>>, vector<1x256xf32>
    %187 = vector.broadcast %186 : vector<1x256xf32> to vector<16x256xf32>
    %188 = arith.mulf %185, %187 : vector<16x256xf32>
    %189 = arith.addf %184, %188 : vector<16x256xf32>
    %c10_136 = arith.constant 10 : index
    %c128_137 = arith.constant 128 : index
    %190 = vector.load %arg12[%c10_136, %c128_137] : memref<26x416xf32, #tpu.memory_space<vmem>>, vector<16x256xf32>
    %c22 = arith.constant 22 : index
    %c0_138 = arith.constant 0 : index
    %191 = vector.load %arg6[%c22, %c0_138] : memref<25x256xf32, #tpu.memory_space<vmem>>, vector<1x256xf32>
    %192 = vector.broadcast %191 : vector<1x256xf32> to vector<16x256xf32>
    %193 = arith.mulf %190, %192 : vector<16x256xf32>
    %194 = arith.addf %189, %193 : vector<16x256xf32>
    %c10_139 = arith.constant 10 : index
    %c144_140 = arith.constant 144 : index
    %195 = vector.load %arg12[%c10_139, %c144_140] : memref<26x416xf32, #tpu.memory_space<vmem>>, vector<16x256xf32>
    %c23 = arith.constant 23 : index
    %c0_141 = arith.constant 0 : index
    %196 = vector.load %arg6[%c23, %c0_141] : memref<25x256xf32, #tpu.memory_space<vmem>>, vector<1x256xf32>
    %197 = vector.broadcast %196 : vector<1x256xf32> to vector<16x256xf32>
    %198 = arith.mulf %195, %197 : vector<16x256xf32>
    %199 = arith.addf %194, %198 : vector<16x256xf32>
    %c10_142 = arith.constant 10 : index
    %c160_143 = arith.constant 160 : index
    %200 = vector.load %arg12[%c10_142, %c160_143] : memref<26x416xf32, #tpu.memory_space<vmem>>, vector<16x256xf32>
    %c24_144 = arith.constant 24 : index
    %c0_145 = arith.constant 0 : index
    %201 = vector.load %arg6[%c24_144, %c0_145] : memref<25x256xf32, #tpu.memory_space<vmem>>, vector<1x256xf32>
    %202 = vector.broadcast %201 : vector<1x256xf32> to vector<16x256xf32>
    %203 = arith.mulf %200, %202 : vector<16x256xf32>
    %204 = arith.addf %199, %203 : vector<16x256xf32>
    %cst_146 = arith.constant 0.000000e+00 : f32
    %205 = vector.broadcast %cst_146 : f32 to vector<16x256xf32>
    %206 = arith.maximumf %204, %205 : vector<16x256xf32>
    %c0_147 = arith.constant 0 : index
    %c0_148 = arith.constant 0 : index
    %207 = vector.load %arg8[%c0_147, %c0_148] : memref<256x128xf32, #tpu.memory_space<vmem>>, vector<256x128xf32>
    %cst_149 = arith.constant dense<0.000000e+00> : vector<16x128xf32>
    %208 = tpu.matmul %206, %207, %cst_149 {dimension_numbers = #tpu.dot_dimension_numbers<[1], [0], [0], [1], [0, 0, 1, 1], [], []>} : vector<16x256xf32>, vector<256x128xf32>, vector<16x128xf32> -> vector<16x128xf32>
    %c0_150 = arith.constant 0 : index
    %c0_151 = arith.constant 0 : index
    %209 = vector.load %arg9[%c0_150, %c0_151] : memref<1x128xf32, #tpu.memory_space<vmem>>, vector<1x128xf32>
    %210 = vector.broadcast %209 : vector<1x128xf32> to vector<16x128xf32>
    %211 = arith.addf %208, %210 : vector<16x128xf32>
    %212 = arith.addf %211, %1 : vector<16x128xf32>
    %c0_152 = arith.constant 0 : index
    %c0_153 = arith.constant 0 : index
    %c0_154 = arith.constant 0 : index
    %213 = vector.load %arg10[%c0_152, %c0_153, %c0_154] : memref<1x16x128xf32, #tpu.memory_space<vmem>>, vector<1x16x128xf32>
    %214 = vector.shape_cast %213 : vector<1x16x128xf32> to vector<16x128xf32>
    %215 = vector.shape_cast %212 : vector<16x128xf32> to vector<1x16x128xf32>
    tpu.vector_store %arg10[%c0_152, %c0_153, %c0_154], %215 {strides = array<i32>} : memref<1x16x128xf32, #tpu.memory_space<vmem>>, vector<1x16x128xf32>,
    return
  }
  func.func @transform_0(%arg0: i32) -> (i32, i32, i32) {
    %c0_i32 = arith.constant 0 : i32
    %c0_i32_0 = arith.constant 0 : i32
    %c0_i32_1 = arith.constant 0 : i32
    return %arg0, %c0_i32, %c0_i32_0 : i32, i32, i32
  }
  func.func @transform_1(%arg0: i32) -> (i32, i32) {
    %c0_i32 = arith.constant 0 : i32
    %c0_i32_0 = arith.constant 0 : i32
    %c0_i32_1 = arith.constant 0 : i32
    return %c0_i32, %c0_i32_0 : i32, i32
  }
  func.func @transform_2(%arg0: i32) -> (i32, i32) {
    %c0_i32 = arith.constant 0 : i32
    %c0_i32_0 = arith.constant 0 : i32
    %c0_i32_1 = arith.constant 0 : i32
    return %c0_i32, %c0_i32_0 : i32, i32
  }
  func.func @transform_3(%arg0: i32) -> (i32, i32) {
    %c0_i32 = arith.constant 0 : i32
    %c0_i32_0 = arith.constant 0 : i32
    %c0_i32_1 = arith.constant 0 : i32
    return %c0_i32, %c0_i32_0 : i32, i32
  }
  func.func @transform_4(%arg0: i32) -> (i32, i32) {
    %c0_i32 = arith.constant 0 : i32
    %c0_i32_0 = arith.constant 0 : i32
    %c0_i32_1 = arith.constant 0 : i32
    return %c0_i32, %c0_i32_0 : i32, i32
  }
  func.func @transform_5(%arg0: i32) -> (i32, i32) {
    %c0_i32 = arith.constant 0 : i32
    %c0_i32_0 = arith.constant 0 : i32
    %c0_i32_1 = arith.constant 0 : i32
    return %c0_i32, %c0_i32_0 : i32, i32
  }
  func.func @transform_6(%arg0: i32) -> (i32, i32) {
    %c0_i32 = arith.constant 0 : i32
    %c0_i32_0 = arith.constant 0 : i32
    %c0_i32_1 = arith.constant 0 : i32
    return %c0_i32, %c0_i32_0 : i32, i32
  }
  func.func @transform_7(%arg0: i32) -> (i32, i32) {
    %c0_i32 = arith.constant 0 : i32
    %c0_i32_0 = arith.constant 0 : i32
    %c0_i32_1 = arith.constant 0 : i32
    return %c0_i32, %c0_i32_0 : i32, i32
  }
  func.func @transform_8(%arg0: i32) -> (i32, i32) {
    %c0_i32 = arith.constant 0 : i32
    %c0_i32_0 = arith.constant 0 : i32
    %c0_i32_1 = arith.constant 0 : i32
    return %c0_i32, %c0_i32_0 : i32, i32
  }
  func.func @transform_9(%arg0: i32) -> (i32, i32, i32) {
    %c0_i32 = arith.constant 0 : i32
    %c0_i32_0 = arith.constant 0 : i32
    %c0_i32_1 = arith.constant 0 : i32
    return %arg0, %c0_i32, %c0_i32_0 : i32, i32, i32
  }
}

</mosaic_0001>

<llo_original>
// kernel: tile.45
$region0: #{tile.45}
  %s0 = inlined_call_operand.vmem [shape: f32[25,16,16], index: 0, kind: input, shape index: {}]
  %s1 = inlined_call_operand.vmem [shape: f32[25,256], index: 1, kind: output, shape index: {}]
  %v2 = vld [vmem:[%s0] ss:$8 sm:$0xf]
  %v3 = vld [vmem:[%s0] ss:$8 sm:$0xf0]
  %vm4 = vcmask 1047556
  %v5 = vsel %vm4, %v3, %v2
  %vm6 = vcmask 130048
  %7 = vst.msk [vmem:[%s1] ss:$8 sm:$0x3] %vm6, %v5
  %s8 = scalar_lea.vmem %s1, 4294967281
  %9 = vst.msk [vmem:[%s8] ss:$8 sm:$0xc] %vm6, %v5
  %s10 = scalar_lea.vmem %s1, 4294967266
  %11 = vst.msk [vmem:[%s10] ss:$8 sm:$0x30] %vm6, %v5
  %s12 = scalar_lea.vmem %s1, 4294967251
  %13 = vst.msk [vmem:[%s12] ss:$8 sm:$0xc0] %vm6, %v5
  %s14 = scalar_lea.vmem %s0, 64
  %v15 = vld [vmem:[%s14] ss:$8 sm:$0xf]
  %s16 = scalar_lea.vmem %s0, 64
  %v17 = vld [vmem:[%s16] ss:$8 sm:$0xf0]
  %vm18 = vcmask 1047556
  %v19 = vsel %vm18, %v17, %v15
  %vm20 = vcmask 130048
  %s21 = scalar_lea.vmem %s1, 4
  %22 = vst.msk [vmem:[%s21] ss:$8 sm:$0x3] %vm20, %v19
  %s23 = scalar_lea.vmem %s1, 4294967285
  %24 = vst.msk [vmem:[%s23] ss:$8 sm:$0xc] %vm20, %v19
  %s25 = scalar_lea.vmem %s1, 4294967270
  %26 = vst.msk [vmem:[%s25] ss:$8 sm:$0x30] %vm20, %v19
  %s27 = scalar_lea.vmem %s1, 4294967255
  %28 = vst.msk [vmem:[%s27] ss:$8 sm:$0xc0] %vm20, %v19
  %s29 = scalar_lea.vmem %s0, 128
  %v30 = vld [vmem:[%s29] ss:$8 sm:$0xf]
  %s31 = scalar_lea.vmem %s0, 128
  %v32 = vld [vmem:[%s31] ss:$8 sm:$0xf0]
  %vm33 = vcmask 1047556
  %v34 = vsel %vm33, %v32, %v30
  %vm35 = vcmask 130048
  %s36 = scalar_lea.vmem %s1, 16
  %37 = vst.msk [vmem:[%s36] ss:$8 sm:$0x3] %vm35, %v34
  %s38 = scalar_lea.vmem %s1, 1
  %39 = vst.msk [vmem:[%s38] ss:$8 sm:$0xc] %vm35, %v34
  %s40 = scalar_lea.vmem %s1, 4294967282
  %41 = vst.msk [vmem:[%s40] ss:$8 sm:$0x30] %vm35, %v34
  %s42 = scalar_lea.vmem %s1, 4294967267
  %43 = vst.msk [vmem:[%s42] ss:$8 sm:$0xc0] %vm35, %v34
  %s44 = scalar_lea.vmem %s0, 192
  %v45 = vld [vmem:[%s44] ss:$8 sm:$0xf]
  %s46 = scalar_lea.vmem %s0, 192
  %v47 = vld [vmem:[%s46] ss:$8 sm:$0xf0]
  %vm48 = vcmask 1047556
  %v49 = vsel %vm48, %v47, %v45
  %vm50 = vcmask 130048
  %s51 = scalar_lea.vmem %s1, 20
  %52 = vst.msk [vmem:[%s51] ss:$8 sm:$0x3] %vm50, %v49
  %s53 = scalar_lea.vmem %s1, 5
  %54 = vst.msk [vmem:[%s53] ss:$8 sm:$0xc] %vm50, %v49
  %s55 = scalar_lea.vmem %s1, 4294967286
  %56 = vst.msk [vmem:[%s55] ss:$8 sm:$0x30] %vm50, %v49
  %s57 = scalar_lea.vmem %s1, 4294967271
  %58 = vst.msk [vmem:[%s57] ss:$8 sm:$0xc0] %vm50, %v49
  %s59 = scalar_lea.vmem %s0, 256
  %v60 = vld [vmem:[%s59] ss:$8 sm:$0xf]
  %s61 = scalar_lea.vmem %s0, 256
  %v62 = vld [vmem:[%s61] ss:$8 sm:$0xf0]
  %vm63 = vcmask 1047556
  %v64 = vsel %vm63, %v62, %v60
  %vm65 = vcmask 130048
  %s66 = scalar_lea.vmem %s1, 32
  %67 = vst.msk [vmem:[%s66] ss:$8 sm:$0x3] %vm65, %v64
  %s68 = scalar_lea.vmem %s1, 17
  %69 = vst.msk [vmem:[%s68] ss:$8 sm:$0xc] %vm65, %v64
  %s70 = scalar_lea.vmem %s1, 2
  %71 = vst.msk [vmem:[%s70] ss:$8 sm:$0x30] %vm65, %v64
  %s72 = scalar_lea.vmem %s1, 4294967283
  %73 = vst.msk [vmem:[%s72] ss:$8 sm:$0xc0] %vm65, %v64
  %s74 = scalar_lea.vmem %s0, 320
  %v75 = vld [vmem:[%s74] ss:$8 sm:$0xf]
  %s76 = scalar_lea.vmem %s0, 320
  %v77 = vld [vmem:[%s76] ss:$8 sm:$0xf0]
  %vm78 = vcmask 1047556
  %v79 = vsel %vm78, %v77, %v75
  %vm80 = vcmask 130048
  %s81 = scalar_lea.vmem %s1, 36
  %82 = vst.msk [vmem:[%s81] ss:$8 sm:$0x3] %vm80, %v79
  %s83 = scalar_lea.vmem %s1, 21
  %84 = vst.msk [vmem:[%s83] ss:$8 sm:$0xc] %vm80, %v79
  %s85 = scalar_lea.vmem %s1, 6
  %86 = vst.msk [vmem:[%s85] ss:$8 sm:$0x30] %vm80, %v79
  %s87 = scalar_lea.vmem %s1, 4294967287
  %88 = vst.msk [vmem:[%s87] ss:$8 sm:$0xc0] %vm80, %v79
  %s89 = scalar_lea.vmem %s0, 384
  %s90 = smov 3
  %v91 = vld [vmem:[%s89] ss:$8 sm:%s90]
  %vm92 = vcmask 130048
  %s93 = scalar_lea.vmem %s1, 48
  %94 = vst.msk [vmem:[%s93] ss:$8 sm:$0x3] %vm92, %v91
  %s95 = scalar_lea.vmem %s0, 7
  %s96 = smov 3
  %v97 = vld [vmem:[%s95] ss:$16 sm:%s96]
  %s98 = scalar_lea.vmem %s0, 7
  %s99 = smov 12
  %v100 = vld [vmem:[%s98] ss:$16 sm:%s99]
  %vm101 = vcmask 1043458
  %v102 = vsel %vm101, %v100, %v97
  %s103 = scalar_lea.vmem %s0, 7
  %s104 = smov 48
  %v105 = vld [vmem:[%s103] ss:$16 sm:%s104]
  %vm106 = vcmask 1045508
  %v107 = vsel %vm106, %v105, %v102
  %s108 = scalar_lea.vmem %s0, 7
  %s109 = smov 192
  %v110 = vld [vmem:[%s108] ss:$16 sm:%s109]
  %vm111 = vcmask 1047558
  %v112 = vsel %vm111, %v110, %v107
  %113 = vrot.lane.b32.xlu0 %v112, 112
  %v114 = vpop.permute.xlu0 %113
  %vm115 = vcmask 1048448
  %116 = vst.msk [vmem:[%s1] sm:$0xff] %vm115, %v114
  %s117 = scalar_lea.vmem %s0, 263
  %s118 = smov 3
  %v119 = vld [vmem:[%s117] ss:$16 sm:%s118]
  %s120 = scalar_lea.vmem %s0, 263
  %s121 = smov 12
  %v122 = vld [vmem:[%s120] ss:$16 sm:%s121]
  %vm123 = vcmask 1043458
  %v124 = vsel %vm123, %v122, %v119
  %s125 = scalar_lea.vmem %s0, 263
  %s126 = smov 48
  %v127 = vld [vmem:[%s125] ss:$16 sm:%s126]
  %vm128 = vcmask 1045508
  %v129 = vsel %vm128, %v127, %v124
  %s130 = scalar_lea.vmem %s0, 263
  %s131 = smov 192
  %v132 = vld [vmem:[%s130] ss:$16 sm:%s131]
  %vm133 = vcmask 1047558
  %v134 = vsel %vm133, %v132, %v129
  %135 = vrot.lane.b32.xlu0 %v134, 112
  %v136 = vpop.permute.xlu0 %135
  %vm137 = vcmask 1048448
  %s138 = scalar_lea.vmem %s1, 32
  %139 = vst.msk [vmem:[%s138] sm:$0xff] %vm137, %v136
  %s140 = scalar_lea.vmem %s0, 15
  %s141 = smov 3
  %v142 = vld [vmem:[%s140] ss:$16 sm:%s141]
  %s143 = scalar_lea.vmem %s0, 15
  %s144 = smov 12
  %v145 = vld [vmem:[%s143] ss:$16 sm:%s144]
  %vm146 = vcmask 1043458
  %v147 = vsel %vm146, %v145, %v142
  %s148 = scalar_lea.vmem %s0, 15
  %s149 = smov 48
  %v150 = vld [vmem:[%s148] ss:$16 sm:%s149]
  %vm151 = vcmask 1045508
  %v152 = vsel %vm151, %v150, %v147
  %s153 = scalar_lea.vmem %s0, 15
  %s154 = smov 192
  %v155 = vld [vmem:[%s153] ss:$16 sm:%s154]
  %vm156 = vcmask 1047558
  %v157 = vsel %vm156, %v155, %v152
  %158 = vrot.lane.b32.xlu0 %v157, 112
  %v159 = vpop.permute.xlu0 %158
  %vm160 = vcmask 1048448
  %s161 = scalar_lea.vmem %s1, 8
  %162 = vst.msk [vmem:[%s161] sm:$0xff] %vm160, %v159
  %s163 = scalar_lea.vmem %s0, 271
  %s164 = smov 3
  %v165 = vld [vmem:[%s163] ss:$16 sm:%s164]
  %s166 = scalar_lea.vmem %s0, 271
  %s167 = smov 12
  %v168 = vld [vmem:[%s166] ss:$16 sm:%s167]
  %vm169 = vcmask 1043458
  %v170 = vsel %vm169, %v168, %v165
  %s171 = scalar_lea.vmem %s0, 271
  %s172 = smov 48
  %v173 = vld [vmem:[%s171] ss:$16 sm:%s172]
  %vm174 = vcmask 1045508
  %v175 = vsel %vm174, %v173, %v170
  %s176 = scalar_lea.vmem %s0, 271
  %s177 = smov 192
  %v178 = vld [vmem:[%s176] ss:$16 sm:%s177]
  %vm179 = vcmask 1047558
  %v180 = vsel %vm179, %v178, %v175
  %181 = vrot.lane.b32.xlu0 %v180, 112
  %v182 = vpop.permute.xlu0 %181
  %vm183 = vcmask 1048448
  %s184 = scalar_lea.vmem %s1, 40
  %185 = vst.msk [vmem:[%s184] sm:$0xff] %vm183, %v182
  %s186 = scalar_lea.vmem %s0, 135
  %s187 = smov 3
  %v188 = vld [vmem:[%s186] ss:$16 sm:%s187]
  %s189 = scalar_lea.vmem %s0, 135
  %s190 = smov 12
  %v191 = vld [vmem:[%s189] ss:$16 sm:%s190]
  %vm192 = vcmask 1043458
  %v193 = vsel %vm192, %v191, %v188
  %s194 = scalar_lea.vmem %s0, 135
  %s195 = smov 48
  %v196 = vld [vmem:[%s194] ss:$16 sm:%s195]
  %vm197 = vcmask 1045508
  %v198 = vsel %vm197, %v196, %v193
  %s199 = scalar_lea.vmem %s0, 135
  %s200 = smov 192
  %v201 = vld [vmem:[%s199] ss:$16 sm:%s200]
  %vm202 = vcmask 1047558
  %v203 = vsel %vm202, %v201, %v198
  %204 = vrot.lane.b32.xlu0 %v203, 112
  %v205 = vpop.permute.xlu0 %204
  %vm206 = vcmask 1048448
  %s207 = scalar_lea.vmem %s1, 16
  %208 = vst.msk [vmem:[%s207] sm:$0xff] %vm206, %v205
  %s209 = scalar_lea.vmem %s0, 391
  %s210 = smov 3
  %v211 = vld [vmem:[%s209] ss:$-248 sm:%s210]
  %s212 = scalar_lea.vmem %s0, 127
  %s213 = smov 12
  %v214 = vld [vmem:[%s212] ss:$16 sm:%s213]
  %vm215 = vcmask 1043458
  %v216 = vsel %vm215, %v214, %v211
  %s217 = scalar_lea.vmem %s0, 127
  %s218 = smov 48
  %v219 = vld [vmem:[%s217] ss:$16 sm:%s218]
  %vm220 = vcmask 1045508
  %v221 = vsel %vm220, %v219, %v216
  %s222 = scalar_lea.vmem %s0, 127
  %s223 = smov 192
  %v224 = vld [vmem:[%s222] ss:$16 sm:%s223]
  %vm225 = vcmask 1047558
  %v226 = vsel %vm225, %v224, %v221
  %227 = vrot.lane.b32.xlu0 %v226, 112
  %v228 = vpop.permute.xlu0 %227
  %vm229 = vcmask 1048448
  %s230 = scalar_lea.vmem %s1, 48
  %231 = vst.msk [vmem:[%s230] ss:$-24 sm:$0x3] %vm229, %v228
  %s232 = scalar_lea.vmem %s1, 23
  %233 = vst.msk [vmem:[%s232] sm:$0xfc] %vm229, %v228
  %s234 = scalar_lea.vmem %s0, 399
  %s235 = smov 3
  %v236 = vld [vmem:[%s234] ss:$-144 sm:%s235]
  %237 = vrot.lane.b32.xlu0 %v236, 112
  %v238 = vpop.permute.xlu0 %237
  %vm239 = vcmask 1048448
  %s240 = scalar_lea.vmem %s1, 56
  %241 = vst.msk [vmem:[%s240] ss:$-25 sm:$0x3] %vm239, %v238
  %s242 = scalar_lea.vmem %s0, 6
  %s243 = smov 3
  %v244 = vld [vmem:[%s242] ss:$16 sm:%s243]
  %s245 = scalar_lea.vmem %s0, 6
  %s246 = smov 12
  %v247 = vld [vmem:[%s245] ss:$16 sm:%s246]
  %vm248 = vcmask 1043458
  %v249 = vsel %vm248, %v247, %v244
  %s250 = scalar_lea.vmem %s0, 6
  %s251 = smov 48
  %v252 = vld [vmem:[%s250] ss:$16 sm:%s251]
  %vm253 = vcmask 1045508
  %v254 = vsel %vm253, %v252, %v249
  %s255 = scalar_lea.vmem %s0, 6
  %s256 = smov 192
  %v257 = vld [vmem:[%s255] ss:$16 sm:%s256]
  %vm258 = vcmask 1047558
  %v259 = vsel %vm258, %v257, %v254
  %260 = vrot.lane.b32.xlu0 %v259, 96
  %v261 = vpop.permute.xlu0 %260
  %vm262 = vcmask 917248
  %263 = vst.msk [vmem:[%s1] sm:$0xff] %vm262, %v261
  %s264 = scalar_lea.vmem %s0, 262
  %s265 = smov 3
  %v266 = vld [vmem:[%s264] ss:$16 sm:%s265]
  %s267 = scalar_lea.vmem %s0, 262
  %s268 = smov 12
  %v269 = vld [vmem:[%s267] ss:$16 sm:%s268]
  %vm270 = vcmask 1043458
  %v271 = vsel %vm270, %v269, %v266
  %s272 = scalar_lea.vmem %s0, 262
  %s273 = smov 48
  %v274 = vld [vmem:[%s272] ss:$16 sm:%s273]
  %vm275 = vcmask 1045508
  %v276 = vsel %vm275, %v274, %v271
  %s277 = scalar_lea.vmem %s0, 262
  %s278 = smov 192
  %v279 = vld [vmem:[%s277] ss:$16 sm:%s278]
  %vm280 = vcmask 1047558
  %v281 = vsel %vm280, %v279, %v276
  %282 = vrot.lane.b32.xlu0 %v281, 96
  %v283 = vpop.permute.xlu0 %282
  %vm284 = vcmask 917248
  %s285 = scalar_lea.vmem %s1, 32
  %286 = vst.msk [vmem:[%s285] sm:$0xff] %vm284, %v283
  %s287 = scalar_lea.vmem %s0, 14
  %s288 = smov 3
  %v289 = vld [vmem:[%s287] ss:$16 sm:%s288]
  %s290 = scalar_lea.vmem %s0, 14
  %s291 = smov 12
  %v292 = vld [vmem:[%s290] ss:$16 sm:%s291]
  %vm293 = vcmask 1043458
  %v294 = vsel %vm293, %v292, %v289
  %s295 = scalar_lea.vmem %s0, 14
  %s296 = smov 48
  %v297 = vld [vmem:[%s295] ss:$16 sm:%s296]
  %vm298 = vcmask 1045508
  %v299 = vsel %vm298, %v297, %v294
  %s300 = scalar_lea.vmem %s0, 14
  %s301 = smov 192
  %v302 = vld [vmem:[%s300] ss:$16 sm:%s301]
  %vm303 = vcmask 1047558
  %v304 = vsel %vm303, %v302, %v299
  %305 = vrot.lane.b32.xlu0 %v304, 96
  %v306 = vpop.permute.xlu0 %305
  %vm307 = vcmask 917248
  %s308 = scalar_lea.vmem %s1, 8
  %309 = vst.msk [vmem:[%s308] sm:$0xff] %vm307, %v306
  %s310 = scalar_lea.vmem %s0, 270
  %s311 = smov 3
  %v312 = vld [vmem:[%s310] ss:$16 sm:%s311]
  %s313 = scalar_lea.vmem %s0, 270
  %s314 = smov 12
  %v315 = vld [vmem:[%s313] ss:$16 sm:%s314]
  %vm316 = vcmask 1043458
  %v317 = vsel %vm316, %v315, %v312
  %s318 = scalar_lea.vmem %s0, 270
  %s319 = smov 48
  %v320 = vld [vmem:[%s318] ss:$16 sm:%s319]
  %vm321 = vcmask 1045508
  %v322 = vsel %vm321, %v320, %v317
  %s323 = scalar_lea.vmem %s0, 270
  %s324 = smov 192
  %v325 = vld [vmem:[%s323] ss:$16 sm:%s324]
  %vm326 = vcmask 1047558
  %v327 = vsel %vm326, %v325, %v322
  %328 = vrot.lane.b32.xlu0 %v327, 96
  %v329 = vpop.permute.xlu0 %328
  %vm330 = vcmask 917248
  %s331 = scalar_lea.vmem %s1, 40
  %332 = vst.msk [vmem:[%s331] sm:$0xff] %vm330, %v329
  %s333 = scalar_lea.vmem %s0, 134
  %s334 = smov 3
  %v335 = vld [vmem:[%s333] ss:$16 sm:%s334]
  %s336 = scalar_lea.vmem %s0, 134
  %s337 = smov 12
  %v338 = vld [vmem:[%s336] ss:$16 sm:%s337]
  %vm339 = vcmask 1043458
  %v340 = vsel %vm339, %v338, %v335
  %s341 = scalar_lea.vmem %s0, 134
  %s342 = smov 48
  %v343 = vld [vmem:[%s341] ss:$16 sm:%s342]
  %vm344 = vcmask 1045508
  %v345 = vsel %vm344, %v343, %v340
  %s346 = scalar_lea.vmem %s0, 134
  %s347 = smov 192
  %v348 = vld [vmem:[%s346] ss:$16 sm:%s347]
  %vm349 = vcmask 1047558
  %v350 = vsel %vm349, %v348, %v345
  %351 = vrot.lane.b32.xlu0 %v350, 96
  %v352 = vpop.permute.xlu0 %351
  %vm353 = vcmask 917248
  %s354 = scalar_lea.vmem %s1, 16
  %355 = vst.msk [vmem:[%s354] sm:$0xff] %vm353, %v352
  %s356 = scalar_lea.vmem %s0, 390
  %s357 = smov 3
  %v358 = vld [vmem:[%s356] ss:$-248 sm:%s357]
  %s359 = scalar_lea.vmem %s0, 126
  %s360 = smov 12
  %v361 = vld [vmem:[%s359] ss:$16 sm:%s360]
  %vm362 = vcmask 1043458
  %v363 = vsel %vm362, %v361, %v358
  %s364 = scalar_lea.vmem %s0, 126
  %s365 = smov 48
  %v366 = vld [vmem:[%s364] ss:$16 sm:%s365]
  %vm367 = vcmask 1045508
  %v368 = vsel %vm367, %v366, %v363
  %s369 = scalar_lea.vmem %s0, 126
  %s370 = smov 192
  %v371 = vld [vmem:[%s369] ss:$16 sm:%s370]
  %vm372 = vcmask 1047558
  %v373 = vsel %vm372, %v371, %v368
  %374 = vrot.lane.b32.xlu0 %v373, 96
  %v375 = vpop.permute.xlu0 %374
  %vm376 = vcmask 917248
  %s377 = scalar_lea.vmem %s1, 48
  %378 = vst.msk [vmem:[%s377] ss:$-24 sm:$0x3] %vm376, %v375
  %s379 = scalar_lea.vmem %s1, 23
  %380 = vst.msk [vmem:[%s379] sm:$0xfc] %vm376, %v375
  %s381 = scalar_lea.vmem %s0, 398
  %s382 = smov 3
  %v383 = vld [vmem:[%s381] ss:$-144 sm:%s382]
  %384 = vrot.lane.b32.xlu0 %v383, 96
  %v385 = vpop.permute.xlu0 %384
  %vm386 = vcmask 917248
  %s387 = scalar_lea.vmem %s1, 56
  %388 = vst.msk [vmem:[%s387] ss:$-25 sm:$0x3] %vm386, %v385
  %s389 = scalar_lea.vmem %s0, 5
  %s390 = smov 3
  %v391 = vld [vmem:[%s389] ss:$16 sm:%s390]
  %s392 = scalar_lea.vmem %s0, 5
  %s393 = smov 12
  %v394 = vld [vmem:[%s392] ss:$16 sm:%s393]
  %vm395 = vcmask 1043458
  %v396 = vsel %vm395, %v394, %v391
  %s397 = scalar_lea.vmem %s0, 5
  %s398 = smov 48
  %v399 = vld [vmem:[%s397] ss:$16 sm:%s398]
  %vm400 = vcmask 1045508
  %v401 = vsel %vm400, %v399, %v396
  %s402 = scalar_lea.vmem %s0, 5
  %s403 = smov 192
  %v404 = vld [vmem:[%s402] ss:$16 sm:%s403]
  %vm405 = vcmask 1047558
  %v406 = vsel %vm405, %v404, %v401
  %407 = vrot.lane.b32.xlu0 %v406, 80
  %v408 = vpop.permute.xlu0 %407
  %vm409 = vcmask 786048
  %410 = vst.msk [vmem:[%s1] sm:$0xff] %vm409, %v408
  %s411 = scalar_lea.vmem %s0, 261
  %s412 = smov 3
  %v413 = vld [vmem:[%s411] ss:$16 sm:%s412]
  %s414 = scalar_lea.vmem %s0, 261
  %s415 = smov 12
  %v416 = vld [vmem:[%s414] ss:$16 sm:%s415]
  %vm417 = vcmask 1043458
  %v418 = vsel %vm417, %v416, %v413
  %s419 = scalar_lea.vmem %s0, 261
  %s420 = smov 48
  %v421 = vld [vmem:[%s419] ss:$16 sm:%s420]
  %vm422 = vcmask 1045508
  %v423 = vsel %vm422, %v421, %v418
  %s424 = scalar_lea.vmem %s0, 261
  %s425 = smov 192
  %v426 = vld [vmem:[%s424] ss:$16 sm:%s425]
  %vm427 = vcmask 1047558
  %v428 = vsel %vm427, %v426, %v423
  %429 = vrot.lane.b32.xlu0 %v428, 80
  %v430 = vpop.permute.xlu0 %429
  %vm431 = vcmask 786048
  %s432 = scalar_lea.vmem %s1, 32
  %433 = vst.msk [vmem:[%s432] sm:$0xff] %vm431, %v430
  %s434 = scalar_lea.vmem %s0, 13
  %s435 = smov 3
  %v436 = vld [vmem:[%s434] ss:$16 sm:%s435]
  %s437 = scalar_lea.vmem %s0, 13
  %s438 = smov 12
  %v439 = vld [vmem:[%s437] ss:$16 sm:%s438]
  %vm440 = vcmask 1043458
  %v441 = vsel %vm440, %v439, %v436
  %s442 = scalar_lea.vmem %s0, 13
  %s443 = smov 48
  %v444 = vld [vmem:[%s442] ss:$16 sm:%s443]
  %vm445 = vcmask 1045508
  %v446 = vsel %vm445, %v444, %v441
  %s447 = scalar_lea.vmem %s0, 13
  %s448 = smov 192
  %v449 = vld [vmem:[%s447] ss:$16 sm:%s448]
  %vm450 = vcmask 1047558
  %v451 = vsel %vm450, %v449, %v446
  %452 = vrot.lane.b32.xlu0 %v451, 80
  %v453 = vpop.permute.xlu0 %452
  %vm454 = vcmask 786048
  %s455 = scalar_lea.vmem %s1, 8
  %456 = vst.msk [vmem:[%s455] sm:$0xff] %vm454, %v453
  %s457 = scalar_lea.vmem %s0, 269
  %s458 = smov 3
  %v459 = vld [vmem:[%s457] ss:$16 sm:%s458]
  %s460 = scalar_lea.vmem %s0, 269
  %s461 = smov 12
  %v462 = vld [vmem:[%s460] ss:$16 sm:%s461]
  %vm463 = vcmask 1043458
  %v464 = vsel %vm463, %v462, %v459
  %s465 = scalar_lea.vmem %s0, 269
  %s466 = smov 48
  %v467 = vld [vmem:[%s465] ss:$16 sm:%s466]
  %vm468 = vcmask 1045508
  %v469 = vsel %vm468, %v467, %v464
  %s470 = scalar_lea.vmem %s0, 269
  %s471 = smov 192
  %v472 = vld [vmem:[%s470] ss:$16 sm:%s471]
  %vm473 = vcmask 1047558
  %v474 = vsel %vm473, %v472, %v469
  %475 = vrot.lane.b32.xlu0 %v474, 80
  %v476 = vpop.permute.xlu0 %475
  %vm477 = vcmask 786048
  %s478 = scalar_lea.vmem %s1, 40
  %479 = vst.msk [vmem:[%s478] sm:$0xff] %vm477, %v476
  %s480 = scalar_lea.vmem %s0, 133
  %s481 = smov 3
  %v482 = vld [vmem:[%s480] ss:$16 sm:%s481]
  %s483 = scalar_lea.vmem %s0, 133
  %s484 = smov 12
  %v485 = vld [vmem:[%s483] ss:$16 sm:%s484]
  %vm486 = vcmask 1043458
  %v487 = vsel %vm486, %v485, %v482
  %s488 = scalar_lea.vmem %s0, 133
  %s489 = smov 48
  %v490 = vld [vmem:[%s488] ss:$16 sm:%s489]
  %vm491 = vcmask 1045508
  %v492 = vsel %vm491, %v490, %v487
  %s493 = scalar_lea.vmem %s0, 133
  %s494 = smov 192
  %v495 = vld [vmem:[%s493] ss:$16 sm:%s494]
  %vm496 = vcmask 1047558
  %v497 = vsel %vm496, %v495, %v492
  %498 = vrot.lane.b32.xlu0 %v497, 80
  %v499 = vpop.permute.xlu0 %498
  %vm500 = vcmask 786048
  %s501 = scalar_lea.vmem %s1, 16
  %502 = vst.msk [vmem:[%s501] sm:$0xff] %vm500, %v499
  %s503 = scalar_lea.vmem %s0, 389
  %s504 = smov 3
  %v505 = vld [vmem:[%s503] ss:$-248 sm:%s504]
  %s506 = scalar_lea.vmem %s0, 125
  %s507 = smov 12
  %v508 = vld [vmem:[%s506] ss:$16 sm:%s507]
  %vm509 = vcmask 1043458
  %v510 = vsel %vm509, %v508, %v505
  %s511 = scalar_lea.vmem %s0, 125
  %s512 = smov 48
  %v513 = vld [vmem:[%s511] ss:$16 sm:%s512]
  %vm514 = vcmask 1045508
  %v515 = vsel %vm514, %v513, %v510
  %s516 = scalar_lea.vmem %s0, 125
  %s517 = smov 192
  %v518 = vld [vmem:[%s516] ss:$16 sm:%s517]
  %vm519 = vcmask 1047558
  %v520 = vsel %vm519, %v518, %v515
  %521 = vrot.lane.b32.xlu0 %v520, 80
  %v522 = vpop.permute.xlu0 %521
  %vm523 = vcmask 786048
  %s524 = scalar_lea.vmem %s1, 48
  %525 = vst.msk [vmem:[%s524] ss:$-24 sm:$0x3] %vm523, %v522
  %s526 = scalar_lea.vmem %s1, 23
  %527 = vst.msk [vmem:[%s526] sm:$0xfc] %vm523, %v522
  %s528 = scalar_lea.vmem %s0, 397
  %s529 = smov 3
  %v530 = vld [vmem:[%s528] ss:$-144 sm:%s529]
  %531 = vrot.lane.b32.xlu0 %v530, 80
  %v532 = vpop.permute.xlu0 %531
  %vm533 = vcmask 786048
  %s534 = scalar_lea.vmem %s1, 56
  %535 = vst.msk [vmem:[%s534] ss:$-25 sm:$0x3] %vm533, %v532
  %s536 = scalar_lea.vmem %s0, 4
  %s537 = smov 3
  %v538 = vld [vmem:[%s536] ss:$16 sm:%s537]
  %s539 = scalar_lea.vmem %s0, 4
  %s540 = smov 12
  %v541 = vld [vmem:[%s539] ss:$16 sm:%s540]
  %vm542 = vcmask 1043458
  %v543 = vsel %vm542, %v541, %v538
  %s544 = scalar_lea.vmem %s0, 4
  %s545 = smov 48
  %v546 = vld [vmem:[%s544] ss:$16 sm:%s545]
  %vm547 = vcmask 1045508
  %v548 = vsel %vm547, %v546, %v543
  %s549 = scalar_lea.vmem %s0, 4
  %s550 = smov 192
  %v551 = vld [vmem:[%s549] ss:$16 sm:%s550]
  %vm552 = vcmask 1047558
  %v553 = vsel %vm552, %v551, %v548
  %554 = vrot.lane.b32.xlu0 %v553, 64
  %v555 = vpop.permute.xlu0 %554
  %vm556 = vcmask 654848
  %557 = vst.msk [vmem:[%s1] sm:$0xff] %vm556, %v555
  %s558 = scalar_lea.vmem %s0, 260
  %s559 = smov 3
  %v560 = vld [vmem:[%s558] ss:$16 sm:%s559]
  %s561 = scalar_lea.vmem %s0, 260
  %s562 = smov 12
  %v563 = vld [vmem:[%s561] ss:$16 sm:%s562]
  %vm564 = vcmask 1043458
  %v565 = vsel %vm564, %v563, %v560
  %s566 = scalar_lea.vmem %s0, 260
  %s567 = smov 48
  %v568 = vld [vmem:[%s566] ss:$16 sm:%s567]
  %vm569 = vcmask 1045508
  %v570 = vsel %vm569, %v568, %v565
  %s571 = scalar_lea.vmem %s0, 260
  %s572 = smov 192
  %v573 = vld [vmem:[%s571] ss:$16 sm:%s572]
  %vm574 = vcmask 1047558
  %v575 = vsel %vm574, %v573, %v570
  %576 = vrot.lane.b32.xlu0 %v575, 64
  %v577 = vpop.permute.xlu0 %576
  %vm578 = vcmask 654848
  %s579 = scalar_lea.vmem %s1, 32
  %580 = vst.msk [vmem:[%s579] sm:$0xff] %vm578, %v577
  %s581 = scalar_lea.vmem %s0, 12
  %s582 = smov 3
  %v583 = vld [vmem:[%s581] ss:$16 sm:%s582]
  %s584 = scalar_lea.vmem %s0, 12
  %s585 = smov 12
  %v586 = vld [vmem:[%s584] ss:$16 sm:%s585]
  %vm587 = vcmask 1043458
  %v588 = vsel %vm587, %v586, %v583
  %s589 = scalar_lea.vmem %s0, 12
  %s590 = smov 48
  %v591 = vld [vmem:[%s589] ss:$16 sm:%s590]
  %vm592 = vcmask 1045508
  %v593 = vsel %vm592, %v591, %v588
  %s594 = scalar_lea.vmem %s0, 12
  %s595 = smov 192
  %v596 = vld [vmem:[%s594] ss:$16 sm:%s595]
  %vm597 = vcmask 1047558
  %v598 = vsel %vm597, %v596, %v593
  %599 = vrot.lane.b32.xlu0 %v598, 64
  %v600 = vpop.permute.xlu0 %599
  %vm601 = vcmask 654848
  %s602 = scalar_lea.vmem %s1, 8
  %603 = vst.msk [vmem:[%s602] sm:$0xff] %vm601, %v600
  %s604 = scalar_lea.vmem %s0, 268
  %s605 = smov 3
  %v606 = vld [vmem:[%s604] ss:$16 sm:%s605]
  %s607 = scalar_lea.vmem %s0, 268
  %s608 = smov 12
  %v609 = vld [vmem:[%s607] ss:$16 sm:%s608]
  %vm610 = vcmask 1043458
  %v611 = vsel %vm610, %v609, %v606
  %s612 = scalar_lea.vmem %s0, 268
  %s613 = smov 48
  %v614 = vld [vmem:[%s612] ss:$16 sm:%s613]
  %vm615 = vcmask 1045508
  %v616 = vsel %vm615, %v614, %v611
  %s617 = scalar_lea.vmem %s0, 268
  %s618 = smov 192
  %v619 = vld [vmem:[%s617] ss:$16 sm:%s618]
  %vm620 = vcmask 1047558
  %v621 = vsel %vm620, %v619, %v616
  %622 = vrot.lane.b32.xlu0 %v621, 64
  %v623 = vpop.permute.xlu0 %622
  %vm624 = vcmask 654848
  %s625 = scalar_lea.vmem %s1, 40
  %626 = vst.msk [vmem:[%s625] sm:$0xff] %vm624, %v623
  %s627 = scalar_lea.vmem %s0, 132
  %s628 = smov 3
  %v629 = vld [vmem:[%s627] ss:$16 sm:%s628]
  %s630 = scalar_lea.vmem %s0, 132
  %s631 = smov 12
  %v632 = vld [vmem:[%s630] ss:$16 sm:%s631]
  %vm633 = vcmask 1043458
  %v634 = vsel %vm633, %v632, %v629
  %s635 = scalar_lea.vmem %s0, 132
  %s636 = smov 48
  %v637 = vld [vmem:[%s635] ss:$16 sm:%s636]
  %vm638 = vcmask 1045508
  %v639 = vsel %vm638, %v637, %v634
  %s640 = scalar_lea.vmem %s0, 132
  %s641 = smov 192
  %v642 = vld [vmem:[%s640] ss:$16 sm:%s641]
  %vm643 = vcmask 1047558
  %v644 = vsel %vm643, %v642, %v639
  %645 = vrot.lane.b32.xlu0 %v644, 64
  %v646 = vpop.permute.xlu0 %645
  %vm647 = vcmask 654848
  %s648 = scalar_lea.vmem %s1, 16
  %649 = vst.msk [vmem:[%s648] sm:$0xff] %vm647, %v646
  %s650 = scalar_lea.vmem %s0, 388
  %s651 = smov 3
  %v652 = vld [vmem:[%s650] ss:$-248 sm:%s651]
  %s653 = scalar_lea.vmem %s0, 124
  %s654 = smov 12
  %v655 = vld [vmem:[%s653] ss:$16 sm:%s654]
  %vm656 = vcmask 1043458
  %v657 = vsel %vm656, %v655, %v652
  %s658 = scalar_lea.vmem %s0, 124
  %s659 = smov 48
  %v660 = vld [vmem:[%s658] ss:$16 sm:%s659]
  %vm661 = vcmask 1045508
  %v662 = vsel %vm661, %v660, %v657
  %s663 = scalar_lea.vmem %s0, 124
  %s664 = smov 192
  %v665 = vld [vmem:[%s663] ss:$16 sm:%s664]
  %vm666 = vcmask 1047558
  %v667 = vsel %vm666, %v665, %v662
  %668 = vrot.lane.b32.xlu0 %v667, 64
  %v669 = vpop.permute.xlu0 %668
  %vm670 = vcmask 654848
  %s671 = scalar_lea.vmem %s1, 48
  %672 = vst.msk [vmem:[%s671] ss:$-24 sm:$0x3] %vm670, %v669
  %s673 = scalar_lea.vmem %s1, 23
  %674 = vst.msk [vmem:[%s673] sm:$0xfc] %vm670, %v669
  %s675 = scalar_lea.vmem %s0, 396
  %s676 = smov 3
  %v677 = vld [vmem:[%s675] ss:$-144 sm:%s676]
  %678 = vrot.lane.b32.xlu0 %v677, 64
  %v679 = vpop.permute.xlu0 %678
  %vm680 = vcmask 654848
  %s681 = scalar_lea.vmem %s1, 56
  %682 = vst.msk [vmem:[%s681] ss:$-25 sm:$0x3] %vm680, %v679
  %s683 = scalar_lea.vmem %s0, 3
  %s684 = smov 3
  %v685 = vld [vmem:[%s683] ss:$16 sm:%s684]
  %s686 = scalar_lea.vmem %s0, 3
  %s687 = smov 12
  %v688 = vld [vmem:[%s686] ss:$16 sm:%s687]
  %vm689 = vcmask 1043458
  %v690 = vsel %vm689, %v688, %v685
  %s691 = scalar_lea.vmem %s0, 3
  %s692 = smov 48
  %v693 = vld [vmem:[%s691] ss:$16 sm:%s692]
  %vm694 = vcmask 1045508
  %v695 = vsel %vm694, %v693, %v690
  %s696 = scalar_lea.vmem %s0, 3
  %s697 = smov 192
  %v698 = vld [vmem:[%s696] ss:$16 sm:%s697]
  %vm699 = vcmask 1047558
  %v700 = vsel %vm699, %v698, %v695
  %701 = vrot.lane.b32.xlu0 %v700, 48
  %v702 = vpop.permute.xlu0 %701
  %vm703 = vcmask 523648
  %704 = vst.msk [vmem:[%s1] sm:$0xff] %vm703, %v702
  %s705 = scalar_lea.vmem %s0, 259
  %s706 = smov 3
  %v707 = vld [vmem:[%s705] ss:$16 sm:%s706]
  %s708 = scalar_lea.vmem %s0, 259
  %s709 = smov 12
  %v710 = vld [vmem:[%s708] ss:$16 sm:%s709]
  %vm711 = vcmask 1043458
  %v712 = vsel %vm711, %v710, %v707
  %s713 = scalar_lea.vmem %s0, 259
  %s714 = smov 48
  %v715 = vld [vmem:[%s713] ss:$16 sm:%s714]
  %vm716 = vcmask 1045508
  %v717 = vsel %vm716, %v715, %v712
  %s718 = scalar_lea.vmem %s0, 259
  %s719 = smov 192
  %v720 = vld [vmem:[%s718] ss:$16 sm:%s719]
  %vm721 = vcmask 1047558
  %v722 = vsel %vm721, %v720, %v717
  %723 = vrot.lane.b32.xlu0 %v722, 48
  %v724 = vpop.permute.xlu0 %723
  %vm725 = vcmask 523648
  %s726 = scalar_lea.vmem %s1, 32
  %727 = vst.msk [vmem:[%s726] sm:$0xff] %vm725, %v724
  %s728 = scalar_lea.vmem %s0, 11
  %s729 = smov 3
  %v730 = vld [vmem:[%s728] ss:$16 sm:%s729]
  %s731 = scalar_lea.vmem %s0, 11
  %s732 = smov 12
  %v733 = vld [vmem:[%s731] ss:$16 sm:%s732]
  %vm734 = vcmask 1043458
  %v735 = vsel %vm734, %v733, %v730
  %s736 = scalar_lea.vmem %s0, 11
  %s737 = smov 48
  %v738 = vld [vmem:[%s736] ss:$16 sm:%s737]
  %vm739 = vcmask 1045508
  %v740 = vsel %vm739, %v738, %v735
  %s741 = scalar_lea.vmem %s0, 11
  %s742 = smov 192
  %v743 = vld [vmem:[%s741] ss:$16 sm:%s742]
  %vm744 = vcmask 1047558
  %v745 = vsel %vm744, %v743, %v740
  %746 = vrot.lane.b32.xlu0 %v745, 48
  %v747 = vpop.permute.xlu0 %746
  %vm748 = vcmask 523648
  %s749 = scalar_lea.vmem %s1, 8
  %750 = vst.msk [vmem:[%s749] sm:$0xff] %vm748, %v747
  %s751 = scalar_lea.vmem %s0, 267
  %s752 = smov 3
  %v753 = vld [vmem:[%s751] ss:$16 sm:%s752]
  %s754 = scalar_lea.vmem %s0, 267
  %s755 = smov 12
  %v756 = vld [vmem:[%s754] ss:$16 sm:%s755]
  %vm757 = vcmask 1043458
  %v758 = vsel %vm757, %v756, %v753
  %s759 = scalar_lea.vmem %s0, 267
  %s760 = smov 48
  %v761 = vld [vmem:[%s759] ss:$16 sm:%s760]
  %vm762 = vcmask 1045508
  %v763 = vsel %vm762, %v761, %v758
  %s764 = scalar_lea.vmem %s0, 267
  %s765 = smov 192
  %v766 = vld [vmem:[%s764] ss:$16 sm:%s765]
  %vm767 = vcmask 1047558
  %v768 = vsel %vm767, %v766, %v763
  %769 = vrot.lane.b32.xlu0 %v768, 48
  %v770 = vpop.permute.xlu0 %769
  %vm771 = vcmask 523648
  %s772 = scalar_lea.vmem %s1, 40
  %773 = vst.msk [vmem:[%s772] sm:$0xff] %vm771, %v770
  %s774 = scalar_lea.vmem %s0, 131
  %s775 = smov 3
  %v776 = vld [vmem:[%s774] ss:$16 sm:%s775]
  %s777 = scalar_lea.vmem %s0, 131
  %s778 = smov 12
  %v779 = vld [vmem:[%s777] ss:$16 sm:%s778]
  %vm780 = vcmask 1043458
  %v781 = vsel %vm780, %v779, %v776
  %s782 = scalar_lea.vmem %s0, 131
  %s783 = smov 48
  %v784 = vld [vmem:[%s782] ss:$16 sm:%s783]
  %vm785 = vcmask 1045508
  %v786 = vsel %vm785, %v784, %v781
  %s787 = scalar_lea.vmem %s0, 131
  %s788 = smov 192
  %v789 = vld [vmem:[%s787] ss:$16 sm:%s788]
  %vm790 = vcmask 1047558
  %v791 = vsel %vm790, %v789, %v786
  %792 = vrot.lane.b32.xlu0 %v791, 48
  %v793 = vpop.permute.xlu0 %792
  %vm794 = vcmask 523648
  %s795 = scalar_lea.vmem %s1, 16
  %796 = vst.msk [vmem:[%s795] sm:$0xff] %vm794, %v793
  %s797 = scalar_lea.vmem %s0, 387
  %s798 = smov 3
  %v799 = vld [vmem:[%s797] ss:$-248 sm:%s798]
  %s800 = scalar_lea.vmem %s0, 123
  %s801 = smov 12
  %v802 = vld [vmem:[%s800] ss:$16 sm:%s801]
  %vm803 = vcmask 1043458
  %v804 = vsel %vm803, %v802, %v799
  %s805 = scalar_lea.vmem %s0, 123
  %s806 = smov 48
  %v807 = vld [vmem:[%s805] ss:$16 sm:%s806]
  %vm808 = vcmask 1045508
  %v809 = vsel %vm808, %v807, %v804
  %s810 = scalar_lea.vmem %s0, 123
  %s811 = smov 192
  %v812 = vld [vmem:[%s810] ss:$16 sm:%s811]
  %vm813 = vcmask 1047558
  %v814 = vsel %vm813, %v812, %v809
  %815 = vrot.lane.b32.xlu0 %v814, 48
  %v816 = vpop.permute.xlu0 %815
  %vm817 = vcmask 523648
  %s818 = scalar_lea.vmem %s1, 48
  %819 = vst.msk [vmem:[%s818] ss:$-24 sm:$0x3] %vm817, %v816
  %s820 = scalar_lea.vmem %s1, 23
  %821 = vst.msk [vmem:[%s820] sm:$0xfc] %vm817, %v816
  %s822 = scalar_lea.vmem %s0, 395
  %s823 = smov 3
  %v824 = vld [vmem:[%s822] ss:$-144 sm:%s823]
  %825 = vrot.lane.b32.xlu0 %v824, 48
  %v826 = vpop.permute.xlu0 %825
  %vm827 = vcmask 523648
  %s828 = scalar_lea.vmem %s1, 56
  %829 = vst.msk [vmem:[%s828] ss:$-25 sm:$0x3] %vm827, %v826
  %s830 = scalar_lea.vmem %s0, 2
  %s831 = smov 3
  %v832 = vld [vmem:[%s830] ss:$16 sm:%s831]
  %s833 = scalar_lea.vmem %s0, 2
  %s834 = smov 12
  %v835 = vld [vmem:[%s833] ss:$16 sm:%s834]
  %vm836 = vcmask 1043458
  %v837 = vsel %vm836, %v835, %v832
  %s838 = scalar_lea.vmem %s0, 2
  %s839 = smov 48
  %v840 = vld [vmem:[%s838] ss:$16 sm:%s839]
  %vm841 = vcmask 1045508
  %v842 = vsel %vm841, %v840, %v837
  %s843 = scalar_lea.vmem %s0, 2
  %s844 = smov 192
  %v845 = vld [vmem:[%s843] ss:$16 sm:%s844]
  %vm846 = vcmask 1047558
  %v847 = vsel %vm846, %v845, %v842
  %848 = vrot.lane.b32.xlu0 %v847, 32
  %v849 = vpop.permute.xlu0 %848
  %vm850 = vcmask 392448
  %851 = vst.msk [vmem:[%s1] sm:$0xff] %vm850, %v849
  %s852 = scalar_lea.vmem %s0, 258
  %s853 = smov 3
  %v854 = vld [vmem:[%s852] ss:$16 sm:%s853]
  %s855 = scalar_lea.vmem %s0, 258
  %s856 = smov 12
  %v857 = vld [vmem:[%s855] ss:$16 sm:%s856]
  %vm858 = vcmask 1043458
  %v859 = vsel %vm858, %v857, %v854
  %s860 = scalar_lea.vmem %s0, 258
  %s861 = smov 48
  %v862 = vld [vmem:[%s860] ss:$16 sm:%s861]
  %vm863 = vcmask 1045508
  %v864 = vsel %vm863, %v862, %v859
  %s865 = scalar_lea.vmem %s0, 258
  %s866 = smov 192
  %v867 = vld [vmem:[%s865] ss:$16 sm:%s866]
  %vm868 = vcmask 1047558
  %v869 = vsel %vm868, %v867, %v864
  %870 = vrot.lane.b32.xlu0 %v869, 32
  %v871 = vpop.permute.xlu0 %870
  %vm872 = vcmask 392448
  %s873 = scalar_lea.vmem %s1, 32
  %874 = vst.msk [vmem:[%s873] sm:$0xff] %vm872, %v871
  %s875 = scalar_lea.vmem %s0, 10
  %s876 = smov 3
  %v877 = vld [vmem:[%s875] ss:$16 sm:%s876]
  %s878 = scalar_lea.vmem %s0, 10
  %s879 = smov 12
  %v880 = vld [vmem:[%s878] ss:$16 sm:%s879]
  %vm881 = vcmask 1043458
  %v882 = vsel %vm881, %v880, %v877
  %s883 = scalar_lea.vmem %s0, 10
  %s884 = smov 48
  %v885 = vld [vmem:[%s883] ss:$16 sm:%s884]
  %vm886 = vcmask 1045508
  %v887 = vsel %vm886, %v885, %v882
  %s888 = scalar_lea.vmem %s0, 10
  %s889 = smov 192
  %v890 = vld [vmem:[%s888] ss:$16 sm:%s889]
  %vm891 = vcmask 1047558
  %v892 = vsel %vm891, %v890, %v887
  %893 = vrot.lane.b32.xlu0 %v892, 32
  %v894 = vpop.permute.xlu0 %893
  %vm895 = vcmask 392448
  %s896 = scalar_lea.vmem %s1, 8
  %897 = vst.msk [vmem:[%s896] sm:$0xff] %vm895, %v894
  %s898 = scalar_lea.vmem %s0, 266
  %s899 = smov 3
  %v900 = vld [vmem:[%s898] ss:$16 sm:%s899]
  %s901 = scalar_lea.vmem %s0, 266
  %s902 = smov 12
  %v903 = vld [vmem:[%s901] ss:$16 sm:%s902]
  %vm904 = vcmask 1043458
  %v905 = vsel %vm904, %v903, %v900
  %s906 = scalar_lea.vmem %s0, 266
  %s907 = smov 48
  %v908 = vld [vmem:[%s906] ss:$16 sm:%s907]
  %vm909 = vcmask 1045508
  %v910 = vsel %vm909, %v908, %v905
  %s911 = scalar_lea.vmem %s0, 266
  %s912 = smov 192
  %v913 = vld [vmem:[%s911] ss:$16 sm:%s912]
  %vm914 = vcmask 1047558
  %v915 = vsel %vm914, %v913, %v910
  %916 = vrot.lane.b32.xlu0 %v915, 32
  %v917 = vpop.permute.xlu0 %916
  %vm918 = vcmask 392448
  %s919 = scalar_lea.vmem %s1, 40
  %920 = vst.msk [vmem:[%s919] sm:$0xff] %vm918, %v917
  %s921 = scalar_lea.vmem %s0, 130
  %s922 = smov 3
  %v923 = vld [vmem:[%s921] ss:$16 sm:%s922]
  %s924 = scalar_lea.vmem %s0, 130
  %s925 = smov 12
  %v926 = vld [vmem:[%s924] ss:$16 sm:%s925]
  %vm927 = vcmask 1043458
  %v928 = vsel %vm927, %v926, %v923
  %s929 = scalar_lea.vmem %s0, 130
  %s930 = smov 48
  %v931 = vld [vmem:[%s929] ss:$16 sm:%s930]
  %vm932 = vcmask 1045508
  %v933 = vsel %vm932, %v931, %v928
  %s934 = scalar_lea.vmem %s0, 130
  %s935 = smov 192
  %v936 = vld [vmem:[%s934] ss:$16 sm:%s935]
  %vm937 = vcmask 1047558
  %v938 = vsel %vm937, %v936, %v933
  %939 = vrot.lane.b32.xlu0 %v938, 32
  %v940 = vpop.permute.xlu0 %939
  %vm941 = vcmask 392448
  %s942 = scalar_lea.vmem %s1, 16
  %943 = vst.msk [vmem:[%s942] sm:$0xff] %vm941, %v940
  %s944 = scalar_lea.vmem %s0, 386
  %s945 = smov 3
  %v946 = vld [vmem:[%s944] ss:$-248 sm:%s945]
  %s947 = scalar_lea.vmem %s0, 122
  %s948 = smov 12
  %v949 = vld [vmem:[%s947] ss:$16 sm:%s948]
  %vm950 = vcmask 1043458
  %v951 = vsel %vm950, %v949, %v946
  %s952 = scalar_lea.vmem %s0, 122
  %s953 = smov 48
  %v954 = vld [vmem:[%s952] ss:$16 sm:%s953]
  %vm955 = vcmask 1045508
  %v956 = vsel %vm955, %v954, %v951
  %s957 = scalar_lea.vmem %s0, 122
  %s958 = smov 192
  %v959 = vld [vmem:[%s957] ss:$16 sm:%s958]
  %vm960 = vcmask 1047558
  %v961 = vsel %vm960, %v959, %v956
  %962 = vrot.lane.b32.xlu0 %v961, 32
  %v963 = vpop.permute.xlu0 %962
  %vm964 = vcmask 392448
  %s965 = scalar_lea.vmem %s1, 48
  %966 = vst.msk [vmem:[%s965] ss:$-24 sm:$0x3] %vm964, %v963
  %s967 = scalar_lea.vmem %s1, 23
  %968 = vst.msk [vmem:[%s967] sm:$0xfc] %vm964, %v963
  %s969 = scalar_lea.vmem %s0, 394
  %s970 = smov 3
  %v971 = vld [vmem:[%s969] ss:$-144 sm:%s970]
  %972 = vrot.lane.b32.xlu0 %v971, 32
  %v973 = vpop.permute.xlu0 %972
  %vm974 = vcmask 392448
  %s975 = scalar_lea.vmem %s1, 56
  %976 = vst.msk [vmem:[%s975] ss:$-25 sm:$0x3] %vm974, %v973
  %s977 = scalar_lea.vmem %s0, 1
  %s978 = smov 3
  %v979 = vld [vmem:[%s977] ss:$16 sm:%s978]
  %s980 = scalar_lea.vmem %s0, 1
  %s981 = smov 12
  %v982 = vld [vmem:[%s980] ss:$16 sm:%s981]
  %vm983 = vcmask 1043458
  %v984 = vsel %vm983, %v982, %v979
  %s985 = scalar_lea.vmem %s0, 1
  %s986 = smov 48
  %v987 = vld [vmem:[%s985] ss:$16 sm:%s986]
  %vm988 = vcmask 1045508
  %v989 = vsel %vm988, %v987, %v984
  %s990 = scalar_lea.vmem %s0, 1
  %s991 = smov 192
  %v992 = vld [vmem:[%s990] ss:$16 sm:%s991]
  %vm993 = vcmask 1047558
  %v994 = vsel %vm993, %v992, %v989
  %995 = vrot.lane.b32.xlu0 %v994, 16
  %v996 = vpop.permute.xlu0 %995
  %vm997 = vcmask 261248
  %998 = vst.msk [vmem:[%s1] sm:$0xff] %vm997, %v996
  %s999 = scalar_lea.vmem %s0, 257
  %s1000 = smov 3
  %v1001 = vld [vmem:[%s999] ss:$16 sm:%s1000]
  %s1002 = scalar_lea.vmem %s0, 257
  %s1003 = smov 12
  %v1004 = vld [vmem:[%s1002] ss:$16 sm:%s1003]
  %vm1005 = vcmask 1043458
  %v1006 = vsel %vm1005, %v1004, %v1001
  %s1007 = scalar_lea.vmem %s0, 257
  %s1008 = smov 48
  %v1009 = vld [vmem:[%s1007] ss:$16 sm:%s1008]
  %vm1010 = vcmask 1045508
  %v1011 = vsel %vm1010, %v1009, %v1006
  %s1012 = scalar_lea.vmem %s0, 257
  %s1013 = smov 192
  %v1014 = vld [vmem:[%s1012] ss:$16 sm:%s1013]
  %vm1015 = vcmask 1047558
  %v1016 = vsel %vm1015, %v1014, %v1011
  %1017 = vrot.lane.b32.xlu0 %v1016, 16
  %v1018 = vpop.permute.xlu0 %1017
  %vm1019 = vcmask 261248
  %s1020 = scalar_lea.vmem %s1, 32
  %1021 = vst.msk [vmem:[%s1020] sm:$0xff] %vm1019, %v1018
  %s1022 = scalar_lea.vmem %s0, 9
  %s1023 = smov 3
  %v1024 = vld [vmem:[%s1022] ss:$16 sm:%s1023]
  %s1025 = scalar_lea.vmem %s0, 9
  %s1026 = smov 12
  %v1027 = vld [vmem:[%s1025] ss:$16 sm:%s1026]
  %vm1028 = vcmask 1043458
  %v1029 = vsel %vm1028, %v1027, %v1024
  %s1030 = scalar_lea.vmem %s0, 9
  %s1031 = smov 48
  %v1032 = vld [vmem:[%s1030] ss:$16 sm:%s1031]
  %vm1033 = vcmask 1045508
  %v1034 = vsel %vm1033, %v1032, %v1029
  %s1035 = scalar_lea.vmem %s0, 9
  %s1036 = smov 192
  %v1037 = vld [vmem:[%s1035] ss:$16 sm:%s1036]
  %vm1038 = vcmask 1047558
  %v1039 = vsel %vm1038, %v1037, %v1034
  %1040 = vrot.lane.b32.xlu0 %v1039, 16
  %v1041 = vpop.permute.xlu0 %1040
  %vm1042 = vcmask 261248
  %s1043 = scalar_lea.vmem %s1, 8
  %1044 = vst.msk [vmem:[%s1043] sm:$0xff] %vm1042, %v1041
  %s1045 = scalar_lea.vmem %s0, 265
  %s1046 = smov 3
  %v1047 = vld [vmem:[%s1045] ss:$16 sm:%s1046]
  %s1048 = scalar_lea.vmem %s0, 265
  %s1049 = smov 12
  %v1050 = vld [vmem:[%s1048] ss:$16 sm:%s1049]
  %vm1051 = vcmask 1043458
  %v1052 = vsel %vm1051, %v1050, %v1047
  %s1053 = scalar_lea.vmem %s0, 265
  %s1054 = smov 48
  %v1055 = vld [vmem:[%s1053] ss:$16 sm:%s1054]
  %vm1056 = vcmask 1045508
  %v1057 = vsel %vm1056, %v1055, %v1052
  %s1058 = scalar_lea.vmem %s0, 265
  %s1059 = smov 192
  %v1060 = vld [vmem:[%s1058] ss:$16 sm:%s1059]
  %vm1061 = vcmask 1047558
  %v1062 = vsel %vm1061, %v1060, %v1057
  %1063 = vrot.lane.b32.xlu0 %v1062, 16
  %v1064 = vpop.permute.xlu0 %1063
  %vm1065 = vcmask 261248
  %s1066 = scalar_lea.vmem %s1, 40
  %1067 = vst.msk [vmem:[%s1066] sm:$0xff] %vm1065, %v1064
  %s1068 = scalar_lea.vmem %s0, 129
  %s1069 = smov 3
  %v1070 = vld [vmem:[%s1068] ss:$16 sm:%s1069]
  %s1071 = scalar_lea.vmem %s0, 129
  %s1072 = smov 12
  %v1073 = vld [vmem:[%s1071] ss:$16 sm:%s1072]
  %vm1074 = vcmask 1043458
  %v1075 = vsel %vm1074, %v1073, %v1070
  %s1076 = scalar_lea.vmem %s0, 129
  %s1077 = smov 48
  %v1078 = vld [vmem:[%s1076] ss:$16 sm:%s1077]
  %vm1079 = vcmask 1045508
  %v1080 = vsel %vm1079, %v1078, %v1075
  %s1081 = scalar_lea.vmem %s0, 129
  %s1082 = smov 192
  %v1083 = vld [vmem:[%s1081] ss:$16 sm:%s1082]
  %vm1084 = vcmask 1047558
  %v1085 = vsel %vm1084, %v1083, %v1080
  %1086 = vrot.lane.b32.xlu0 %v1085, 16
  %v1087 = vpop.permute.xlu0 %1086
  %vm1088 = vcmask 261248
  %s1089 = scalar_lea.vmem %s1, 16
  %1090 = vst.msk [vmem:[%s1089] sm:$0xff] %vm1088, %v1087
  %s1091 = scalar_lea.vmem %s0, 385
  %s1092 = smov 3
  %v1093 = vld [vmem:[%s1091] ss:$-248 sm:%s1092]
  %s1094 = scalar_lea.vmem %s0, 121
  %s1095 = smov 12
  %v1096 = vld [vmem:[%s1094] ss:$16 sm:%s1095]
  %vm1097 = vcmask 1043458
  %v1098 = vsel %vm1097, %v1096, %v1093
  %s1099 = scalar_lea.vmem %s0, 121
  %s1100 = smov 48
  %v1101 = vld [vmem:[%s1099] ss:$16 sm:%s1100]
  %vm1102 = vcmask 1045508
  %v1103 = vsel %vm1102, %v1101, %v1098
  %s1104 = scalar_lea.vmem %s0, 121
  %s1105 = smov 192
  %v1106 = vld [vmem:[%s1104] ss:$16 sm:%s1105]
  %vm1107 = vcmask 1047558
  %v1108 = vsel %vm1107, %v1106, %v1103
  %1109 = vrot.lane.b32.xlu0 %v1108, 16
  %v1110 = vpop.permute.xlu0 %1109
  %vm1111 = vcmask 261248
  %s1112 = scalar_lea.vmem %s1, 48
  %1113 = vst.msk [vmem:[%s1112] ss:$-24 sm:$0x3] %vm1111, %v1110
  %s1114 = scalar_lea.vmem %s1, 23
  %1115 = vst.msk [vmem:[%s1114] sm:$0xfc] %vm1111, %v1110
  %s1116 = scalar_lea.vmem %s0, 393
  %s1117 = smov 3
  %v1118 = vld [vmem:[%s1116] ss:$-144 sm:%s1117]
  %1119 = vrot.lane.b32.xlu0 %v1118, 16
  %v1120 = vpop.permute.xlu0 %1119
  %vm1121 = vcmask 261248
  %s1122 = scalar_lea.vmem %s1, 56
  %1123 = vst.msk [vmem:[%s1122] ss:$-25 sm:$0x3] %vm1121, %v1120

// kernel: tile.36
$region0: #{tile.36}
  %s0 = inlined_call_operand.vmem [shape: f32[9,16,16], index: 0, kind: input, shape index: {}]
  %s1 = inlined_call_operand.vmem [shape: f32[9,256], index: 1, kind: output, shape index: {}]
  %v2 = vld [vmem:[%s0] ss:$8 sm:$0xf]
  %v3 = vld [vmem:[%s0] ss:$8 sm:$0xf0]
  %vm4 = vcmask 1047556
  %v5 = vsel %vm4, %v3, %v2
  %vm6 = vcmask 130048
  %7 = vst.msk [vmem:[%s1] ss:$8 sm:$0x3] %vm6, %v5
  %s8 = scalar_lea.vmem %s1, 4294967281
  %9 = vst.msk [vmem:[%s8] ss:$8 sm:$0xc] %vm6, %v5
  %s10 = scalar_lea.vmem %s1, 4294967266
  %11 = vst.msk [vmem:[%s10] ss:$8 sm:$0x30] %vm6, %v5
  %s12 = scalar_lea.vmem %s1, 4294967251
  %13 = vst.msk [vmem:[%s12] ss:$8 sm:$0xc0] %vm6, %v5
  %s14 = scalar_lea.vmem %s0, 64
  %v15 = vld [vmem:[%s14] ss:$8 sm:$0xf]
  %s16 = scalar_lea.vmem %s0, 64
  %v17 = vld [vmem:[%s16] ss:$8 sm:$0xf0]
  %vm18 = vcmask 1047556
  %v19 = vsel %vm18, %v17, %v15
  %vm20 = vcmask 130048
  %s21 = scalar_lea.vmem %s1, 4
  %22 = vst.msk [vmem:[%s21] ss:$8 sm:$0x3] %vm20, %v19
  %s23 = scalar_lea.vmem %s1, 4294967285
  %24 = vst.msk [vmem:[%s23] ss:$8 sm:$0xc] %vm20, %v19
  %s25 = scalar_lea.vmem %s1, 4294967270
  %26 = vst.msk [vmem:[%s25] ss:$8 sm:$0x30] %vm20, %v19
  %s27 = scalar_lea.vmem %s1, 4294967255
  %28 = vst.msk [vmem:[%s27] ss:$8 sm:$0xc0] %vm20, %v19
  %s29 = scalar_lea.vmem %s0, 128
  %s30 = smov 3
  %v31 = vld [vmem:[%s29] ss:$8 sm:%s30]
  %vm32 = vcmask 130048
  %s33 = scalar_lea.vmem %s1, 16
  %34 = vst.msk [vmem:[%s33] ss:$8 sm:$0x3] %vm32, %v31
  %s35 = scalar_lea.vmem %s0, 7
  %s36 = smov 3
  %v37 = vld [vmem:[%s35] ss:$16 sm:%s36]
  %s38 = scalar_lea.vmem %s0, 7
  %s39 = smov 12
  %v40 = vld [vmem:[%s38] ss:$16 sm:%s39]
  %vm41 = vcmask 1043458
  %v42 = vsel %vm41, %v40, %v37
  %s43 = scalar_lea.vmem %s0, 7
  %s44 = smov 48
  %v45 = vld [vmem:[%s43] ss:$16 sm:%s44]
  %vm46 = vcmask 1045508
  %v47 = vsel %vm46, %v45, %v42
  %s48 = scalar_lea.vmem %s0, 7
  %s49 = smov 192
  %v50 = vld [vmem:[%s48] ss:$16 sm:%s49]
  %vm51 = vcmask 1047558
  %v52 = vsel %vm51, %v50, %v47
  %53 = vrot.lane.b32.xlu0 %v52, 112
  %v54 = vpop.permute.xlu0 %53
  %vm55 = vcmask 1048448
  %56 = vst.msk [vmem:[%s1] sm:$0xff] %vm55, %v54
  %s57 = scalar_lea.vmem %s0, 15
  %s58 = smov 3
  %v59 = vld [vmem:[%s57] ss:$16 sm:%s58]
  %s60 = scalar_lea.vmem %s0, 15
  %s61 = smov 12
  %v62 = vld [vmem:[%s60] ss:$16 sm:%s61]
  %vm63 = vcmask 1043458
  %v64 = vsel %vm63, %v62, %v59
  %s65 = scalar_lea.vmem %s0, 15
  %s66 = smov 48
  %v67 = vld [vmem:[%s65] ss:$16 sm:%s66]
  %vm68 = vcmask 1045508
  %v69 = vsel %vm68, %v67, %v64
  %s70 = scalar_lea.vmem %s0, 15
  %s71 = smov 192
  %v72 = vld [vmem:[%s70] ss:$16 sm:%s71]
  %vm73 = vcmask 1047558
  %v74 = vsel %vm73, %v72, %v69
  %75 = vrot.lane.b32.xlu0 %v74, 112
  %v76 = vpop.permute.xlu0 %75
  %vm77 = vcmask 1048448
  %s78 = scalar_lea.vmem %s1, 8
  %79 = vst.msk [vmem:[%s78] sm:$0xff] %vm77, %v76
  %s80 = scalar_lea.vmem %s0, 135
  %s81 = smov 3
  %v82 = vld [vmem:[%s80] ss:$8 sm:%s81]
  %83 = vrot.lane.b32.xlu0 %v82, 112
  %v84 = vpop.permute.xlu0 %83
  %vm85 = vcmask 1048448
  %s86 = scalar_lea.vmem %s1, 16
  %87 = vst.msk [vmem:[%s86] ss:$8 sm:$0x3] %vm85, %v84
  %s88 = scalar_lea.vmem %s0, 6
  %s89 = smov 3
  %v90 = vld [vmem:[%s88] ss:$16 sm:%s89]
  %s91 = scalar_lea.vmem %s0, 6
  %s92 = smov 12
  %v93 = vld [vmem:[%s91] ss:$16 sm:%s92]
  %vm94 = vcmask 1043458
  %v95 = vsel %vm94, %v93, %v90
  %s96 = scalar_lea.vmem %s0, 6
  %s97 = smov 48
  %v98 = vld [vmem:[%s96] ss:$16 sm:%s97]
  %vm99 = vcmask 1045508
  %v100 = vsel %vm99, %v98, %v95
  %s101 = scalar_lea.vmem %s0, 6
  %s102 = smov 192
  %v103 = vld [vmem:[%s101] ss:$16 sm:%s102]
  %vm104 = vcmask 1047558
  %v105 = vsel %vm104, %v103, %v100
  %106 = vrot.lane.b32.xlu0 %v105, 96
  %v107 = vpop.permute.xlu0 %106
  %vm108 = vcmask 917248
  %109 = vst.msk [vmem:[%s1] sm:$0xff] %vm108, %v107
  %s110 = scalar_lea.vmem %s0, 14
  %s111 = smov 3
  %v112 = vld [vmem:[%s110] ss:$16 sm:%s111]
  %s113 = scalar_lea.vmem %s0, 14
  %s114 = smov 12
  %v115 = vld [vmem:[%s113] ss:$16 sm:%s114]
  %vm116 = vcmask 1043458
  %v117 = vsel %vm116, %v115, %v112
  %s118 = scalar_lea.vmem %s0, 14
  %s119 = smov 48
  %v120 = vld [vmem:[%s118] ss:$16 sm:%s119]
  %vm121 = vcmask 1045508
  %v122 = vsel %vm121, %v120, %v117
  %s123 = scalar_lea.vmem %s0, 14
  %s124 = smov 192
  %v125 = vld [vmem:[%s123] ss:$16 sm:%s124]
  %vm126 = vcmask 1047558
  %v127 = vsel %vm126, %v125, %v122
  %128 = vrot.lane.b32.xlu0 %v127, 96
  %v129 = vpop.permute.xlu0 %128
  %vm130 = vcmask 917248
  %s131 = scalar_lea.vmem %s1, 8
  %132 = vst.msk [vmem:[%s131] sm:$0xff] %vm130, %v129
  %s133 = scalar_lea.vmem %s0, 134
  %s134 = smov 3
  %v135 = vld [vmem:[%s133] ss:$8 sm:%s134]
  %136 = vrot.lane.b32.xlu0 %v135, 96
  %v137 = vpop.permute.xlu0 %136
  %vm138 = vcmask 917248
  %s139 = scalar_lea.vmem %s1, 16
  %140 = vst.msk [vmem:[%s139] ss:$8 sm:$0x3] %vm138, %v137
  %s141 = scalar_lea.vmem %s0, 5
  %s142 = smov 3
  %v143 = vld [vmem:[%s141] ss:$16 sm:%s142]
  %s144 = scalar_lea.vmem %s0, 5
  %s145 = smov 12
  %v146 = vld [vmem:[%s144] ss:$16 sm:%s145]
  %vm147 = vcmask 1043458
  %v148 = vsel %vm147, %v146, %v143
  %s149 = scalar_lea.vmem %s0, 5
  %s150 = smov 48
  %v151 = vld [vmem:[%s149] ss:$16 sm:%s150]
  %vm152 = vcmask 1045508
  %v153 = vsel %vm152, %v151, %v148
  %s154 = scalar_lea.vmem %s0, 5
  %s155 = smov 192
  %v156 = vld [vmem:[%s154] ss:$16 sm:%s155]
  %vm157 = vcmask 1047558
  %v158 = vsel %vm157, %v156, %v153
  %159 = vrot.lane.b32.xlu0 %v158, 80
  %v160 = vpop.permute.xlu0 %159
  %vm161 = vcmask 786048
  %162 = vst.msk [vmem:[%s1] sm:$0xff] %vm161, %v160
  %s163 = scalar_lea.vmem %s0, 13
  %s164 = smov 3
  %v165 = vld [vmem:[%s163] ss:$16 sm:%s164]
  %s166 = scalar_lea.vmem %s0, 13
  %s167 = smov 12
  %v168 = vld [vmem:[%s166] ss:$16 sm:%s167]
  %vm169 = vcmask 1043458
  %v170 = vsel %vm169, %v168, %v165
  %s171 = scalar_lea.vmem %s0, 13
  %s172 = smov 48
  %v173 = vld [vmem:[%s171] ss:$16 sm:%s172]
  %vm174 = vcmask 1045508
  %v175 = vsel %vm174, %v173, %v170
  %s176 = scalar_lea.vmem %s0, 13
  %s177 = smov 192
  %v178 = vld [vmem:[%s176] ss:$16 sm:%s177]
  %vm179 = vcmask 1047558
  %v180 = vsel %vm179, %v178, %v175
  %181 = vrot.lane.b32.xlu0 %v180, 80
  %v182 = vpop.permute.xlu0 %181
  %vm183 = vcmask 786048
  %s184 = scalar_lea.vmem %s1, 8
  %185 = vst.msk [vmem:[%s184] sm:$0xff] %vm183, %v182
  %s186 = scalar_lea.vmem %s0, 133
  %s187 = smov 3
  %v188 = vld [vmem:[%s186] ss:$8 sm:%s187]
  %189 = vrot.lane.b32.xlu0 %v188, 80
  %v190 = vpop.permute.xlu0 %189
  %vm191 = vcmask 786048
  %s192 = scalar_lea.vmem %s1, 16
  %193 = vst.msk [vmem:[%s192] ss:$8 sm:$0x3] %vm191, %v190
  %s194 = scalar_lea.vmem %s0, 4
  %s195 = smov 3
  %v196 = vld [vmem:[%s194] ss:$16 sm:%s195]
  %s197 = scalar_lea.vmem %s0, 4
  %s198 = smov 12
  %v199 = vld [vmem:[%s197] ss:$16 sm:%s198]
  %vm200 = vcmask 1043458
  %v201 = vsel %vm200, %v199, %v196
  %s202 = scalar_lea.vmem %s0, 4
  %s203 = smov 48
  %v204 = vld [vmem:[%s202] ss:$16 sm:%s203]
  %vm205 = vcmask 1045508
  %v206 = vsel %vm205, %v204, %v201
  %s207 = scalar_lea.vmem %s0, 4
  %s208 = smov 192
  %v209 = vld [vmem:[%s207] ss:$16 sm:%s208]
  %vm210 = vcmask 1047558
  %v211 = vsel %vm210, %v209, %v206
  %212 = vrot.lane.b32.xlu0 %v211, 64
  %v213 = vpop.permute.xlu0 %212
  %vm214 = vcmask 654848
  %215 = vst.msk [vmem:[%s1] sm:$0xff] %vm214, %v213
  %s216 = scalar_lea.vmem %s0, 12
  %s217 = smov 3
  %v218 = vld [vmem:[%s216] ss:$16 sm:%s217]
  %s219 = scalar_lea.vmem %s0, 12
  %s220 = smov 12
  %v221 = vld [vmem:[%s219] ss:$16 sm:%s220]
  %vm222 = vcmask 1043458
  %v223 = vsel %vm222, %v221, %v218
  %s224 = scalar_lea.vmem %s0, 12
  %s225 = smov 48
  %v226 = vld [vmem:[%s224] ss:$16 sm:%s225]
  %vm227 = vcmask 1045508
  %v228 = vsel %vm227, %v226, %v223
  %s229 = scalar_lea.vmem %s0, 12
  %s230 = smov 192
  %v231 = vld [vmem:[%s229] ss:$16 sm:%s230]
  %vm232 = vcmask 1047558
  %v233 = vsel %vm232, %v231, %v228
  %234 = vrot.lane.b32.xlu0 %v233, 64
  %v235 = vpop.permute.xlu0 %234
  %vm236 = vcmask 654848
  %s237 = scalar_lea.vmem %s1, 8
  %238 = vst.msk [vmem:[%s237] sm:$0xff] %vm236, %v235
  %s239 = scalar_lea.vmem %s0, 132
  %s240 = smov 3
  %v241 = vld [vmem:[%s239] ss:$8 sm:%s240]
  %242 = vrot.lane.b32.xlu0 %v241, 64
  %v243 = vpop.permute.xlu0 %242
  %vm244 = vcmask 654848
  %s245 = scalar_lea.vmem %s1, 16
  %246 = vst.msk [vmem:[%s245] ss:$8 sm:$0x3] %vm244, %v243
  %s247 = scalar_lea.vmem %s0, 3
  %s248 = smov 3
  %v249 = vld [vmem:[%s247] ss:$16 sm:%s248]
  %s250 = scalar_lea.vmem %s0, 3
  %s251 = smov 12
  %v252 = vld [vmem:[%s250] ss:$16 sm:%s251]
  %vm253 = vcmask 1043458
  %v254 = vsel %vm253, %v252, %v249
  %s255 = scalar_lea.vmem %s0, 3
  %s256 = smov 48
  %v257 = vld [vmem:[%s255] ss:$16 sm:%s256]
  %vm258 = vcmask 1045508
  %v259 = vsel %vm258, %v257, %v254
  %s260 = scalar_lea.vmem %s0, 3
  %s261 = smov 192
  %v262 = vld [vmem:[%s260] ss:$16 sm:%s261]
  %vm263 = vcmask 1047558
  %v264 = vsel %vm263, %v262, %v259
  %265 = vrot.lane.b32.xlu0 %v264, 48
  %v266 = vpop.permute.xlu0 %265
  %vm267 = vcmask 523648
  %268 = vst.msk [vmem:[%s1] sm:$0xff] %vm267, %v266
  %s269 = scalar_lea.vmem %s0, 11
  %s270 = smov 3
  %v271 = vld [vmem:[%s269] ss:$16 sm:%s270]
  %s272 = scalar_lea.vmem %s0, 11
  %s273 = smov 12
  %v274 = vld [vmem:[%s272] ss:$16 sm:%s273]
  %vm275 = vcmask 1043458
  %v276 = vsel %vm275, %v274, %v271
  %s277 = scalar_lea.vmem %s0, 11
  %s278 = smov 48
  %v279 = vld [vmem:[%s277] ss:$16 sm:%s278]
  %vm280 = vcmask 1045508
  %v281 = vsel %vm280, %v279, %v276
  %s282 = scalar_lea.vmem %s0, 11
  %s283 = smov 192
  %v284 = vld [vmem:[%s282] ss:$16 sm:%s283]
  %vm285 = vcmask 1047558
  %v286 = vsel %vm285, %v284, %v281
  %287 = vrot.lane.b32.xlu0 %v286, 48
  %v288 = vpop.permute.xlu0 %287
  %vm289 = vcmask 523648
  %s290 = scalar_lea.vmem %s1, 8
  %291 = vst.msk [vmem:[%s290] sm:$0xff] %vm289, %v288
  %s292 = scalar_lea.vmem %s0, 131
  %s293 = smov 3
  %v294 = vld [vmem:[%s292] ss:$8 sm:%s293]
  %295 = vrot.lane.b32.xlu0 %v294, 48
  %v296 = vpop.permute.xlu0 %295
  %vm297 = vcmask 523648
  %s298 = scalar_lea.vmem %s1, 16
  %299 = vst.msk [vmem:[%s298] ss:$8 sm:$0x3] %vm297, %v296
  %s300 = scalar_lea.vmem %s0, 2
  %s301 = smov 3
  %v302 = vld [vmem:[%s300] ss:$16 sm:%s301]
  %s303 = scalar_lea.vmem %s0, 2
  %s304 = smov 12
  %v305 = vld [vmem:[%s303] ss:$16 sm:%s304]
  %vm306 = vcmask 1043458
  %v307 = vsel %vm306, %v305, %v302
  %s308 = scalar_lea.vmem %s0, 2
  %s309 = smov 48
  %v310 = vld [vmem:[%s308] ss:$16 sm:%s309]
  %vm311 = vcmask 1045508
  %v312 = vsel %vm311, %v310, %v307
  %s313 = scalar_lea.vmem %s0, 2
  %s314 = smov 192
  %v315 = vld [vmem:[%s313] ss:$16 sm:%s314]
  %vm316 = vcmask 1047558
  %v317 = vsel %vm316, %v315, %v312
  %318 = vrot.lane.b32.xlu0 %v317, 32
  %v319 = vpop.permute.xlu0 %318
  %vm320 = vcmask 392448
  %321 = vst.msk [vmem:[%s1] sm:$0xff] %vm320, %v319
  %s322 = scalar_lea.vmem %s0, 10
  %s323 = smov 3
  %v324 = vld [vmem:[%s322] ss:$16 sm:%s323]
  %s325 = scalar_lea.vmem %s0, 10
  %s326 = smov 12
  %v327 = vld [vmem:[%s325] ss:$16 sm:%s326]
  %vm328 = vcmask 1043458
  %v329 = vsel %vm328, %v327, %v324
  %s330 = scalar_lea.vmem %s0, 10
  %s331 = smov 48
  %v332 = vld [vmem:[%s330] ss:$16 sm:%s331]
  %vm333 = vcmask 1045508
  %v334 = vsel %vm333, %v332, %v329
  %s335 = scalar_lea.vmem %s0, 10
  %s336 = smov 192
  %v337 = vld [vmem:[%s335] ss:$16 sm:%s336]
  %vm338 = vcmask 1047558
  %v339 = vsel %vm338, %v337, %v334
  %340 = vrot.lane.b32.xlu0 %v339, 32
  %v341 = vpop.permute.xlu0 %340
  %vm342 = vcmask 392448
  %s343 = scalar_lea.vmem %s1, 8
  %344 = vst.msk [vmem:[%s343] sm:$0xff] %vm342, %v341
  %s345 = scalar_lea.vmem %s0, 130
  %s346 = smov 3
  %v347 = vld [vmem:[%s345] ss:$8 sm:%s346]
  %348 = vrot.lane.b32.xlu0 %v347, 32
  %v349 = vpop.permute.xlu0 %348
  %vm350 = vcmask 392448
  %s351 = scalar_lea.vmem %s1, 16
  %352 = vst.msk [vmem:[%s351] ss:$8 sm:$0x3] %vm350, %v349
  %s353 = scalar_lea.vmem %s0, 1
  %s354 = smov 3
  %v355 = vld [vmem:[%s353] ss:$16 sm:%s354]
  %s356 = scalar_lea.vmem %s0, 1
  %s357 = smov 12
  %v358 = vld [vmem:[%s356] ss:$16 sm:%s357]
  %vm359 = vcmask 1043458
  %v360 = vsel %vm359, %v358, %v355
  %s361 = scalar_lea.vmem %s0, 1
  %s362 = smov 48
  %v363 = vld [vmem:[%s361] ss:$16 sm:%s362]
  %vm364 = vcmask 1045508
  %v365 = vsel %vm364, %v363, %v360
  %s366 = scalar_lea.vmem %s0, 1
  %s367 = smov 192
  %v368 = vld [vmem:[%s366] ss:$16 sm:%s367]
  %vm369 = vcmask 1047558
  %v370 = vsel %vm369, %v368, %v365
  %371 = vrot.lane.b32.xlu0 %v370, 16
  %v372 = vpop.permute.xlu0 %371
  %vm373 = vcmask 261248
  %374 = vst.msk [vmem:[%s1] sm:$0xff] %vm373, %v372
  %s375 = scalar_lea.vmem %s0, 9
  %s376 = smov 3
  %v377 = vld [vmem:[%s375] ss:$16 sm:%s376]
  %s378 = scalar_lea.vmem %s0, 9
  %s379 = smov 12
  %v380 = vld [vmem:[%s378] ss:$16 sm:%s379]
  %vm381 = vcmask 1043458
  %v382 = vsel %vm381, %v380, %v377
  %s383 = scalar_lea.vmem %s0, 9
  %s384 = smov 48
  %v385 = vld [vmem:[%s383] ss:$16 sm:%s384]
  %vm386 = vcmask 1045508
  %v387 = vsel %vm386, %v385, %v382
  %s388 = scalar_lea.vmem %s0, 9
  %s389 = smov 192
  %v390 = vld [vmem:[%s388] ss:$16 sm:%s389]
  %vm391 = vcmask 1047558
  %v392 = vsel %vm391, %v390, %v387
  %393 = vrot.lane.b32.xlu0 %v392, 16
  %v394 = vpop.permute.xlu0 %393
  %vm395 = vcmask 261248
  %s396 = scalar_lea.vmem %s1, 8
  %397 = vst.msk [vmem:[%s396] sm:$0xff] %vm395, %v394
  %s398 = scalar_lea.vmem %s0, 129
  %s399 = smov 3
  %v400 = vld [vmem:[%s398] ss:$8 sm:%s399]
  %401 = vrot.lane.b32.xlu0 %v400, 16
  %v402 = vpop.permute.xlu0 %401
  %vm403 = vcmask 261248
  %s404 = scalar_lea.vmem %s1, 16
  %405 = vst.msk [vmem:[%s404] ss:$8 sm:$0x3] %vm403, %v402

// kernel: mnv4_extra_dw_block.1
$region0: #{mnv4_extra_dw_block.1}
  #allocation0 [shape = 'u32[]', space=smem, size = 0x4, offset = 0x4, fixed_abs, tag = 'smem constant byte address 0x4 - core index']
  #allocation1 [shape = 'u32[72,128]{1,0:T(1,128)}', space=vmem, size = 0x9000, scoped, tag = 'internal scratch']
  #allocation2 [shape = 'f32[25,400]{1,0:T(8,128)}', space=vmem, size = 0x10000, scoped, tag = 'scratch operand']
  #allocation3 [shape = 'f32[26,416]{1,0:T(8,128)}', space=vmem, size = 0x10000, scoped, tag = 'scratch operand']
  %s0 = inlined_call_operand.vmem [shape: f32[2,16,128], index: 0, kind: input, shape index: {}]
  %s1 = inlined_call_operand.vmem [shape: f32[128,256], index: 1, kind: input, shape index: {}]
  %s2 = inlined_call_operand.vmem [shape: f32[1,256], index: 2, kind: input, shape index: {}]
  %s3 = inlined_call_operand.vmem [shape: f32[9,256], index: 3, kind: input, shape index: {}]
  %s4 = inlined_call_operand.vmem [shape: f32[1,256], index: 4, kind: input, shape index: {}]
  %s5 = inlined_call_operand.vmem [shape: f32[25,256], index: 5, kind: input, shape index: {}]
  %s6 = inlined_call_operand.vmem [shape: f32[1,256], index: 6, kind: input, shape index: {}]
  %s7 = inlined_call_operand.vmem [shape: f32[256,128], index: 7, kind: input, shape index: {}]
  %s8 = inlined_call_operand.vmem [shape: f32[1,128], index: 8, kind: input, shape index: {}]
  %s9 = inlined_call_operand.vmem [shape: f32[2,16,128], index: 9, kind: output, shape index: {}]
  %s10 = sld [smem:[#allocation0]]
  $region69: #{mnv4_extra_dw_block.1} parent=0
    _
  %s12 = ssub.s32 1, %s10
  %s13 = scalar_select 0, %s12, %s10
  loop: start=0, step=1, limit=4
  $region2: #{mnv4_extra_dw_block.1} parent=0 // loop_pre_header
    _
  $region3: #{mnv4_extra_dw_block.1} parent=0 // loop_header
    %s15 = sphi 0, %s19
    %p16 = scmp.ge.s32.totalorder %s15, 4
    %s25 = sphi 0, %s27
    %s28 = sphi 0, %s25
    %s29 = sphi 0, %s28
    %s45 = sphi 0, %s29
    %s49 = sphi 0, %s49
    %s51 = sphi 0, %s49
    %s52 = sphi 0, %s51
    %s66 = sphi 0, %s52
    %s70 = sphi 0, %s70
    %s72 = sphi 0, %s70
    %s73 = sphi 0, %s72
    %s87 = sphi 0, %s73
    %s91 = sphi 0, %s91
    %s93 = sphi 0, %s91
    %s94 = sphi 0, %s93
    %s108 = sphi 0, %s94
    %s112 = sphi 0, %s112
    %s114 = sphi 0, %s112
    %s115 = sphi 0, %s114
    %s129 = sphi 0, %s115
    %s133 = sphi 0, %s133
    %s135 = sphi 0, %s133
    %s136 = sphi 0, %s135
    %s150 = sphi 0, %s136
    %s154 = sphi 0, %s154
    %s156 = sphi 0, %s154
    %s157 = sphi 0, %s156
    %s171 = sphi 0, %s157
    %s175 = sphi 0, %s175
    %s177 = sphi 0, %s175
    %s178 = sphi 0, %s177
    %s192 = sphi 0, %s178
    %s196 = sphi 0, %s196
    %s198 = sphi 0, %s196
    %s199 = sphi 0, %s198
    %s213 = sphi 0, %s199
    %s219 = sphi 0, %s221
    %s222 = sphi 0, %s219
    %s223 = sphi 0, %s222
    %s239 = sphi 0, %s223
  $region4: #{mnv4_extra_dw_block.1} parent=0 // loop_header_branch
    %18 = sbr.rel (%p16) target = $region8
  $region5: #{mnv4_extra_dw_block.1} parent=0 // loop_body
    %s20 = ssub.s32 %s15, 1
    %s21 = ssub.s32 %s15, 2
    %s22 = sadd.s32 %s15, 1
    %s23 = ssub.s32 %s15, %s22
    %p24 = scmp.eq.s32.totalorder %s23, 0
    %s26 = sadd.s32 %s25, 1
    %s27 = scalar_select %p24, %s25, %s26
    %p30 = pneg %p24
    %p31 = scmp.eq.s32.totalorder %s15, 1
    %p32 = por %p30, %p31
    %p33 = scmp.ne.s32.totalorder %s25, %s28
    %p34 = scmp.eq.s32.totalorder %s15, 0
    %p35 = por %p33, %p34
    %p36 = scmp.ne.s32.totalorder %s25, %s28
    %p37 = scmp.eq.s32.totalorder %s20, 1
    %p38 = por %p36, %p37
    %p39 = scmp.ne.s32.totalorder %s28, %s29
    %p40 = scmp.eq.s32.totalorder %s20, 0
    %p41 = por %p39, %p40
    %p42 = scmp.ne.s32.totalorder %s28, %s29
    %p43 = scmp.eq.s32.totalorder %s21, 1
    %p44 = por %p42, %p43
    %p46 = scmp.ne.s32.totalorder %s29, %s45
    %p47 = scmp.eq.s32.totalorder %s21, 0
    %p48 = por %p46, %p47
    %s50 = sadd.s32 %s49, 1
    %p53 = scmp.eq.s32.totalorder %s15, 1
    %p54 = scmp.ne.s32.totalorder %s49, %s51
    %p55 = scmp.eq.s32.totalorder %s15, 0
    %p56 = por %p54, %p55
    %p57 = scmp.ne.s32.totalorder %s49, %s51
    %p58 = scmp.eq.s32.totalorder %s20, 1
    %p59 = por %p57, %p58
    %p60 = scmp.ne.s32.totalorder %s51, %s52
    %p61 = scmp.eq.s32.totalorder %s20, 0
    %p62 = por %p60, %p61
    %p63 = scmp.ne.s32.totalorder %s51, %s52
    %p64 = scmp.eq.s32.totalorder %s21, 1
    %p65 = por %p63, %p64
    %p67 = scmp.ne.s32.totalorder %s52, %s66
    %p68 = scmp.eq.s32.totalorder %s21, 0
    %p69 = por %p67, %p68
    %s71 = sadd.s32 %s70, 1
    %p74 = scmp.eq.s32.totalorder %s15, 1
    %p75 = scmp.ne.s32.totalorder %s70, %s72
    %p76 = scmp.eq.s32.totalorder %s15, 0
    %p77 = por %p75, %p76
    %p78 = scmp.ne.s32.totalorder %s70, %s72
    %p79 = scmp.eq.s32.totalorder %s20, 1
    %p80 = por %p78, %p79
    %p81 = scmp.ne.s32.totalorder %s72, %s73
    %p82 = scmp.eq.s32.totalorder %s20, 0
    %p83 = por %p81, %p82
    %p84 = scmp.ne.s32.totalorder %s72, %s73
    %p85 = scmp.eq.s32.totalorder %s21, 1
    %p86 = por %p84, %p85
    %p88 = scmp.ne.s32.totalorder %s73, %s87
    %p89 = scmp.eq.s32.totalorder %s21, 0
    %p90 = por %p88, %p89
    %s92 = sadd.s32 %s91, 1
    %p95 = scmp.eq.s32.totalorder %s15, 1
    %p96 = scmp.ne.s32.totalorder %s91, %s93
    %p97 = scmp.eq.s32.totalorder %s15, 0
    %p98 = por %p96, %p97
    %p99 = scmp.ne.s32.totalorder %s91, %s93
    %p100 = scmp.eq.s32.totalorder %s20, 1
    %p101 = por %p99, %p100
    %p102 = scmp.ne.s32.totalorder %s93, %s94
    %p103 = scmp.eq.s32.totalorder %s20, 0
    %p104 = por %p102, %p103
    %p105 = scmp.ne.s32.totalorder %s93, %s94
    %p106 = scmp.eq.s32.totalorder %s21, 1
    %p107 = por %p105, %p106
    %p109 = scmp.ne.s32.totalorder %s94, %s108
    %p110 = scmp.eq.s32.totalorder %s21, 0
    %p111 = por %p109, %p110
    %s113 = sadd.s32 %s112, 1
    %p116 = scmp.eq.s32.totalorder %s15, 1
    %p117 = scmp.ne.s32.totalorder %s112, %s114
    %p118 = scmp.eq.s32.totalorder %s15, 0
    %p119 = por %p117, %p118
    %p120 = scmp.ne.s32.totalorder %s112, %s114
    %p121 = scmp.eq.s32.totalorder %s20, 1
    %p122 = por %p120, %p121
    %p123 = scmp.ne.s32.totalorder %s114, %s115
    %p124 = scmp.eq.s32.totalorder %s20, 0
    %p125 = por %p123, %p124
    %p126 = scmp.ne.s32.totalorder %s114, %s115
    %p127 = scmp.eq.s32.totalorder %s21, 1
    %p128 = por %p126, %p127
    %p130 = scmp.ne.s32.totalorder %s115, %s129
    %p131 = scmp.eq.s32.totalorder %s21, 0
    %p132 = por %p130, %p131
    %s134 = sadd.s32 %s133, 1
    %p137 = scmp.eq.s32.totalorder %s15, 1
    %p138 = scmp.ne.s32.totalorder %s133, %s135
    %p139 = scmp.eq.s32.totalorder %s15, 0
    %p140 = por %p138, %p139
    %p141 = scmp.ne.s32.totalorder %s133, %s135
    %p142 = scmp.eq.s32.totalorder %s20, 1
    %p143 = por %p141, %p142
    %p144 = scmp.ne.s32.totalorder %s135, %s136
    %p145 = scmp.eq.s32.totalorder %s20, 0
    %p146 = por %p144, %p145
    %p147 = scmp.ne.s32.totalorder %s135, %s136
    %p148 = scmp.eq.s32.totalorder %s21, 1
    %p149 = por %p147, %p148
    %p151 = scmp.ne.s32.totalorder %s136, %s150
    %p152 = scmp.eq.s32.totalorder %s21, 0
    %p153 = por %p151, %p152
    %s155 = sadd.s32 %s154, 1
    %p158 = scmp.eq.s32.totalorder %s15, 1
    %p159 = scmp.ne.s32.totalorder %s154, %s156
    %p160 = scmp.eq.s32.totalorder %s15, 0
    %p161 = por %p159, %p160
    %p162 = scmp.ne.s32.totalorder %s154, %s156
    %p163 = scmp.eq.s32.totalorder %s20, 1
    %p164 = por %p162, %p163
    %p165 = scmp.ne.s32.totalorder %s156, %s157
    %p166 = scmp.eq.s32.totalorder %s20, 0
    %p167 = por %p165, %p166
    %p168 = scmp.ne.s32.totalorder %s156, %s157
    %p169 = scmp.eq.s32.totalorder %s21, 1
    %p170 = por %p168, %p169
    %p172 = scmp.ne.s32.totalorder %s157, %s171
    %p173 = scmp.eq.s32.totalorder %s21, 0
    %p174 = por %p172, %p173
    %s176 = sadd.s32 %s175, 1
    %p179 = scmp.eq.s32.totalorder %s15, 1
    %p180 = scmp.ne.s32.totalorder %s175, %s177
    %p181 = scmp.eq.s32.totalorder %s15, 0
    %p182 = por %p180, %p181
    %p183 = scmp.ne.s32.totalorder %s175, %s177
    %p184 = scmp.eq.s32.totalorder %s20, 1
    %p185 = por %p183, %p184
    %p186 = scmp.ne.s32.totalorder %s177, %s178
    %p187 = scmp.eq.s32.totalorder %s20, 0
    %p188 = por %p186, %p187
    %p189 = scmp.ne.s32.totalorder %s177, %s178
    %p190 = scmp.eq.s32.totalorder %s21, 1
    %p191 = por %p189, %p190
    %p193 = scmp.ne.s32.totalorder %s178, %s192
    %p194 = scmp.eq.s32.totalorder %s21, 0
    %p195 = por %p193, %p194
    %s197 = sadd.s32 %s196, 1
    %p200 = scmp.eq.s32.totalorder %s15, 1
    %p201 = scmp.ne.s32.totalorder %s196, %s198
    %p202 = scmp.eq.s32.totalorder %s15, 0
    %p203 = por %p201, %p202
    %p204 = scmp.ne.s32.totalorder %s196, %s198
    %p205 = scmp.eq.s32.totalorder %s20, 1
    %p206 = por %p204, %p205
    %p207 = scmp.ne.s32.totalorder %s198, %s199
    %p208 = scmp.eq.s32.totalorder %s20, 0
    %p209 = por %p207, %p208
    %p210 = scmp.ne.s32.totalorder %s198, %s199
    %p211 = scmp.eq.s32.totalorder %s21, 1
    %p212 = por %p210, %p211
    %p214 = scmp.ne.s32.totalorder %s199, %s213
    %p215 = scmp.eq.s32.totalorder %s21, 0
    %p216 = por %p214, %p215
    %s217 = ssub.s32 %s15, %s22
    %p218 = scmp.eq.s32.totalorder %s217, 0
    %s220 = sadd.s32 %s219, 1
    %s221 = scalar_select %p218, %s219, %s220
    %p224 = pneg %p218
    %p225 = scmp.eq.s32.totalorder %s15, 1
    %p226 = por %p224, %p225
    %p227 = scmp.ne.s32.totalorder %s219, %s222
    %p228 = scmp.eq.s32.totalorder %s15, 0
    %p229 = por %p227, %p228
    %p230 = scmp.ne.s32.totalorder %s219, %s222
    %p231 = scmp.eq.s32.totalorder %s20, 1
    %p232 = por %p230, %p231
    %p233 = scmp.ne.s32.totalorder %s222, %s223
    %p234 = scmp.eq.s32.totalorder %s20, 0
    %p235 = por %p233, %p234
    %p236 = scmp.ne.s32.totalorder %s222, %s223
    %p237 = scmp.eq.s32.totalorder %s21, 1
    %p238 = por %p236, %p237
    %p240 = scmp.ne.s32.totalorder %s223, %s239
    %p241 = scmp.eq.s32.totalorder %s21, 0
    %p242 = por %p240, %p241
    %p243 = scmp.le.s32.totalorder 1, %s15
    %p244 = scmp.lt.s32.totalorder %s15, 3
    %p245 = pnand %p243, %p244
    %p246 = pneg %p245
    // Predicated region
    $region9: #{mnv4_extra_dw_block.1} parent=5 // pred_check
      _
    $region10: #{mnv4_extra_dw_block.1} parent=5 // pred_check_branch
      %248 = sbr.rel (%p245) target = $region12
    $region11: #{mnv4_extra_dw_block.1} parent=5 // pred_region
      %s249 = ssub.s32 %s15, 1
      // Predicated region
      $region13: #{mnv4_extra_dw_block.1} parent=11 // pred_check
        %p250 = pneg %p62
      $region14: #{mnv4_extra_dw_block.1} parent=11 // pred_check_branch
        %252 = sbr.rel (%p250) target = $region16
      $region15: #{mnv4_extra_dw_block.1} parent=11 // pred_region
        _
      $region16: #{mnv4_extra_dw_block.1} parent=11 // pred_fallthru
        _
      // Predicated region
      $region17: #{mnv4_extra_dw_block.1} parent=11 // pred_check
        %p253 = pneg %p83
      $region18: #{mnv4_extra_dw_block.1} parent=11 // pred_check_branch
        %255 = sbr.rel (%p253) target = $region20
      $region19: #{mnv4_extra_dw_block.1} parent=11 // pred_region
        _
      $region20: #{mnv4_extra_dw_block.1} parent=11 // pred_fallthru
        _
      // Predicated region
      $region21: #{mnv4_extra_dw_block.1} parent=11 // pred_check
        %p256 = pneg %p104
      $region22: #{mnv4_extra_dw_block.1} parent=11 // pred_check_branch
        %258 = sbr.rel (%p256) target = $region24
      $region23: #{mnv4_extra_dw_block.1} parent=11 // pred_region
        _
      $region24: #{mnv4_extra_dw_block.1} parent=11 // pred_fallthru
        _
      // Predicated region
      $region25: #{mnv4_extra_dw_block.1} parent=11 // pred_check
        %p259 = pneg %p125
      $region26: #{mnv4_extra_dw_block.1} parent=11 // pred_check_branch
        %261 = sbr.rel (%p259) target = $region28
      $region27: #{mnv4_extra_dw_block.1} parent=11 // pred_region
        _
      $region28: #{mnv4_extra_dw_block.1} parent=11 // pred_fallthru
        _
      // Predicated region
      $region29: #{mnv4_extra_dw_block.1} parent=11 // pred_check
        %p262 = pneg %p146
      $region30: #{mnv4_extra_dw_block.1} parent=11 // pred_check_branch
        %264 = sbr.rel (%p262) target = $region32
      $region31: #{mnv4_extra_dw_block.1} parent=11 // pred_region
        _
      $region32: #{mnv4_extra_dw_block.1} parent=11 // pred_fallthru
        _
      // Predicated region
      $region33: #{mnv4_extra_dw_block.1} parent=11 // pred_check
        %p265 = pneg %p167
      $region34: #{mnv4_extra_dw_block.1} parent=11 // pred_check_branch
        %267 = sbr.rel (%p265) target = $region36
      $region35: #{mnv4_extra_dw_block.1} parent=11 // pred_region
        _
      $region36: #{mnv4_extra_dw_block.1} parent=11 // pred_fallthru
        _
      // Predicated region
      $region37: #{mnv4_extra_dw_block.1} parent=11 // pred_check
        %p268 = pneg %p188
      $region38: #{mnv4_extra_dw_block.1} parent=11 // pred_check_branch
        %270 = sbr.rel (%p268) target = $region40
      $region39: #{mnv4_extra_dw_block.1} parent=11 // pred_region
        _
      $region40: #{mnv4_extra_dw_block.1} parent=11 // pred_fallthru
        _
      // Predicated region
      $region41: #{mnv4_extra_dw_block.1} parent=11 // pred_check
        %p271 = pneg %p209
      $region42: #{mnv4_extra_dw_block.1} parent=11 // pred_check_branch
        %273 = sbr.rel (%p271) target = $region44
      $region43: #{mnv4_extra_dw_block.1} parent=11 // pred_region
        _
      $region44: #{mnv4_extra_dw_block.1} parent=11 // pred_fallthru
        _
    $region12: #{mnv4_extra_dw_block.1} parent=5 // pred_fallthru
      _
    %p274 = scmp.lt.s32.totalorder %s15, 2
    // Predicated region
    $region45: #{mnv4_extra_dw_block.1} parent=5 // pred_check
      %p275 = pneg %p274
    $region46: #{mnv4_extra_dw_block.1} parent=5 // pred_check_branch
      %277 = sbr.rel (%p275) target = $region48
    $region47: #{mnv4_extra_dw_block.1} parent=5 // pred_region
      // Predicated region
      $region49: #{mnv4_extra_dw_block.1} parent=47 // pred_check
        %p278 = pneg %p35
      $region50: #{mnv4_extra_dw_block.1} parent=47 // pred_check_branch
        %280 = sbr.rel (%p278) target = $region52
      $region51: #{mnv4_extra_dw_block.1} parent=47 // pred_region
        %p281 = scmp.lt.s32.totalorder %s15, 1
        %s282 = scalar_select %p281, %s15, 1
        %s283 = smul.addr %s282, 2
        %s284 = smul.addr %s283, 8
        %s285 = scalar_lea.vmem %s0, %s284
      $region52: #{mnv4_extra_dw_block.1} parent=47 // pred_fallthru
        _
    $region48: #{mnv4_extra_dw_block.1} parent=5 // pred_fallthru
      _
    %p286 = scmp.le.s32.totalorder 1, %s15
    %p287 = scmp.lt.s32.totalorder %s15, 3
    %p288 = pnand %p286, %p287
    %p289 = pneg %p288
    // Predicated region
    $region53: #{mnv4_extra_dw_block.1} parent=5 // pred_check
      _
    $region54: #{mnv4_extra_dw_block.1} parent=5 // pred_check_branch
      %291 = sbr.rel (%p288) target = $region56
    $region55: #{mnv4_extra_dw_block.1} parent=5 // pred_region
      %s292 = ssub.s32 %s15, 1
      %p293 = scmp.lt.s32.totalorder %s20, 1
      %s294 = scalar_select %p293, %s20, 1
      %s295 = smul.addr %s294, 2
      %s296 = smul.addr %s295, 8
      %s297 = scalar_lea.vmem %s0, %s296
      %p298 = pneg %p41
      %p299 = pneg %p38
      %p300 = pneg %p62
      %p301 = pneg %p59
      %p302 = pneg %p83
      %p303 = pneg %p80
      %p304 = pneg %p104
      %p305 = pneg %p101
      %p306 = pneg %p125
      %p307 = pneg %p122
      %p308 = pneg %p146
      %p309 = pneg %p143
      %p310 = pneg %p167
      %p311 = pneg %p164
      %p312 = pneg %p188
      %p313 = pneg %p185
      %p314 = pneg %p209
      %p315 = pneg %p206
      %p316 = pneg %p235
      %p317 = pneg %p232
      %p318 = scmp.lt.s32.totalorder %s20, 1
      %s319 = scalar_select %p318, %s20, 1
      %s320 = smul.addr %s319, 2
      %s321 = smul.addr %s320, 8
      %s322 = scalar_lea.vmem %s9, %s321
      %p323 = scmp.lt.s32.totalorder %s20, 1
      %s324 = scalar_select %p323, %s20, 1
      %s325 = smul.addr %s324, 2
      %s326 = smul.addr %s325, 8
      %s327 = scalar_lea.vmem %s0, %s326
      %p328 = scmp.lt.s32.totalorder %s20, 1
      %s329 = scalar_select %p328, %s20, 1
      %s330 = smul.addr %s329, 2
      %s331 = smul.addr %s330, 8
      %s332 = scalar_lea.vmem %s9, %s331
      %v333 = vld [vmem:[%s327] sm:$0xff]
      %v334 = vld [vmem:[%s327 + $0x8] sm:$0xff]
      %v335 = vld [vmem:[%s1] sm:$0xff]
      %v336 = vld [vmem:[%s1 + $0x8] sm:$0xff]
      %v337 = vld [vmem:[%s1 + $0x10] sm:$0xff]
      %v338 = vld [vmem:[%s1 + $0x18] sm:$0xff]
      %v339 = vld [vmem:[%s1 + $0x20] sm:$0xff]
      %v340 = vld [vmem:[%s1 + $0x28] sm:$0xff]
      %v341 = vld [vmem:[%s1 + $0x30] sm:$0xff]
      %v342 = vld [vmem:[%s1 + $0x38] sm:$0xff]
      %v343 = vld [vmem:[%s1 + $0x40] sm:$0xff]
      %v344 = vld [vmem:[%s1 + $0x48] sm:$0xff]
      %v345 = vld [vmem:[%s1 + $0x50] sm:$0xff]
      %v346 = vld [vmem:[%s1 + $0x58] sm:$0xff]
      %v347 = vld [vmem:[%s1 + $0x60] sm:$0xff]
      %v348 = vld [vmem:[%s1 + $0x68] sm:$0xff]
      %v349 = vld [vmem:[%s1 + $0x70] sm:$0xff]
      %v350 = vld [vmem:[%s1 + $0x78] sm:$0xff]
      %v351 = vld [vmem:[%s1 + $0x80] sm:$0xff]
      %v352 = vld [vmem:[%s1 + $0x88] sm:$0xff]
      %v353 = vld [vmem:[%s1 + $0x90] sm:$0xff]
      %v354 = vld [vmem:[%s1 + $0x98] sm:$0xff]
      %v355 = vld [vmem:[%s1 + $0xa0] sm:$0xff]
      %v356 = vld [vmem:[%s1 + $0xa8] sm:$0xff]
      %v357 = vld [vmem:[%s1 + $0xb0] sm:$0xff]
      %v358 = vld [vmem:[%s1 + $0xb8] sm:$0xff]
      %v359 = vld [vmem:[%s1 + $0xc0] sm:$0xff]
      %v360 = vld [vmem:[%s1 + $0xc8] sm:$0xff]
      %v361 = vld [vmem:[%s1 + $0xd0] sm:$0xff]
      %v362 = vld [vmem:[%s1 + $0xd8] sm:$0xff]
      %v363 = vld [vmem:[%s1 + $0xe0] sm:$0xff]
      %v364 = vld [vmem:[%s1 + $0xe8] sm:$0xff]
      %v365 = vld [vmem:[%s1 + $0xf0] sm:$0xff]
      %v366 = vld [vmem:[%s1 + $0xf8] sm:$0xff]
      %v367 = vld [vmem:[%s2] sm:$0x3]
      %v369 = vperm.slane %v367, 0
      %v370 = vperm.slane %v367, 1
      %373 = vmatpush.msra.mxu0 %v365
      %374 = vmatpush.msra.mxu0 %v363
      %375 = vmatpush.msra.mxu0 %v361
      %376 = vmatpush.msra.mxu0 %v359
      %377 = vmatpush.msra.mxu0 %v357
      %378 = vmatpush.msra.mxu0 %v355
      %379 = vmatpush.msra.mxu0 %v353
      %380 = vmatpush.msra.mxu0 %v351
      %381 = vmatpush.msra.mxu0 %v349
      %382 = vmatpush.msra.mxu0 %v347
      %383 = vmatpush.msra.mxu0 %v345
      %384 = vmatpush.msra.mxu0 %v343
      %385 = vmatpush.msra.mxu0 %v341
      %386 = vmatpush.msra.mxu0 %v339
      %387 = vmatpush.msra.mxu0 %v337
      %388 = vmatpush.msra.mxu0 %v335
      %389 = vmatmul.f32.gmra.mxu0 %v333
      %v390 = vpop.f32.mrf.mxu0
      %v391 = vadd.f32 %v369, %v390
      %392 = vmatmul.f32.gmra.mxu0 %v334
      %v393 = vpop.f32.mrf.mxu0
      %v394 = vadd.f32 %v369, %v393
      %395 = vdwg.mxu0
      %396 = vmatpush.msra.mxu0 %v366
      %397 = vmatpush.msra.mxu0 %v364
      %398 = vmatpush.msra.mxu0 %v362
      %399 = vmatpush.msra.mxu0 %v360
      %400 = vmatpush.msra.mxu0 %v358
      %401 = vmatpush.msra.mxu0 %v356
      %402 = vmatpush.msra.mxu0 %v354
      %403 = vmatpush.msra.mxu0 %v352
      %404 = vmatpush.msra.mxu0 %v350
      %405 = vmatpush.msra.mxu0 %v348
      %406 = vmatpush.msra.mxu0 %v346
      %407 = vmatpush.msra.mxu0 %v344
      %408 = vmatpush.msra.mxu0 %v342
      %409 = vmatpush.msra.mxu0 %v340
      %410 = vmatpush.msra.mxu0 %v338
      %411 = vmatpush.msra.mxu0 %v336
      %412 = vmatmul.f32.gmra.mxu0 %v333
      %v413 = vpop.f32.mrf.mxu0
      %v414 = vadd.f32 %v370, %v413
      %415 = vmatmul.f32.gmra.mxu0 %v334
      %v416 = vpop.f32.mrf.mxu0
      %v417 = vadd.f32 %v370, %v416
      %418 = vdwg.mxu0
      %v419 = vmax.f32 %v391, 0.0
      %v420 = vmax.f32 %v414, 0.0
      %v421 = vmax.f32 %v394, 0.0
      %v422 = vmax.f32 %v417, 0.0
      %v423 = vlaneseq
      %vm424 = vcmp.ge.s32.totalorder %v423, 112
      %vm425 = vcmp.lt.s32.totalorder %v423, 400
      %vm426 = vmand %vm424, %vm425
      %s427 = scalar_lea.vmem [#allocation2], 7
      %428 = vst.msk [vmem:[%s427] ss:$8 sm:$0xf] %vm426, 0.0
      %429 = vst.msk [vmem:[%s427] ss:$8 sm:$0x0] %vm426, 0.0
      %s430 = scalar_lea.vmem [#allocation2], 96
      %431 = vst.msk [vmem:[%s430] ss:$8 sm:$0xf] %vm426, 0.0
      %432 = vst.msk [vmem:[%s430] ss:$8 sm:$0x0] %vm426, 0.0
      %vm433 = vcmask 1048448
      %434 = vst.msk [vmem:[#allocation2 + $0x20] sm:$0xff] %vm433, 0.0
      %435 = vst.msk [vmem:[#allocation2 + $0x40] sm:$0xff] %vm433, 0.0
      %vm436 = vcmask 130048
      %437 = vst.msk [vmem:[#allocation2 + $0x38] sm:$0xff] %vm436, 0.0
      %438 = vst.msk [vmem:[#allocation2 + $0x58] sm:$0xff] %vm436, 0.0
      %439 = vst [vmem:[#allocation2 + $0x28] sm:$0xff] %v419
      %440 = vst [vmem:[#allocation2 + $0x30] sm:$0xff] %v420
      %441 = vst [vmem:[#allocation2 + $0x48] sm:$0xff] %v421
      %442 = vst [vmem:[#allocation2 + $0x50] sm:$0xff] %v422
      %v443 = vld [vmem:[%s4] sm:$0x3]
      %v445 = vperm.slane %v443, 0
      %v446 = vperm.slane %v443, 1
      %v449 = vld [vmem:[#allocation2] sm:$0x80]
      %v450 = vld [vmem:[#allocation2 + $0x8] sm:$0x80]
      %v451 = vld [vmem:[#allocation2 + $0x10] sm:$0x80]
      %v452 = vld [vmem:[#allocation2 + $0x20] sm:$0xff]
      %v453 = vld [vmem:[#allocation2 + $0x28] sm:$0xff]
      %v454 = vld [vmem:[#allocation2 + $0x30] sm:$0xff]
      %v455 = vld [vmem:[#allocation2 + $0x40] sm:$0x7f]
      %v456 = vld [vmem:[#allocation2 + $0x48] sm:$0x7f]
      %v457 = vld [vmem:[#allocation2 + $0x50] sm:$0x7f]
      %v458 = vld [vmem:[%s3] ss:$8 sm:$0x3]
      %v460 = vperm.slane %v458, 0
      %v461 = vperm.slane %v458, 1
      %462 = vrot.lane.b32.xlu0 %v460, 112
      %v463 = vpop.permute.xlu0 %462
      %464 = vrot.lane.b32.xlu0 %v461, 112
      %v465 = vpop.permute.xlu0 %464
      %vm466 = vcmask 916480
      %v467 = vsel %vm466, %v463, %v465
      %v471 = vmul.f32 %v449, %v463
      %v472 = vmul.f32 %v450, %v467
      %v473 = vmul.f32 %v451, %v465
      %v474 = vmul.f32 %v452, %v463
      %v475 = vmul.f32 %v453, %v467
      %v476 = vmul.f32 %v454, %v465
      %v477 = vmul.f32 %v455, %v463
      %v478 = vmul.f32 %v456, %v467
      %v479 = vmul.f32 %v457, %v465
      %vm489 = vcmask 1040384
      %v490 = vrot.slane %v471, 7
      %v491 = vrot.slane %v474, 7
      %v492 = vsel %vm489, %v490, %v491
      %v493 = vrot.slane %v472, 7
      %v494 = vrot.slane %v475, 7
      %v495 = vsel %vm489, %v493, %v494
      %v496 = vrot.slane %v473, 7
      %v497 = vrot.slane %v476, 7
      %v498 = vsel %vm489, %v496, %v497
      %v499 = vrot.slane %v477, 7
      %v500 = vsel %vm489, %v491, %v499
      %v501 = vrot.slane %v478, 7
      %v502 = vsel %vm489, %v494, %v501
      %v503 = vrot.slane %v479, 7
      %v504 = vsel %vm489, %v497, %v503
      %505 = vrot.lane.b32.xlu0 %v492, 16
      %v506 = vpop.permute.xlu0 %505
      %507 = vrot.lane.b32.xlu0 %v495, 16
      %v508 = vpop.permute.xlu0 %507
      %509 = vrot.lane.b32.xlu0 %v498, 16
      %v510 = vpop.permute.xlu0 %509
      %511 = vrot.lane.b32.xlu0 %v500, 16
      %v512 = vpop.permute.xlu0 %511
      %513 = vrot.lane.b32.xlu0 %v502, 16
      %v514 = vpop.permute.xlu0 %513
      %515 = vrot.lane.b32.xlu0 %v504, 16
      %v516 = vpop.permute.xlu0 %515
      %v517 = vsel %vm436, %v506, %v508
      %v518 = vsel %vm436, %v508, %v510
      %v519 = vsel %vm436, %v512, %v514
      %v520 = vsel %vm436, %v514, %v516
      %v525 = vadd.f32 %v445, %v517
      %v526 = vadd.f32 %v446, %v518
      %v527 = vadd.f32 %v445, %v519
      %v528 = vadd.f32 %v446, %v520
      %s529 = scalar_lea.vmem %s3, 1
      %v530 = vld [vmem:[%s529] ss:$8 sm:$0x3]
      %v532 = vperm.slane %v530, 0
      %v533 = vperm.slane %v530, 1
      %v536 = vmul.f32 %v450, %v532
      %v537 = vmul.f32 %v451, %v533
      %v538 = vmul.f32 %v453, %v532
      %v539 = vmul.f32 %v454, %v533
      %v540 = vmul.f32 %v456, %v532
      %v541 = vmul.f32 %v457, %v533
      %v548 = vrot.slane %v536, 7
      %v549 = vrot.slane %v538, 7
      %v550 = vsel %vm489, %v548, %v549
      %v551 = vrot.slane %v537, 7
      %v552 = vrot.slane %v539, 7
      %v553 = vsel %vm489, %v551, %v552
      %v554 = vrot.slane %v540, 7
      %v555 = vsel %vm489, %v549, %v554
      %v556 = vrot.slane %v541, 7
      %v557 = vsel %vm489, %v552, %v556
      %v562 = vadd.f32 %v525, %v550
      %v563 = vadd.f32 %v526, %v553
      %v564 = vadd.f32 %v527, %v555
      %v565 = vadd.f32 %v528, %v557
      %v566 = vld [vmem:[#allocation2 + $0x18] sm:$0x80]
      %v567 = vld [vmem:[#allocation2 + $0x38] sm:$0xff]
      %v568 = vld [vmem:[#allocation2 + $0x58] sm:$0x7f]
      %s569 = scalar_lea.vmem %s3, 2
      %v570 = vld [vmem:[%s569] ss:$8 sm:$0x3]
      %v572 = vperm.slane %v570, 0
      %v573 = vperm.slane %v570, 1
      %574 = vrot.lane.b32.xlu0 %v572, 16
      %v575 = vpop.permute.xlu0 %574
      %576 = vrot.lane.b32.xlu0 %v573, 16
      %v577 = vpop.permute.xlu0 %576
      %v578 = vsel %vm436, %v575, %v577
      %v582 = vmul.f32 %v450, %v575
      %v583 = vmul.f32 %v451, %v578
      %v584 = vmul.f32 %v566, %v577
      %v585 = vmul.f32 %v453, %v575
      %v586 = vmul.f32 %v454, %v578
      %v587 = vmul.f32 %v567, %v577
      %v588 = vmul.f32 %v456, %v575
      %v589 = vmul.f32 %v457, %v578
      %v590 = vmul.f32 %v568, %v577
      %v600 = vrot.slane %v582, 7
      %v601 = vrot.slane %v585, 7
      %v602 = vsel %vm489, %v600, %v601
      %v603 = vrot.slane %v583, 7
      %v604 = vrot.slane %v586, 7
      %v605 = vsel %vm489, %v603, %v604
      %v606 = vrot.slane %v584, 7
      %v607 = vrot.slane %v587, 7
      %v608 = vsel %vm489, %v606, %v607
      %v609 = vrot.slane %v588, 7
      %v610 = vsel %vm489, %v601, %v609
      %v611 = vrot.slane %v589, 7
      %v612 = vsel %vm489, %v604, %v611
      %v613 = vrot.slane %v590, 7
      %v614 = vsel %vm489, %v607, %v613
      %615 = vrot.lane.b32.xlu0 %v602, 112
      %v616 = vpop.permute.xlu0 %615
      %617 = vrot.lane.b32.xlu0 %v605, 112
      %v618 = vpop.permute.xlu0 %617
      %619 = vrot.lane.b32.xlu0 %v608, 112
      %v620 = vpop.permute.xlu0 %619
      %621 = vrot.lane.b32.xlu0 %v610, 112
      %v622 = vpop.permute.xlu0 %621
      %623 = vrot.lane.b32.xlu0 %v612, 112
      %v624 = vpop.permute.xlu0 %623
      %625 = vrot.lane.b32.xlu0 %v614, 112
      %v626 = vpop.permute.xlu0 %625
      %v627 = vsel %vm466, %v616, %v618
      %v628 = vsel %vm466, %v618, %v620
      %v629 = vsel %vm466, %v622, %v624
      %v630 = vsel %vm466, %v624, %v626
      %v635 = vadd.f32 %v562, %v627
      %v636 = vadd.f32 %v563, %v628
      %v637 = vadd.f32 %v564, %v629
      %v638 = vadd.f32 %v565, %v630
      %v639 = vld [vmem:[#allocation2 + $0x40] sm:$0xff]
      %v640 = vld [vmem:[#allocation2 + $0x48] sm:$0xff]
      %v641 = vld [vmem:[#allocation2 + $0x50] sm:$0xff]
      %s642 = scalar_lea.vmem %s3, 3
      %v643 = vld [vmem:[%s642] ss:$8 sm:$0x3]
      %v645 = vperm.slane %v643, 0
      %v646 = vperm.slane %v643, 1
      %647 = vrot.lane.b32.xlu0 %v645, 112
      %v648 = vpop.permute.xlu0 %647
      %649 = vrot.lane.b32.xlu0 %v646, 112
      %v650 = vpop.permute.xlu0 %649
      %v651 = vsel %vm466, %v648, %v650
      %v655 = vmul.f32 %v452, %v648
      %v656 = vmul.f32 %v453, %v651
      %v657 = vmul.f32 %v454, %v650
      %v658 = vmul.f32 %v639, %v648
      %v659 = vmul.f32 %v640, %v651
      %v660 = vmul.f32 %v641, %v650
      %667 = vrot.lane.b32.xlu0 %v655, 16
      %v668 = vpop.permute.xlu0 %667
      %669 = vrot.lane.b32.xlu0 %v656, 16
      %v670 = vpop.permute.xlu0 %669
      %671 = vrot.lane.b32.xlu0 %v657, 16
      %v672 = vpop.permute.xlu0 %671
      %673 = vrot.lane.b32.xlu0 %v658, 16
      %v674 = vpop.permute.xlu0 %673
      %675 = vrot.lane.b32.xlu0 %v659, 16
      %v676 = vpop.permute.xlu0 %675
      %677 = vrot.lane.b32.xlu0 %v660, 16
      %v678 = vpop.permute.xlu0 %677
      %v679 = vsel %vm436, %v668, %v670
      %v680 = vsel %vm436, %v670, %v672
      %v681 = vsel %vm436, %v674, %v676
      %v682 = vsel %vm436, %v676, %v678
      %v687 = vadd.f32 %v635, %v679
      %v688 = vadd.f32 %v636, %v680
      %v689 = vadd.f32 %v637, %v681
      %v690 = vadd.f32 %v638, %v682
      %s691 = scalar_lea.vmem %s3, 4
      %v692 = vld [vmem:[%s691] ss:$8 sm:$0x3]
      %v694 = vperm.slane %v692, 0
      %v695 = vperm.slane %v692, 1
      %v698 = vmul.f32 %v453, %v694
      %v699 = vmul.f32 %v454, %v695
      %v700 = vmul.f32 %v640, %v694
      %v701 = vmul.f32 %v641, %v695
      %v702 = vadd.f32 %v687, %v698
      %v703 = vadd.f32 %v688, %v699
      %v704 = vadd.f32 %v689, %v700
      %v705 = vadd.f32 %v690, %v701
      %v706 = vld [vmem:[#allocation2 + $0x58] sm:$0xff]
      %s707 = scalar_lea.vmem %s3, 5
      %v708 = vld [vmem:[%s707] ss:$8 sm:$0x3]
      %v710 = vperm.slane %v708, 0
      %v711 = vperm.slane %v708, 1
      %712 = vrot.lane.b32.xlu0 %v710, 16
      %v713 = vpop.permute.xlu0 %712
      %714 = vrot.lane.b32.xlu0 %v711, 16
      %v715 = vpop.permute.xlu0 %714
      %v716 = vsel %vm436, %v713, %v715
      %v720 = vmul.f32 %v453, %v713
      %v721 = vmul.f32 %v454, %v716
      %v722 = vmul.f32 %v567, %v715
      %v723 = vmul.f32 %v640, %v713
      %v724 = vmul.f32 %v641, %v716
      %v725 = vmul.f32 %v706, %v715
      %732 = vrot.lane.b32.xlu0 %v720, 112
      %v733 = vpop.permute.xlu0 %732
      %734 = vrot.lane.b32.xlu0 %v721, 112
      %v735 = vpop.permute.xlu0 %734
      %736 = vrot.lane.b32.xlu0 %v722, 112
      %v737 = vpop.permute.xlu0 %736
      %738 = vrot.lane.b32.xlu0 %v723, 112
      %v739 = vpop.permute.xlu0 %738
      %740 = vrot.lane.b32.xlu0 %v724, 112
      %v741 = vpop.permute.xlu0 %740
      %742 = vrot.lane.b32.xlu0 %v725, 112
      %v743 = vpop.permute.xlu0 %742
      %v744 = vsel %vm466, %v733, %v735
      %v745 = vsel %vm466, %v735, %v737
      %v746 = vsel %vm466, %v739, %v741
      %v747 = vsel %vm466, %v741, %v743
      %v752 = vadd.f32 %v702, %v744
      %v753 = vadd.f32 %v703, %v745
      %v754 = vadd.f32 %v704, %v746
      %v755 = vadd.f32 %v705, %v747
      %v756 = vld [vmem:[#allocation2 + $0x20] sm:$0xfe]
      %v757 = vld [vmem:[#allocation2 + $0x28] sm:$0xfe]
      %v758 = vld [vmem:[#allocation2 + $0x30] sm:$0xfe]
      %v759 = vld [vmem:[#allocation2 + $0x60] sm:$0x1]
      %v760 = vld [vmem:[#allocation2 + $0x68] sm:$0x1]
      %v761 = vld [vmem:[#allocation2 + $0x70] sm:$0x1]
      %s762 = scalar_lea.vmem %s3, 6
      %v763 = vld [vmem:[%s762] ss:$8 sm:$0x3]
      %v765 = vperm.slane %v763, 0
      %v766 = vperm.slane %v763, 1
      %767 = vrot.lane.b32.xlu0 %v765, 112
      %v768 = vpop.permute.xlu0 %767
      %769 = vrot.lane.b32.xlu0 %v766, 112
      %v770 = vpop.permute.xlu0 %769
      %v771 = vsel %vm466, %v768, %v770
      %v775 = vmul.f32 %v756, %v768
      %v776 = vmul.f32 %v757, %v771
      %v777 = vmul.f32 %v758, %v770
      %v778 = vmul.f32 %v639, %v768
      %v779 = vmul.f32 %v640, %v771
      %v780 = vmul.f32 %v641, %v770
      %v781 = vmul.f32 %v759, %v768
      %v782 = vmul.f32 %v760, %v771
      %v783 = vmul.f32 %v761, %v770
      %vm793 = vcmask 1046528
      %v794 = vrot.slane %v775, 1
      %v795 = vrot.slane %v778, 1
      %v796 = vsel %vm793, %v794, %v795
      %v797 = vrot.slane %v776, 1
      %v798 = vrot.slane %v779, 1
      %v799 = vsel %vm793, %v797, %v798
      %v800 = vrot.slane %v777, 1
      %v801 = vrot.slane %v780, 1
      %v802 = vsel %vm793, %v800, %v801
      %v803 = vrot.slane %v781, 1
      %v804 = vsel %vm793, %v795, %v803
      %v805 = vrot.slane %v782, 1
      %v806 = vsel %vm793, %v798, %v805
      %v807 = vrot.slane %v783, 1
      %v808 = vsel %vm793, %v801, %v807
      %809 = vrot.lane.b32.xlu0 %v796, 16
      %v810 = vpop.permute.xlu0 %809
      %811 = vrot.lane.b32.xlu0 %v799, 16
      %v812 = vpop.permute.xlu0 %811
      %813 = vrot.lane.b32.xlu0 %v802, 16
      %v814 = vpop.permute.xlu0 %813
      %815 = vrot.lane.b32.xlu0 %v804, 16
      %v816 = vpop.permute.xlu0 %815
      %817 = vrot.lane.b32.xlu0 %v806, 16
      %v818 = vpop.permute.xlu0 %817
      %819 = vrot.lane.b32.xlu0 %v808, 16
      %v820 = vpop.permute.xlu0 %819
      %v821 = vsel %vm436, %v810, %v812
      %v822 = vsel %vm436, %v812, %v814
      %v823 = vsel %vm436, %v816, %v818
      %v824 = vsel %vm436, %v818, %v820
      %v829 = vadd.f32 %v752, %v821
      %v830 = vadd.f32 %v753, %v822
      %v831 = vadd.f32 %v754, %v823
      %v832 = vadd.f32 %v755, %v824
      %s833 = scalar_lea.vmem %s3, 7
      %v834 = vld [vmem:[%s833] ss:$8 sm:$0x3]
      %v836 = vperm.slane %v834, 0
      %v837 = vperm.slane %v834, 1
      %v840 = vmul.f32 %v757, %v836
      %v841 = vmul.f32 %v758, %v837
      %v842 = vmul.f32 %v640, %v836
      %v843 = vmul.f32 %v641, %v837
      %v844 = vmul.f32 %v760, %v836
      %v845 = vmul.f32 %v761, %v837
      %v852 = vrot.slane %v840, 1
      %v853 = vrot.slane %v842, 1
      %v854 = vsel %vm793, %v852, %v853
      %v855 = vrot.slane %v841, 1
      %v856 = vrot.slane %v843, 1
      %v857 = vsel %vm793, %v855, %v856
      %v858 = vrot.slane %v844, 1
      %v859 = vsel %vm793, %v853, %v858
      %v860 = vrot.slane %v845, 1
      %v861 = vsel %vm793, %v856, %v860
      %v866 = vadd.f32 %v829, %v854
      %v867 = vadd.f32 %v830, %v857
      %v868 = vadd.f32 %v831, %v859
      %v869 = vadd.f32 %v832, %v861
      %v870 = vld [vmem:[#allocation2 + $0x38] sm:$0xfe]
      %v871 = vld [vmem:[#allocation2 + $0x78] sm:$0x1]
      %s872 = scalar_lea.vmem %s3, 16
      %v873 = vld [vmem:[%s872] ss:$8 sm:$0x3]
      %v875 = vperm.slane %v873, 0
      %v876 = vperm.slane %v873, 1
      %877 = vrot.lane.b32.xlu0 %v875, 16
      %v878 = vpop.permute.xlu0 %877
      %879 = vrot.lane.b32.xlu0 %v876, 16
      %v880 = vpop.permute.xlu0 %879
      %v881 = vsel %vm436, %v878, %v880
      %v885 = vmul.f32 %v757, %v878
      %v886 = vmul.f32 %v758, %v881
      %v887 = vmul.f32 %v870, %v880
      %v888 = vmul.f32 %v640, %v878
      %v889 = vmul.f32 %v641, %v881
      %v890 = vmul.f32 %v706, %v880
      %v891 = vmul.f32 %v760, %v878
      %v892 = vmul.f32 %v761, %v881
      %v893 = vmul.f32 %v871, %v880
      %v903 = vrot.slane %v885, 1
      %v904 = vrot.slane %v888, 1
      %v905 = vsel %vm793, %v903, %v904
      %v906 = vrot.slane %v886, 1
      %v907 = vrot.slane %v889, 1
      %v908 = vsel %vm793, %v906, %v907
      %v909 = vrot.slane %v887, 1
      %v910 = vrot.slane %v890, 1
      %v911 = vsel %vm793, %v909, %v910
      %v912 = vrot.slane %v891, 1
      %v913 = vsel %vm793, %v904, %v912
      %v914 = vrot.slane %v892, 1
      %v915 = vsel %vm793, %v907, %v914
      %v916 = vrot.slane %v893, 1
      %v917 = vsel %vm793, %v910, %v916
      %918 = vrot.lane.b32.xlu0 %v905, 112
      %v919 = vpop.permute.xlu0 %918
      %920 = vrot.lane.b32.xlu0 %v908, 112
      %v921 = vpop.permute.xlu0 %920
      %922 = vrot.lane.b32.xlu0 %v911, 112
      %v923 = vpop.permute.xlu0 %922
      %924 = vrot.lane.b32.xlu0 %v913, 112
      %v925 = vpop.permute.xlu0 %924
      %926 = vrot.lane.b32.xlu0 %v915, 112
      %v927 = vpop.permute.xlu0 %926
      %928 = vrot.lane.b32.xlu0 %v917, 112
      %v929 = vpop.permute.xlu0 %928
      %v930 = vsel %vm466, %v919, %v921
      %v931 = vsel %vm466, %v921, %v923
      %v932 = vsel %vm466, %v925, %v927
      %v933 = vsel %vm466, %v927, %v929
      %v938 = vadd.f32 %v866, %v930
      %v939 = vadd.f32 %v867, %v931
      %v940 = vadd.f32 %v868, %v932
      %v941 = vadd.f32 %v869, %v933
      %v942 = vmax.f32 %v938, 0.0
      %v943 = vmax.f32 %v939, 0.0
      %v944 = vmax.f32 %v940, 0.0
      %v945 = vmax.f32 %v941, 0.0
      %vm946 = vcmask 1048326
      %947 = vst.msk [vmem:[#allocation3] sm:$0xc0] %vm946, 0.0
      %948 = vst [vmem:[#allocation3 + $0x8] sm:$0xc0] 0.0
      %949 = vst [vmem:[#allocation3 + $0x10] sm:$0xc0] 0.0
      %vm950 = vcmask 261126
      %951 = vst.msk [vmem:[#allocation3 + $0x18] sm:$0xc0] %vm950, 0.0
      %vm952 = vcmask 1042176
      %953 = vst.msk [vmem:[#allocation3 + $0x60] sm:$0x3] %vm952, 0.0
      %954 = vst [vmem:[#allocation3 + $0x68] sm:$0x3] 0.0
      %955 = vst [vmem:[#allocation3 + $0x70] sm:$0x3] 0.0
      %vm956 = vcmask 254976
      %957 = vst.msk [vmem:[#allocation3 + $0x78] sm:$0x3] %vm956, 0.0
      %vm958 = vcmask 1048320
      %959 = vst.msk [vmem:[#allocation3 + $0x20] sm:$0xff] %vm958, 0.0
      %960 = vst.msk [vmem:[#allocation3 + $0x40] sm:$0xff] %vm958, 0.0
      %vm961 = vcmask 261120
      %962 = vst.msk [vmem:[#allocation3 + $0x38] sm:$0xff] %vm961, 0.0
      %963 = vst.msk [vmem:[#allocation3 + $0x58] sm:$0xff] %vm961, 0.0
      %964 = vst [vmem:[#allocation3 + $0x28] sm:$0xff] %v942
      %965 = vst [vmem:[#allocation3 + $0x30] sm:$0xff] %v943
      %966 = vst [vmem:[#allocation3 + $0x48] sm:$0xff] %v944
      %967 = vst [vmem:[#allocation3 + $0x50] sm:$0xff] %v945
      %v968 = vld [vmem:[%s6] sm:$0x3]
      %v970 = vperm.slane %v968, 0
      %v971 = vperm.slane %v968, 1
      %v974 = vld [vmem:[#allocation3] sm:$0xc0]
      %v975 = vld [vmem:[#allocation3 + $0x8] sm:$0xc0]
      %v976 = vld [vmem:[#allocation3 + $0x10] sm:$0xc0]
      %v977 = vld [vmem:[#allocation3 + $0x20] sm:$0xff]
      %v978 = vld [vmem:[#allocation3 + $0x28] sm:$0xff]
      %v979 = vld [vmem:[#allocation3 + $0x30] sm:$0xff]
      %v980 = vld [vmem:[#allocation3 + $0x40] sm:$0x3f]
      %v981 = vld [vmem:[#allocation3 + $0x48] sm:$0x3f]
      %v982 = vld [vmem:[#allocation3 + $0x50] sm:$0x3f]
      %v983 = vld [vmem:[%s5] ss:$8 sm:$0x3]
      %v985 = vperm.slane %v983, 0
      %v986 = vperm.slane %v983, 1
      %987 = vrot.lane.b32.xlu0 %v985, 96
      %v988 = vpop.permute.xlu0 %987
      %989 = vrot.lane.b32.xlu0 %v986, 96
      %v990 = vpop.permute.xlu0 %989
      %vm991 = vcmask 785408
      %v992 = vsel %vm991, %v988, %v990
      %v996 = vmul.f32 %v974, %v988
      %v997 = vmul.f32 %v975, %v992
      %v998 = vmul.f32 %v976, %v990
      %v999 = vmul.f32 %v977, %v988
      %v1000 = vmul.f32 %v978, %v992
      %v1001 = vmul.f32 %v979, %v990
      %v1002 = vmul.f32 %v980, %v988
      %v1003 = vmul.f32 %v981, %v992
      %v1004 = vmul.f32 %v982, %v990
      %vm1014 = vcmask 1041408
      %v1015 = vrot.slane %v996, 6
      %v1016 = vrot.slane %v999, 6
      %v1017 = vsel %vm1014, %v1015, %v1016
      %v1018 = vrot.slane %v997, 6
      %v1019 = vrot.slane %v1000, 6
      %v1020 = vsel %vm1014, %v1018, %v1019
      %v1021 = vrot.slane %v998, 6
      %v1022 = vrot.slane %v1001, 6
      %v1023 = vsel %vm1014, %v1021, %v1022
      %v1024 = vrot.slane %v1002, 6
      %v1025 = vsel %vm1014, %v1016, %v1024
      %v1026 = vrot.slane %v1003, 6
      %v1027 = vsel %vm1014, %v1019, %v1026
      %v1028 = vrot.slane %v1004, 6
      %v1029 = vsel %vm1014, %v1022, %v1028
      %1030 = vrot.lane.b32.xlu0 %v1017, 32
      %v1031 = vpop.permute.xlu0 %1030
      %1032 = vrot.lane.b32.xlu0 %v1020, 32
      %v1033 = vpop.permute.xlu0 %1032
      %1034 = vrot.lane.b32.xlu0 %v1023, 32
      %v1035 = vpop.permute.xlu0 %1034
      %1036 = vrot.lane.b32.xlu0 %v1025, 32
      %v1037 = vpop.permute.xlu0 %1036
      %1038 = vrot.lane.b32.xlu0 %v1027, 32
      %v1039 = vpop.permute.xlu0 %1038
      %1040 = vrot.lane.b32.xlu0 %v1029, 32
      %v1041 = vpop.permute.xlu0 %1040
      %v1042 = vsel %vm961, %v1031, %v1033
      %v1043 = vsel %vm961, %v1033, %v1035
      %v1044 = vsel %vm961, %v1037, %v1039
      %v1045 = vsel %vm961, %v1039, %v1041
      %v1050 = vadd.f32 %v970, %v1042
      %v1051 = vadd.f32 %v971, %v1043
      %v1052 = vadd.f32 %v970, %v1044
      %v1053 = vadd.f32 %v971, %v1045
      %s1054 = scalar_lea.vmem %s5, 1
      %v1055 = vld [vmem:[%s1054] ss:$8 sm:$0x3]
      %v1057 = vperm.slane %v1055, 0
      %v1058 = vperm.slane %v1055, 1
      %1059 = vrot.lane.b32.xlu0 %v1057, 112
      %v1060 = vpop.permute.xlu0 %1059
      %1061 = vrot.lane.b32.xlu0 %v1058, 112
      %v1062 = vpop.permute.xlu0 %1061
      %v1063 = vsel %vm466, %v1060, %v1062
      %v1067 = vmul.f32 %v974, %v1060
      %v1068 = vmul.f32 %v975, %v1063
      %v1069 = vmul.f32 %v976, %v1062
      %v1070 = vmul.f32 %v977, %v1060
      %v1071 = vmul.f32 %v978, %v1063
      %v1072 = vmul.f32 %v979, %v1062
      %v1073 = vmul.f32 %v980, %v1060
      %v1074 = vmul.f32 %v981, %v1063
      %v1075 = vmul.f32 %v982, %v1062
      %v1085 = vrot.slane %v1067, 6
      %v1086 = vrot.slane %v1070, 6
      %v1087 = vsel %vm1014, %v1085, %v1086
      %v1088 = vrot.slane %v1068, 6
      %v1089 = vrot.slane %v1071, 6
      %v1090 = vsel %vm1014, %v1088, %v1089
      %v1091 = vrot.slane %v1069, 6
      %v1092 = vrot.slane %v1072, 6
      %v1093 = vsel %vm1014, %v1091, %v1092
      %v1094 = vrot.slane %v1073, 6
      %v1095 = vsel %vm1014, %v1086, %v1094
      %v1096 = vrot.slane %v1074, 6
      %v1097 = vsel %vm1014, %v1089, %v1096
      %v1098 = vrot.slane %v1075, 6
      %v1099 = vsel %vm1014, %v1092, %v1098
      %1100 = vrot.lane.b32.xlu0 %v1087, 16
      %v1101 = vpop.permute.xlu0 %1100
      %1102 = vrot.lane.b32.xlu0 %v1090, 16
      %v1103 = vpop.permute.xlu0 %1102
      %1104 = vrot.lane.b32.xlu0 %v1093, 16
      %v1105 = vpop.permute.xlu0 %1104
      %1106 = vrot.lane.b32.xlu0 %v1095, 16
      %v1107 = vpop.permute.xlu0 %1106
      %1108 = vrot.lane.b32.xlu0 %v1097, 16
      %v1109 = vpop.permute.xlu0 %1108
      %1110 = vrot.lane.b32.xlu0 %v1099, 16
      %v1111 = vpop.permute.xlu0 %1110
      %v1112 = vsel %vm436, %v1101, %v1103
      %v1113 = vsel %vm436, %v1103, %v1105
      %v1114 = vsel %vm436, %v1107, %v1109
      %v1115 = vsel %vm436, %v1109, %v1111
      %v1120 = vadd.f32 %v1050, %v1112
      %v1121 = vadd.f32 %v1051, %v1113
      %v1122 = vadd.f32 %v1052, %v1114
      %v1123 = vadd.f32 %v1053, %v1115
      %s1124 = scalar_lea.vmem %s5, 2
      %v1125 = vld [vmem:[%s1124] ss:$8 sm:$0x3]
      %v1127 = vperm.slane %v1125, 0
      %v1128 = vperm.slane %v1125, 1
      %v1131 = vmul.f32 %v975, %v1127
      %v1132 = vmul.f32 %v976, %v1128
      %v1133 = vmul.f32 %v978, %v1127
      %v1134 = vmul.f32 %v979, %v1128
      %v1135 = vmul.f32 %v981, %v1127
      %v1136 = vmul.f32 %v982, %v1128
      %v1143 = vrot.slane %v1131, 6
      %v1144 = vrot.slane %v1133, 6
      %v1145 = vsel %vm1014, %v1143, %v1144
      %v1146 = vrot.slane %v1132, 6
      %v1147 = vrot.slane %v1134, 6
      %v1148 = vsel %vm1014, %v1146, %v1147
      %v1149 = vrot.slane %v1135, 6
      %v1150 = vsel %vm1014, %v1144, %v1149
      %v1151 = vrot.slane %v1136, 6
      %v1152 = vsel %vm1014, %v1147, %v1151
      %v1157 = vadd.f32 %v1120, %v1145
      %v1158 = vadd.f32 %v1121, %v1148
      %v1159 = vadd.f32 %v1122, %v1150
      %v1160 = vadd.f32 %v1123, %v1152
      %v1161 = vld [vmem:[#allocation3 + $0x18] sm:$0xc0]
      %v1162 = vld [vmem:[#allocation3 + $0x38] sm:$0xff]
      %v1163 = vld [vmem:[#allocation3 + $0x58] sm:$0x3f]
      %s1164 = scalar_lea.vmem %s5, 3
      %v1165 = vld [vmem:[%s1164] ss:$8 sm:$0x3]
      %v1167 = vperm.slane %v1165, 0
      %v1168 = vperm.slane %v1165, 1
      %1169 = vrot.lane.b32.xlu0 %v1167, 16
      %v1170 = vpop.permute.xlu0 %1169
      %1171 = vrot.lane.b32.xlu0 %v1168, 16
      %v1172 = vpop.permute.xlu0 %1171
      %v1173 = vsel %vm436, %v1170, %v1172
      %v1177 = vmul.f32 %v975, %v1170
      %v1178 = vmul.f32 %v976, %v1173
      %v1179 = vmul.f32 %v1161, %v1172
      %v1180 = vmul.f32 %v978, %v1170
      %v1181 = vmul.f32 %v979, %v1173
      %v1182 = vmul.f32 %v1162, %v1172
      %v1183 = vmul.f32 %v981, %v1170
      %v1184 = vmul.f32 %v982, %v1173
      %v1185 = vmul.f32 %v1163, %v1172
      %v1195 = vrot.slane %v1177, 6
      %v1196 = vrot.slane %v1180, 6
      %v1197 = vsel %vm1014, %v1195, %v1196
      %v1198 = vrot.slane %v1178, 6
      %v1199 = vrot.slane %v1181, 6
      %v1200 = vsel %vm1014, %v1198, %v1199
      %v1201 = vrot.slane %v1179, 6
      %v1202 = vrot.slane %v1182, 6
      %v1203 = vsel %vm1014, %v1201, %v1202
      %v1204 = vrot.slane %v1183, 6
      %v1205 = vsel %vm1014, %v1196, %v1204
      %v1206 = vrot.slane %v1184, 6
      %v1207 = vsel %vm1014, %v1199, %v1206
      %v1208 = vrot.slane %v1185, 6
      %v1209 = vsel %vm1014, %v1202, %v1208
      %1210 = vrot.lane.b32.xlu0 %v1197, 112
      %v1211 = vpop.permute.xlu0 %1210
      %1212 = vrot.lane.b32.xlu0 %v1200, 112
      %v1213 = vpop.permute.xlu0 %1212
      %1214 = vrot.lane.b32.xlu0 %v1203, 112
      %v1215 = vpop.permute.xlu0 %1214
      %1216 = vrot.lane.b32.xlu0 %v1205, 112
      %v1217 = vpop.permute.xlu0 %1216
      %1218 = vrot.lane.b32.xlu0 %v1207, 112
      %v1219 = vpop.permute.xlu0 %1218
      %1220 = vrot.lane.b32.xlu0 %v1209, 112
      %v1221 = vpop.permute.xlu0 %1220
      %v1222 = vsel %vm466, %v1211, %v1213
      %v1223 = vsel %vm466, %v1213, %v1215
      %v1224 = vsel %vm466, %v1217, %v1219
      %v1225 = vsel %vm466, %v1219, %v1221
      %v1230 = vadd.f32 %v1157, %v1222
      %v1231 = vadd.f32 %v1158, %v1223
      %v1232 = vadd.f32 %v1159, %v1224
      %v1233 = vadd.f32 %v1160, %v1225
      %s1234 = scalar_lea.vmem %s5, 4
      %v1235 = vld [vmem:[%s1234] ss:$8 sm:$0x3]
      %v1237 = vperm.slane %v1235, 0
      %v1238 = vperm.slane %v1235, 1
      %1239 = vrot.lane.b32.xlu0 %v1237, 32
      %v1240 = vpop.permute.xlu0 %1239
      %1241 = vrot.lane.b32.xlu0 %v1238, 32
      %v1242 = vpop.permute.xlu0 %1241
      %v1243 = vsel %vm961, %v1240, %v1242
      %v1247 = vmul.f32 %v975, %v1240
      %v1248 = vmul.f32 %v976, %v1243
      %v1249 = vmul.f32 %v1161, %v1242
      %v1250 = vmul.f32 %v978, %v1240
      %v1251 = vmul.f32 %v979, %v1243
      %v1252 = vmul.f32 %v1162, %v1242
      %v1253 = vmul.f32 %v981, %v1240
      %v1254 = vmul.f32 %v982, %v1243
      %v1255 = vmul.f32 %v1163, %v1242
      %v1265 = vrot.slane %v1247, 6
      %v1266 = vrot.slane %v1250, 6
      %v1267 = vsel %vm1014, %v1265, %v1266
      %v1268 = vrot.slane %v1248, 6
      %v1269 = vrot.slane %v1251, 6
      %v1270 = vsel %vm1014, %v1268, %v1269
      %v1271 = vrot.slane %v1249, 6
      %v1272 = vrot.slane %v1252, 6
      %v1273 = vsel %vm1014, %v1271, %v1272
      %v1274 = vrot.slane %v1253, 6
      %v1275 = vsel %vm1014, %v1266, %v1274
      %v1276 = vrot.slane %v1254, 6
      %v1277 = vsel %vm1014, %v1269, %v1276
      %v1278 = vrot.slane %v1255, 6
      %v1279 = vsel %vm1014, %v1272, %v1278
      %1280 = vrot.lane.b32.xlu0 %v1267, 96
      %v1281 = vpop.permute.xlu0 %1280
      %1282 = vrot.lane.b32.xlu0 %v1270, 96
      %v1283 = vpop.permute.xlu0 %1282
      %1284 = vrot.lane.b32.xlu0 %v1273, 96
      %v1285 = vpop.permute.xlu0 %1284
      %1286 = vrot.lane.b32.xlu0 %v1275, 96
      %v1287 = vpop.permute.xlu0 %1286
      %1288 = vrot.lane.b32.xlu0 %v1277, 96
      %v1289 = vpop.permute.xlu0 %1288
      %1290 = vrot.lane.b32.xlu0 %v1279, 96
      %v1291 = vpop.permute.xlu0 %1290
      %v1292 = vsel %vm991, %v1281, %v1283
      %v1293 = vsel %vm991, %v1283, %v1285
      %v1294 = vsel %vm991, %v1287, %v1289
      %v1295 = vsel %vm991, %v1289, %v1291
      %v1300 = vadd.f32 %v1230, %v1292
      %v1301 = vadd.f32 %v1231, %v1293
      %v1302 = vadd.f32 %v1232, %v1294
      %v1303 = vadd.f32 %v1233, %v1295
      %v1304 = vld [vmem:[#allocation3] sm:$0x80]
      %v1305 = vld [vmem:[#allocation3 + $0x8] sm:$0x80]
      %v1306 = vld [vmem:[#allocation3 + $0x10] sm:$0x80]
      %v1307 = vld [vmem:[#allocation3 + $0x40] sm:$0x7f]
      %v1308 = vld [vmem:[#allocation3 + $0x48] sm:$0x7f]
      %v1309 = vld [vmem:[#allocation3 + $0x50] sm:$0x7f]
      %s1310 = scalar_lea.vmem %s5, 5
      %v1311 = vld [vmem:[%s1310] ss:$8 sm:$0x3]
      %v1313 = vperm.slane %v1311, 0
      %v1314 = vperm.slane %v1311, 1
      %1315 = vrot.lane.b32.xlu0 %v1313, 96
      %v1316 = vpop.permute.xlu0 %1315
      %1317 = vrot.lane.b32.xlu0 %v1314, 96
      %v1318 = vpop.permute.xlu0 %1317
      %v1319 = vsel %vm991, %v1316, %v1318
      %v1323 = vmul.f32 %v1304, %v1316
      %v1324 = vmul.f32 %v1305, %v1319
      %v1325 = vmul.f32 %v1306, %v1318
      %v1326 = vmul.f32 %v977, %v1316
      %v1327 = vmul.f32 %v978, %v1319
      %v1328 = vmul.f32 %v979, %v1318
      %v1329 = vmul.f32 %v1307, %v1316
      %v1330 = vmul.f32 %v1308, %v1319
      %v1331 = vmul.f32 %v1309, %v1318
      %v1341 = vrot.slane %v1323, 7
      %v1342 = vrot.slane %v1326, 7
      %v1343 = vsel %vm489, %v1341, %v1342
      %v1344 = vrot.slane %v1324, 7
      %v1345 = vrot.slane %v1327, 7
      %v1346 = vsel %vm489, %v1344, %v1345
      %v1347 = vrot.slane %v1325, 7
      %v1348 = vrot.slane %v1328, 7
      %v1349 = vsel %vm489, %v1347, %v1348
      %v1350 = vrot.slane %v1329, 7
      %v1351 = vsel %vm489, %v1342, %v1350
      %v1352 = vrot.slane %v1330, 7
      %v1353 = vsel %vm489, %v1345, %v1352
      %v1354 = vrot.slane %v1331, 7
      %v1355 = vsel %vm489, %v1348, %v1354
      %1356 = vrot.lane.b32.xlu0 %v1343, 32
      %v1357 = vpop.permute.xlu0 %1356
      %1358 = vrot.lane.b32.xlu0 %v1346, 32
      %v1359 = vpop.permute.xlu0 %1358
      %1360 = vrot.lane.b32.xlu0 %v1349, 32
      %v1361 = vpop.permute.xlu0 %1360
      %1362 = vrot.lane.b32.xlu0 %v1351, 32
      %v1363 = vpop.permute.xlu0 %1362
      %1364 = vrot.lane.b32.xlu0 %v1353, 32
      %v1365 = vpop.permute.xlu0 %1364
      %1366 = vrot.lane.b32.xlu0 %v1355, 32
      %v1367 = vpop.permute.xlu0 %1366
      %v1368 = vsel %vm961, %v1357, %v1359
      %v1369 = vsel %vm961, %v1359, %v1361
      %v1370 = vsel %vm961, %v1363, %v1365
      %v1371 = vsel %vm961, %v1365, %v1367
      %v1376 = vadd.f32 %v1300, %v1368
      %v1377 = vadd.f32 %v1301, %v1369
      %v1378 = vadd.f32 %v1302, %v1370
      %v1379 = vadd.f32 %v1303, %v1371
      %s1380 = scalar_lea.vmem %s5, 6
      %v1381 = vld [vmem:[%s1380] ss:$8 sm:$0x3]
      %v1383 = vperm.slane %v1381, 0
      %v1384 = vperm.slane %v1381, 1
      %1385 = vrot.lane.b32.xlu0 %v1383, 112
      %v1386 = vpop.permute.xlu0 %1385
      %1387 = vrot.lane.b32.xlu0 %v1384, 112
      %v1388 = vpop.permute.xlu0 %1387
      %v1389 = vsel %vm466, %v1386, %v1388
      %v1393 = vmul.f32 %v1304, %v1386
      %v1394 = vmul.f32 %v1305, %v1389
      %v1395 = vmul.f32 %v1306, %v1388
      %v1396 = vmul.f32 %v977, %v1386
      %v1397 = vmul.f32 %v978, %v1389
      %v1398 = vmul.f32 %v979, %v1388
      %v1399 = vmul.f32 %v1307, %v1386
      %v1400 = vmul.f32 %v1308, %v1389
      %v1401 = vmul.f32 %v1309, %v1388
      %v1411 = vrot.slane %v1393, 7
      %v1412 = vrot.slane %v1396, 7
      %v1413 = vsel %vm489, %v1411, %v1412
      %v1414 = vrot.slane %v1394, 7
      %v1415 = vrot.slane %v1397, 7
      %v1416 = vsel %vm489, %v1414, %v1415
      %v1417 = vrot.slane %v1395, 7
      %v1418 = vrot.slane %v1398, 7
      %v1419 = vsel %vm489, %v1417, %v1418
      %v1420 = vrot.slane %v1399, 7
      %v1421 = vsel %vm489, %v1412, %v1420
      %v1422 = vrot.slane %v1400, 7
      %v1423 = vsel %vm489, %v1415, %v1422
      %v1424 = vrot.slane %v1401, 7
      %v1425 = vsel %vm489, %v1418, %v1424
      %1426 = vrot.lane.b32.xlu0 %v1413, 16
      %v1427 = vpop.permute.xlu0 %1426
      %1428 = vrot.lane.b32.xlu0 %v1416, 16
      %v1429 = vpop.permute.xlu0 %1428
      %1430 = vrot.lane.b32.xlu0 %v1419, 16
      %v1431 = vpop.permute.xlu0 %1430
      %1432 = vrot.lane.b32.xlu0 %v1421, 16
      %v1433 = vpop.permute.xlu0 %1432
      %1434 = vrot.lane.b32.xlu0 %v1423, 16
      %v1435 = vpop.permute.xlu0 %1434
      %1436 = vrot.lane.b32.xlu0 %v1425, 16
      %v1437 = vpop.permute.xlu0 %1436
      %v1438 = vsel %vm436, %v1427, %v1429
      %v1439 = vsel %vm436, %v1429, %v1431
      %v1440 = vsel %vm436, %v1433, %v1435
      %v1441 = vsel %vm436, %v1435, %v1437
      %v1446 = vadd.f32 %v1376, %v1438
      %v1447 = vadd.f32 %v1377, %v1439
      %v1448 = vadd.f32 %v1378, %v1440
      %v1449 = vadd.f32 %v1379, %v1441
      %s1450 = scalar_lea.vmem %s5, 7
      %v1451 = vld [vmem:[%s1450] ss:$8 sm:$0x3]
      %v1453 = vperm.slane %v1451, 0
      %v1454 = vperm.slane %v1451, 1
      %v1457 = vmul.f32 %v1305, %v1453
      %v1458 = vmul.f32 %v1306, %v1454
      %v1459 = vmul.f32 %v978, %v1453
      %v1460 = vmul.f32 %v979, %v1454
      %v1461 = vmul.f32 %v1308, %v1453
      %v1462 = vmul.f32 %v1309, %v1454
      %v1469 = vrot.slane %v1457, 7
      %v1470 = vrot.slane %v1459, 7
      %v1471 = vsel %vm489, %v1469, %v1470
      %v1472 = vrot.slane %v1458, 7
      %v1473 = vrot.slane %v1460, 7
      %v1474 = vsel %vm489, %v1472, %v1473
      %v1475 = vrot.slane %v1461, 7
      %v1476 = vsel %vm489, %v1470, %v1475
      %v1477 = vrot.slane %v1462, 7
      %v1478 = vsel %vm489, %v1473, %v1477
      %v1483 = vadd.f32 %v1446, %v1471
      %v1484 = vadd.f32 %v1447, %v1474
      %v1485 = vadd.f32 %v1448, %v1476
      %v1486 = vadd.f32 %v1449, %v1478
      %v1487 = vld [vmem:[#allocation3 + $0x18] sm:$0x80]
      %v1488 = vld [vmem:[#allocation3 + $0x58] sm:$0x7f]
      %s1489 = scalar_lea.vmem %s5, 16
      %v1490 = vld [vmem:[%s1489] ss:$8 sm:$0x3]
      %v1492 = vperm.slane %v1490, 0
      %v1493 = vperm.slane %v1490, 1
      %1494 = vrot.lane.b32.xlu0 %v1492, 16
      %v1495 = vpop.permute.xlu0 %1494
      %1496 = vrot.lane.b32.xlu0 %v1493, 16
      %v1497 = vpop.permute.xlu0 %1496
      %v1498 = vsel %vm436, %v1495, %v1497
      %v1502 = vmul.f32 %v1305, %v1495
      %v1503 = vmul.f32 %v1306, %v1498
      %v1504 = vmul.f32 %v1487, %v1497
      %v1505 = vmul.f32 %v978, %v1495
      %v1506 = vmul.f32 %v979, %v1498
      %v1507 = vmul.f32 %v1162, %v1497
      %v1508 = vmul.f32 %v1308, %v1495
      %v1509 = vmul.f32 %v1309, %v1498
      %v1510 = vmul.f32 %v1488, %v1497
      %v1520 = vrot.slane %v1502, 7
      %v1521 = vrot.slane %v1505, 7
      %v1522 = vsel %vm489, %v1520, %v1521
      %v1523 = vrot.slane %v1503, 7
      %v1524 = vrot.slane %v1506, 7
      %v1525 = vsel %vm489, %v1523, %v1524
      %v1526 = vrot.slane %v1504, 7
      %v1527 = vrot.slane %v1507, 7
      %v1528 = vsel %vm489, %v1526, %v1527
      %v1529 = vrot.slane %v1508, 7
      %v1530 = vsel %vm489, %v1521, %v1529
      %v1531 = vrot.slane %v1509, 7
      %v1532 = vsel %vm489, %v1524, %v1531
      %v1533 = vrot.slane %v1510, 7
      %v1534 = vsel %vm489, %v1527, %v1533
      %1535 = vrot.lane.b32.xlu0 %v1522, 112
      %v1536 = vpop.permute.xlu0 %1535
      %1537 = vrot.lane.b32.xlu0 %v1525, 112
      %v1538 = vpop.permute.xlu0 %1537
      %1539 = vrot.lane.b32.xlu0 %v1528, 112
      %v1540 = vpop.permute.xlu0 %1539
      %1541 = vrot.lane.b32.xlu0 %v1530, 112
      %v1542 = vpop.permute.xlu0 %1541
      %1543 = vrot.lane.b32.xlu0 %v1532, 112
      %v1544 = vpop.permute.xlu0 %1543
      %1545 = vrot.lane.b32.xlu0 %v1534, 112
      %v1546 = vpop.permute.xlu0 %1545
      %v1547 = vsel %vm466, %v1536, %v1538
      %v1548 = vsel %vm466, %v1538, %v1540
      %v1549 = vsel %vm466, %v1542, %v1544
      %v1550 = vsel %vm466, %v1544, %v1546
      %v1555 = vadd.f32 %v1483, %v1547
      %v1556 = vadd.f32 %v1484, %v1548
      %v1557 = vadd.f32 %v1485, %v1549
      %v1558 = vadd.f32 %v1486, %v1550
      %s1559 = scalar_lea.vmem %s5, 17
      %v1560 = vld [vmem:[%s1559] ss:$8 sm:$0x3]
      %v1562 = vperm.slane %v1560, 0
      %v1563 = vperm.slane %v1560, 1
      %1564 = vrot.lane.b32.xlu0 %v1562, 32
      %v1565 = vpop.permute.xlu0 %1564
      %1566 = vrot.lane.b32.xlu0 %v1563, 32
      %v1567 = vpop.permute.xlu0 %1566
      %v1568 = vsel %vm961, %v1565, %v1567
      %v1572 = vmul.f32 %v1305, %v1565
      %v1573 = vmul.f32 %v1306, %v1568
      %v1574 = vmul.f32 %v1487, %v1567
      %v1575 = vmul.f32 %v978, %v1565
      %v1576 = vmul.f32 %v979, %v1568
      %v1577 = vmul.f32 %v1162, %v1567
      %v1578 = vmul.f32 %v1308, %v1565
      %v1579 = vmul.f32 %v1309, %v1568
      %v1580 = vmul.f32 %v1488, %v1567
      %v1590 = vrot.slane %v1572, 7
      %v1591 = vrot.slane %v1575, 7
      %v1592 = vsel %vm489, %v1590, %v1591
      %v1593 = vrot.slane %v1573, 7
      %v1594 = vrot.slane %v1576, 7
      %v1595 = vsel %vm489, %v1593, %v1594
      %v1596 = vrot.slane %v1574, 7
      %v1597 = vrot.slane %v1577, 7
      %v1598 = vsel %vm489, %v1596, %v1597
      %v1599 = vrot.slane %v1578, 7
      %v1600 = vsel %vm489, %v1591, %v1599
      %v1601 = vrot.slane %v1579, 7
      %v1602 = vsel %vm489, %v1594, %v1601
      %v1603 = vrot.slane %v1580, 7
      %v1604 = vsel %vm489, %v1597, %v1603
      %1605 = vrot.lane.b32.xlu0 %v1592, 96
      %v1606 = vpop.permute.xlu0 %1605
      %1607 = vrot.lane.b32.xlu0 %v1595, 96
      %v1608 = vpop.permute.xlu0 %1607
      %1609 = vrot.lane.b32.xlu0 %v1598, 96
      %v1610 = vpop.permute.xlu0 %1609
      %1611 = vrot.lane.b32.xlu0 %v1600, 96
      %v1612 = vpop.permute.xlu0 %1611
      %1613 = vrot.lane.b32.xlu0 %v1602, 96
      %v1614 = vpop.permute.xlu0 %1613
      %1615 = vrot.lane.b32.xlu0 %v1604, 96
      %v1616 = vpop.permute.xlu0 %1615
      %v1617 = vsel %vm991, %v1606, %v1608
      %v1618 = vsel %vm991, %v1608, %v1610
      %v1619 = vsel %vm991, %v1612, %v1614
      %v1620 = vsel %vm991, %v1614, %v1616
      %v1625 = vadd.f32 %v1555, %v1617
      %v1626 = vadd.f32 %v1556, %v1618
      %v1627 = vadd.f32 %v1557, %v1619
      %v1628 = vadd.f32 %v1558, %v1620
      %v1629 = vld [vmem:[#allocation3 + $0x40] sm:$0xff]
      %v1630 = vld [vmem:[#allocation3 + $0x48] sm:$0xff]
      %v1631 = vld [vmem:[#allocation3 + $0x50] sm:$0xff]
      %s1632 = scalar_lea.vmem %s5, 18
      %v1633 = vld [vmem:[%s1632] ss:$8 sm:$0x3]
      %v1635 = vperm.slane %v1633, 0
      %v1636 = vperm.slane %v1633, 1
      %1637 = vrot.lane.b32.xlu0 %v1635, 96
      %v1638 = vpop.permute.xlu0 %1637
      %1639 = vrot.lane.b32.xlu0 %v1636, 96
      %v1640 = vpop.permute.xlu0 %1639
      %v1641 = vsel %vm991, %v1638, %v1640
      %v1645 = vmul.f32 %v977, %v1638
      %v1646 = vmul.f32 %v978, %v1641
      %v1647 = vmul.f32 %v979, %v1640
      %v1648 = vmul.f32 %v1629, %v1638
      %v1649 = vmul.f32 %v1630, %v1641
      %v1650 = vmul.f32 %v1631, %v1640
      %1657 = vrot.lane.b32.xlu0 %v1645, 32
      %v1658 = vpop.permute.xlu0 %1657
      %1659 = vrot.lane.b32.xlu0 %v1646, 32
      %v1660 = vpop.permute.xlu0 %1659
      %1661 = vrot.lane.b32.xlu0 %v1647, 32
      %v1662 = vpop.permute.xlu0 %1661
      %1663 = vrot.lane.b32.xlu0 %v1648, 32
      %v1664 = vpop.permute.xlu0 %1663
      %1665 = vrot.lane.b32.xlu0 %v1649, 32
      %v1666 = vpop.permute.xlu0 %1665
      %1667 = vrot.lane.b32.xlu0 %v1650, 32
      %v1668 = vpop.permute.xlu0 %1667
      %v1669 = vsel %vm961, %v1658, %v1660
      %v1670 = vsel %vm961, %v1660, %v1662
      %v1671 = vsel %vm961, %v1664, %v1666
      %v1672 = vsel %vm961, %v1666, %v1668
      %v1677 = vadd.f32 %v1625, %v1669
      %v1678 = vadd.f32 %v1626, %v1670
      %v1679 = vadd.f32 %v1627, %v1671
      %v1680 = vadd.f32 %v1628, %v1672
      %s1681 = scalar_lea.vmem %s5, 19
      %v1682 = vld [vmem:[%s1681] ss:$8 sm:$0x3]
      %v1684 = vperm.slane %v1682, 0
      %v1685 = vperm.slane %v1682, 1
      %1686 = vrot.lane.b32.xlu0 %v1684, 112
      %v1687 = vpop.permute.xlu0 %1686
      %1688 = vrot.lane.b32.xlu0 %v1685, 112
      %v1689 = vpop.permute.xlu0 %1688
      %v1690 = vsel %vm466, %v1687, %v1689
      %v1694 = vmul.f32 %v977, %v1687
      %v1695 = vmul.f32 %v978, %v1690
      %v1696 = vmul.f32 %v979, %v1689
      %v1697 = vmul.f32 %v1629, %v1687
      %v1698 = vmul.f32 %v1630, %v1690
      %v1699 = vmul.f32 %v1631, %v1689
      %1706 = vrot.lane.b32.xlu0 %v1694, 16
      %v1707 = vpop.permute.xlu0 %1706
      %1708 = vrot.lane.b32.xlu0 %v1695, 16
      %v1709 = vpop.permute.xlu0 %1708
      %1710 = vrot.lane.b32.xlu0 %v1696, 16
      %v1711 = vpop.permute.xlu0 %1710
      %1712 = vrot.lane.b32.xlu0 %v1697, 16
      %v1713 = vpop.permute.xlu0 %1712
      %1714 = vrot.lane.b32.xlu0 %v1698, 16
      %v1715 = vpop.permute.xlu0 %1714
      %1716 = vrot.lane.b32.xlu0 %v1699, 16
      %v1717 = vpop.permute.xlu0 %1716
      %v1718 = vsel %vm436, %v1707, %v1709
      %v1719 = vsel %vm436, %v1709, %v1711
      %v1720 = vsel %vm436, %v1713, %v1715
      %v1721 = vsel %vm436, %v1715, %v1717
      %v1726 = vadd.f32 %v1677, %v1718
      %v1727 = vadd.f32 %v1678, %v1719
      %v1728 = vadd.f32 %v1679, %v1720
      %v1729 = vadd.f32 %v1680, %v1721
      %s1730 = scalar_lea.vmem %s5, 20
      %v1731 = vld [vmem:[%s1730] ss:$8 sm:$0x3]
      %v1733 = vperm.slane %v1731, 0
      %v1734 = vperm.slane %v1731, 1
      %v1737 = vmul.f32 %v978, %v1733
      %v1738 = vmul.f32 %v979, %v1734
      %v1739 = vmul.f32 %v1630, %v1733
      %v1740 = vmul.f32 %v1631, %v1734
      %v1741 = vadd.f32 %v1726, %v1737
      %v1742 = vadd.f32 %v1727, %v1738
      %v1743 = vadd.f32 %v1728, %v1739
      %v1744 = vadd.f32 %v1729, %v1740
      %v1745 = vld [vmem:[#allocation3 + $0x58] sm:$0xff]
      %s1746 = scalar_lea.vmem %s5, 21
      %v1747 = vld [vmem:[%s1746] ss:$8 sm:$0x3]
      %v1749 = vperm.slane %v1747, 0
      %v1750 = vperm.slane %v1747, 1
      %1751 = vrot.lane.b32.xlu0 %v1749, 16
      %v1752 = vpop.permute.xlu0 %1751
      %1753 = vrot.lane.b32.xlu0 %v1750, 16
      %v1754 = vpop.permute.xlu0 %1753
      %v1755 = vsel %vm436, %v1752, %v1754
      %v1759 = vmul.f32 %v978, %v1752
      %v1760 = vmul.f32 %v979, %v1755
      %v1761 = vmul.f32 %v1162, %v1754
      %v1762 = vmul.f32 %v1630, %v1752
      %v1763 = vmul.f32 %v1631, %v1755
      %v1764 = vmul.f32 %v1745, %v1754
      %1771 = vrot.lane.b32.xlu0 %v1759, 112
      %v1772 = vpop.permute.xlu0 %1771
      %1773 = vrot.lane.b32.xlu0 %v1760, 112
      %v1774 = vpop.permute.xlu0 %1773
      %1775 = vrot.lane.b32.xlu0 %v1761, 112
      %v1776 = vpop.permute.xlu0 %1775
      %1777 = vrot.lane.b32.xlu0 %v1762, 112
      %v1778 = vpop.permute.xlu0 %1777
      %1779 = vrot.lane.b32.xlu0 %v1763, 112
      %v1780 = vpop.permute.xlu0 %1779
      %1781 = vrot.lane.b32.xlu0 %v1764, 112
      %v1782 = vpop.permute.xlu0 %1781
      %v1783 = vsel %vm466, %v1772, %v1774
      %v1784 = vsel %vm466, %v1774, %v1776
      %v1785 = vsel %vm466, %v1778, %v1780
      %v1786 = vsel %vm466, %v1780, %v1782
      %v1791 = vadd.f32 %v1741, %v1783
      %v1792 = vadd.f32 %v1742, %v1784
      %v1793 = vadd.f32 %v1743, %v1785
      %v1794 = vadd.f32 %v1744, %v1786
      %s1795 = scalar_lea.vmem %s5, 22
      %v1796 = vld [vmem:[%s1795] ss:$8 sm:$0x3]
      %v1798 = vperm.slane %v1796, 0
      %v1799 = vperm.slane %v1796, 1
      %1800 = vrot.lane.b32.xlu0 %v1798, 32
      %v1801 = vpop.permute.xlu0 %1800
      %1802 = vrot.lane.b32.xlu0 %v1799, 32
      %v1803 = vpop.permute.xlu0 %1802
      %v1804 = vsel %vm961, %v1801, %v1803
      %v1808 = vmul.f32 %v978, %v1801
      %v1809 = vmul.f32 %v979, %v1804
      %v1810 = vmul.f32 %v1162, %v1803
      %v1811 = vmul.f32 %v1630, %v1801
      %v1812 = vmul.f32 %v1631, %v1804
      %v1813 = vmul.f32 %v1745, %v1803
      %1820 = vrot.lane.b32.xlu0 %v1808, 96
      %v1821 = vpop.permute.xlu0 %1820
      %1822 = vrot.lane.b32.xlu0 %v1809, 96
      %v1823 = vpop.permute.xlu0 %1822
      %1824 = vrot.lane.b32.xlu0 %v1810, 96
      %v1825 = vpop.permute.xlu0 %1824
      %1826 = vrot.lane.b32.xlu0 %v1811, 96
      %v1827 = vpop.permute.xlu0 %1826
      %1828 = vrot.lane.b32.xlu0 %v1812, 96
      %v1829 = vpop.permute.xlu0 %1828
      %1830 = vrot.lane.b32.xlu0 %v1813, 96
      %v1831 = vpop.permute.xlu0 %1830
      %v1832 = vsel %vm991, %v1821, %v1823
      %v1833 = vsel %vm991, %v1823, %v1825
      %v1834 = vsel %vm991, %v1827, %v1829
      %v1835 = vsel %vm991, %v1829, %v1831
      %v1840 = vadd.f32 %v1791, %v1832
      %v1841 = vadd.f32 %v1792, %v1833
      %v1842 = vadd.f32 %v1793, %v1834
      %v1843 = vadd.f32 %v1794, %v1835
      %v1844 = vld [vmem:[#allocation3 + $0x20] sm:$0xfe]
      %v1845 = vld [vmem:[#allocation3 + $0x28] sm:$0xfe]
      %v1846 = vld [vmem:[#allocation3 + $0x30] sm:$0xfe]
      %v1847 = vld [vmem:[#allocation3 + $0x60] sm:$0x1]
      %v1848 = vld [vmem:[#allocation3 + $0x68] sm:$0x1]
      %v1849 = vld [vmem:[#allocation3 + $0x70] sm:$0x1]
      %s1850 = scalar_lea.vmem %s5, 23
      %v1851 = vld [vmem:[%s1850] ss:$8 sm:$0x3]
      %v1853 = vperm.slane %v1851, 0
      %v1854 = vperm.slane %v1851, 1
      %1855 = vrot.lane.b32.xlu0 %v1853, 96
      %v1856 = vpop.permute.xlu0 %1855
      %1857 = vrot.lane.b32.xlu0 %v1854, 96
      %v1858 = vpop.permute.xlu0 %1857
      %v1859 = vsel %vm991, %v1856, %v1858
      %v1863 = vmul.f32 %v1844, %v1856
      %v1864 = vmul.f32 %v1845, %v1859
      %v1865 = vmul.f32 %v1846, %v1858
      %v1866 = vmul.f32 %v1629, %v1856
      %v1867 = vmul.f32 %v1630, %v1859
      %v1868 = vmul.f32 %v1631, %v1858
      %v1869 = vmul.f32 %v1847, %v1856
      %v1870 = vmul.f32 %v1848, %v1859
      %v1871 = vmul.f32 %v1849, %v1858
      %v1881 = vrot.slane %v1863, 1
      %v1882 = vrot.slane %v1866, 1
      %v1883 = vsel %vm793, %v1881, %v1882
      %v1884 = vrot.slane %v1864, 1
      %v1885 = vrot.slane %v1867, 1
      %v1886 = vsel %vm793, %v1884, %v1885
      %v1887 = vrot.slane %v1865, 1
      %v1888 = vrot.slane %v1868, 1
      %v1889 = vsel %vm793, %v1887, %v1888
      %v1890 = vrot.slane %v1869, 1
      %v1891 = vsel %vm793, %v1882, %v1890
      %v1892 = vrot.slane %v1870, 1
      %v1893 = vsel %vm793, %v1885, %v1892
      %v1894 = vrot.slane %v1871, 1
      %v1895 = vsel %vm793, %v1888, %v1894
      %1896 = vrot.lane.b32.xlu0 %v1883, 32
      %v1897 = vpop.permute.xlu0 %1896
      %1898 = vrot.lane.b32.xlu0 %v1886, 32
      %v1899 = vpop.permute.xlu0 %1898
      %1900 = vrot.lane.b32.xlu0 %v1889, 32
      %v1901 = vpop.permute.xlu0 %1900
      %1902 = vrot.lane.b32.xlu0 %v1891, 32
      %v1903 = vpop.permute.xlu0 %1902
      %1904 = vrot.lane.b32.xlu0 %v1893, 32
      %v1905 = vpop.permute.xlu0 %1904
      %1906 = vrot.lane.b32.xlu0 %v1895, 32
      %v1907 = vpop.permute.xlu0 %1906
      %v1908 = vsel %vm961, %v1897, %v1899
      %v1909 = vsel %vm961, %v1899, %v1901
      %v1910 = vsel %vm961, %v1903, %v1905
      %v1911 = vsel %vm961, %v1905, %v1907
      %v1916 = vadd.f32 %v1840, %v1908
      %v1917 = vadd.f32 %v1841, %v1909
      %v1918 = vadd.f32 %v1842, %v1910
      %v1919 = vadd.f32 %v1843, %v1911
      %s1920 = scalar_lea.vmem %s5, 32
      %v1921 = vld [vmem:[%s1920] ss:$8 sm:$0x3]
      %v1923 = vperm.slane %v1921, 0
      %v1924 = vperm.slane %v1921, 1
      %1925 = vrot.lane.b32.xlu0 %v1923, 112
      %v1926 = vpop.permute.xlu0 %1925
      %1927 = vrot.lane.b32.xlu0 %v1924, 112
      %v1928 = vpop.permute.xlu0 %1927
      %v1929 = vsel %vm466, %v1926, %v1928
      %v1933 = vmul.f32 %v1844, %v1926
      %v1934 = vmul.f32 %v1845, %v1929
      %v1935 = vmul.f32 %v1846, %v1928
      %v1936 = vmul.f32 %v1629, %v1926
      %v1937 = vmul.f32 %v1630, %v1929
      %v1938 = vmul.f32 %v1631, %v1928
      %v1939 = vmul.f32 %v1847, %v1926
      %v1940 = vmul.f32 %v1848, %v1929
      %v1941 = vmul.f32 %v1849, %v1928
      %v1951 = vrot.slane %v1933, 1
      %v1952 = vrot.slane %v1936, 1
      %v1953 = vsel %vm793, %v1951, %v1952
      %v1954 = vrot.slane %v1934, 1
      %v1955 = vrot.slane %v1937, 1
      %v1956 = vsel %vm793, %v1954, %v1955
      %v1957 = vrot.slane %v1935, 1
      %v1958 = vrot.slane %v1938, 1
      %v1959 = vsel %vm793, %v1957, %v1958
      %v1960 = vrot.slane %v1939, 1
      %v1961 = vsel %vm793, %v1952, %v1960
      %v1962 = vrot.slane %v1940, 1
      %v1963 = vsel %vm793, %v1955, %v1962
      %v1964 = vrot.slane %v1941, 1
      %v1965 = vsel %vm793, %v1958, %v1964
      %1966 = vrot.lane.b32.xlu0 %v1953, 16
      %v1967 = vpop.permute.xlu0 %1966
      %1968 = vrot.lane.b32.xlu0 %v1956, 16
      %v1969 = vpop.permute.xlu0 %1968
      %1970 = vrot.lane.b32.xlu0 %v1959, 16
      %v1971 = vpop.permute.xlu0 %1970
      %1972 = vrot.lane.b32.xlu0 %v1961, 16
      %v1973 = vpop.permute.xlu0 %1972
      %1974 = vrot.lane.b32.xlu0 %v1963, 16
      %v1975 = vpop.permute.xlu0 %1974
      %1976 = vrot.lane.b32.xlu0 %v1965, 16
      %v1977 = vpop.permute.xlu0 %1976
      %v1978 = vsel %vm436, %v1967, %v1969
      %v1979 = vsel %vm436, %v1969, %v1971
      %v1980 = vsel %vm436, %v1973, %v1975
      %v1981 = vsel %vm436, %v1975, %v1977
      %v1986 = vadd.f32 %v1916, %v1978
      %v1987 = vadd.f32 %v1917, %v1979
      %v1988 = vadd.f32 %v1918, %v1980
      %v1989 = vadd.f32 %v1919, %v1981
      %s1990 = scalar_lea.vmem %s5, 33
      %v1991 = vld [vmem:[%s1990] ss:$8 sm:$0x3]
      %v1993 = vperm.slane %v1991, 0
      %v1994 = vperm.slane %v1991, 1
      %v1997 = vmul.f32 %v1845, %v1993
      %v1998 = vmul.f32 %v1846, %v1994
      %v1999 = vmul.f32 %v1630, %v1993
      %v2000 = vmul.f32 %v1631, %v1994
      %v2001 = vmul.f32 %v1848, %v1993
      %v2002 = vmul.f32 %v1849, %v1994
      %v2009 = vrot.slane %v1997, 1
      %v2010 = vrot.slane %v1999, 1
      %v2011 = vsel %vm793, %v2009, %v2010
      %v2012 = vrot.slane %v1998, 1
      %v2013 = vrot.slane %v2000, 1
      %v2014 = vsel %vm793, %v2012, %v2013
      %v2015 = vrot.slane %v2001, 1
      %v2016 = vsel %vm793, %v2010, %v2015
      %v2017 = vrot.slane %v2002, 1
      %v2018 = vsel %vm793, %v2013, %v2017
      %v2023 = vadd.f32 %v1986, %v2011
      %v2024 = vadd.f32 %v1987, %v2014
      %v2025 = vadd.f32 %v1988, %v2016
      %v2026 = vadd.f32 %v1989, %v2018
      %v2027 = vld [vmem:[#allocation3 + $0x38] sm:$0xfe]
      %v2028 = vld [vmem:[#allocation3 + $0x78] sm:$0x1]
      %s2029 = scalar_lea.vmem %s5, 34
      %v2030 = vld [vmem:[%s2029] ss:$8 sm:$0x3]
      %v2032 = vperm.slane %v2030, 0
      %v2033 = vperm.slane %v2030, 1
      %2034 = vrot.lane.b32.xlu0 %v2032, 16
      %v2035 = vpop.permute.xlu0 %2034
      %2036 = vrot.lane.b32.xlu0 %v2033, 16
      %v2037 = vpop.permute.xlu0 %2036
      %v2038 = vsel %vm436, %v2035, %v2037
      %v2042 = vmul.f32 %v1845, %v2035
      %v2043 = vmul.f32 %v1846, %v2038
      %v2044 = vmul.f32 %v2027, %v2037
      %v2045 = vmul.f32 %v1630, %v2035
      %v2046 = vmul.f32 %v1631, %v2038
      %v2047 = vmul.f32 %v1745, %v2037
      %v2048 = vmul.f32 %v1848, %v2035
      %v2049 = vmul.f32 %v1849, %v2038
      %v2050 = vmul.f32 %v2028, %v2037
      %v2060 = vrot.slane %v2042, 1
      %v2061 = vrot.slane %v2045, 1
      %v2062 = vsel %vm793, %v2060, %v2061
      %v2063 = vrot.slane %v2043, 1
      %v2064 = vrot.slane %v2046, 1
      %v2065 = vsel %vm793, %v2063, %v2064
      %v2066 = vrot.slane %v2044, 1
      %v2067 = vrot.slane %v2047, 1
      %v2068 = vsel %vm793, %v2066, %v2067
      %v2069 = vrot.slane %v2048, 1
      %v2070 = vsel %vm793, %v2061, %v2069
      %v2071 = vrot.slane %v2049, 1
      %v2072 = vsel %vm793, %v2064, %v2071
      %v2073 = vrot.slane %v2050, 1
      %v2074 = vsel %vm793, %v2067, %v2073
      %2075 = vrot.lane.b32.xlu0 %v2062, 112
      %v2076 = vpop.permute.xlu0 %2075
      %2077 = vrot.lane.b32.xlu0 %v2065, 112
      %v2078 = vpop.permute.xlu0 %2077
      %2079 = vrot.lane.b32.xlu0 %v2068, 112
      %v2080 = vpop.permute.xlu0 %2079
      %2081 = vrot.lane.b32.xlu0 %v2070, 112
      %v2082 = vpop.permute.xlu0 %2081
      %2083 = vrot.lane.b32.xlu0 %v2072, 112
      %v2084 = vpop.permute.xlu0 %2083
      %2085 = vrot.lane.b32.xlu0 %v2074, 112
      %v2086 = vpop.permute.xlu0 %2085
      %v2087 = vsel %vm466, %v2076, %v2078
      %v2088 = vsel %vm466, %v2078, %v2080
      %v2089 = vsel %vm466, %v2082, %v2084
      %v2090 = vsel %vm466, %v2084, %v2086
      %v2095 = vadd.f32 %v2023, %v2087
      %v2096 = vadd.f32 %v2024, %v2088
      %v2097 = vadd.f32 %v2025, %v2089
      %v2098 = vadd.f32 %v2026, %v2090
      %s2099 = scalar_lea.vmem %s5, 35
      %v2100 = vld [vmem:[%s2099] ss:$8 sm:$0x3]
      %v2102 = vperm.slane %v2100, 0
      %v2103 = vperm.slane %v2100, 1
      %2104 = vrot.lane.b32.xlu0 %v2102, 32
      %v2105 = vpop.permute.xlu0 %2104
      %2106 = vrot.lane.b32.xlu0 %v2103, 32
      %v2107 = vpop.permute.xlu0 %2106
      %v2108 = vsel %vm961, %v2105, %v2107
      %v2112 = vmul.f32 %v1845, %v2105
      %v2113 = vmul.f32 %v1846, %v2108
      %v2114 = vmul.f32 %v2027, %v2107
      %v2115 = vmul.f32 %v1630, %v2105
      %v2116 = vmul.f32 %v1631, %v2108
      %v2117 = vmul.f32 %v1745, %v2107
      %v2118 = vmul.f32 %v1848, %v2105
      %v2119 = vmul.f32 %v1849, %v2108
      %v2120 = vmul.f32 %v2028, %v2107
      %v2130 = vrot.slane %v2112, 1
      %v2131 = vrot.slane %v2115, 1
      %v2132 = vsel %vm793, %v2130, %v2131
      %v2133 = vrot.slane %v2113, 1
      %v2134 = vrot.slane %v2116, 1
      %v2135 = vsel %vm793, %v2133, %v2134
      %v2136 = vrot.slane %v2114, 1
      %v2137 = vrot.slane %v2117, 1
      %v2138 = vsel %vm793, %v2136, %v2137
      %v2139 = vrot.slane %v2118, 1
      %v2140 = vsel %vm793, %v2131, %v2139
      %v2141 = vrot.slane %v2119, 1
      %v2142 = vsel %vm793, %v2134, %v2141
      %v2143 = vrot.slane %v2120, 1
      %v2144 = vsel %vm793, %v2137, %v2143
      %2145 = vrot.lane.b32.xlu0 %v2132, 96
      %v2146 = vpop.permute.xlu0 %2145
      %2147 = vrot.lane.b32.xlu0 %v2135, 96
      %v2148 = vpop.permute.xlu0 %2147
      %2149 = vrot.lane.b32.xlu0 %v2138, 96
      %v2150 = vpop.permute.xlu0 %2149
      %2151 = vrot.lane.b32.xlu0 %v2140, 96
      %v2152 = vpop.permute.xlu0 %2151
      %2153 = vrot.lane.b32.xlu0 %v2142, 96
      %v2154 = vpop.permute.xlu0 %2153
      %2155 = vrot.lane.b32.xlu0 %v2144, 96
      %v2156 = vpop.permute.xlu0 %2155
      %v2157 = vsel %vm991, %v2146, %v2148
      %v2158 = vsel %vm991, %v2148, %v2150
      %v2159 = vsel %vm991, %v2152, %v2154
      %v2160 = vsel %vm991, %v2154, %v2156
      %v2165 = vadd.f32 %v2095, %v2157
      %v2166 = vadd.f32 %v2096, %v2158
      %v2167 = vadd.f32 %v2097, %v2159
      %v2168 = vadd.f32 %v2098, %v2160
      %v2169 = vld [vmem:[#allocation3 + $0x20] sm:$0xfc]
      %v2170 = vld [vmem:[#allocation3 + $0x28] sm:$0xfc]
      %v2171 = vld [vmem:[#allocation3 + $0x30] sm:$0xfc]
      %v2172 = vld [vmem:[#allocation3 + $0x60] sm:$0x3]
      %v2173 = vld [vmem:[#allocation3 + $0x68] sm:$0x3]
      %v2174 = vld [vmem:[#allocation3 + $0x70] sm:$0x3]
      %s2175 = scalar_lea.vmem %s5, 36
      %v2176 = vld [vmem:[%s2175] ss:$8 sm:$0x3]
      %v2178 = vperm.slane %v2176, 0
      %v2179 = vperm.slane %v2176, 1
      %2180 = vrot.lane.b32.xlu0 %v2178, 96
      %v2181 = vpop.permute.xlu0 %2180
      %2182 = vrot.lane.b32.xlu0 %v2179, 96
      %v2183 = vpop.permute.xlu0 %2182
      %v2184 = vsel %vm991, %v2181, %v2183
      %v2188 = vmul.f32 %v2169, %v2181
      %v2189 = vmul.f32 %v2170, %v2184
      %v2190 = vmul.f32 %v2171, %v2183
      %v2191 = vmul.f32 %v1629, %v2181
      %v2192 = vmul.f32 %v1630, %v2184
      %v2193 = vmul.f32 %v1631, %v2183
      %v2194 = vmul.f32 %v2172, %v2181
      %v2195 = vmul.f32 %v2173, %v2184
      %v2196 = vmul.f32 %v2174, %v2183
      %vm2206 = vcmask 1045504
      %v2207 = vrot.slane %v2188, 2
      %v2208 = vrot.slane %v2191, 2
      %v2209 = vsel %vm2206, %v2207, %v2208
      %v2210 = vrot.slane %v2189, 2
      %v2211 = vrot.slane %v2192, 2
      %v2212 = vsel %vm2206, %v2210, %v2211
      %v2213 = vrot.slane %v2190, 2
      %v2214 = vrot.slane %v2193, 2
      %v2215 = vsel %vm2206, %v2213, %v2214
      %v2216 = vrot.slane %v2194, 2
      %v2217 = vsel %vm2206, %v2208, %v2216
      %v2218 = vrot.slane %v2195, 2
      %v2219 = vsel %vm2206, %v2211, %v2218
      %v2220 = vrot.slane %v2196, 2
      %v2221 = vsel %vm2206, %v2214, %v2220
      %2222 = vrot.lane.b32.xlu0 %v2209, 32
      %v2223 = vpop.permute.xlu0 %2222
      %2224 = vrot.lane.b32.xlu0 %v2212, 32
      %v2225 = vpop.permute.xlu0 %2224
      %2226 = vrot.lane.b32.xlu0 %v2215, 32
      %v2227 = vpop.permute.xlu0 %2226
      %2228 = vrot.lane.b32.xlu0 %v2217, 32
      %v2229 = vpop.permute.xlu0 %2228
      %2230 = vrot.lane.b32.xlu0 %v2219, 32
      %v2231 = vpop.permute.xlu0 %2230
      %2232 = vrot.lane.b32.xlu0 %v2221, 32
      %v2233 = vpop.permute.xlu0 %2232
      %v2234 = vsel %vm961, %v2223, %v2225
      %v2235 = vsel %vm961, %v2225, %v2227
      %v2236 = vsel %vm961, %v2229, %v2231
      %v2237 = vsel %vm961, %v2231, %v2233
      %v2242 = vadd.f32 %v2165, %v2234
      %v2243 = vadd.f32 %v2166, %v2235
      %v2244 = vadd.f32 %v2167, %v2236
      %v2245 = vadd.f32 %v2168, %v2237
      %s2246 = scalar_lea.vmem %s5, 37
      %v2247 = vld [vmem:[%s2246] ss:$8 sm:$0x3]
      %v2249 = vperm.slane %v2247, 0
      %v2250 = vperm.slane %v2247, 1
      %2251 = vrot.lane.b32.xlu0 %v2249, 112
      %v2252 = vpop.permute.xlu0 %2251
      %2253 = vrot.lane.b32.xlu0 %v2250, 112
      %v2254 = vpop.permute.xlu0 %2253
      %v2255 = vsel %vm466, %v2252, %v2254
      %v2259 = vmul.f32 %v2169, %v2252
      %v2260 = vmul.f32 %v2170, %v2255
      %v2261 = vmul.f32 %v2171, %v2254
      %v2262 = vmul.f32 %v1629, %v2252
      %v2263 = vmul.f32 %v1630, %v2255
      %v2264 = vmul.f32 %v1631, %v2254
      %v2265 = vmul.f32 %v2172, %v2252
      %v2266 = vmul.f32 %v2173, %v2255
      %v2267 = vmul.f32 %v2174, %v2254
      %v2277 = vrot.slane %v2259, 2
      %v2278 = vrot.slane %v2262, 2
      %v2279 = vsel %vm2206, %v2277, %v2278
      %v2280 = vrot.slane %v2260, 2
      %v2281 = vrot.slane %v2263, 2
      %v2282 = vsel %vm2206, %v2280, %v2281
      %v2283 = vrot.slane %v2261, 2
      %v2284 = vrot.slane %v2264, 2
      %v2285 = vsel %vm2206, %v2283, %v2284
      %v2286 = vrot.slane %v2265, 2
      %v2287 = vsel %vm2206, %v2278, %v2286
      %v2288 = vrot.slane %v2266, 2
      %v2289 = vsel %vm2206, %v2281, %v2288
      %v2290 = vrot.slane %v2267, 2
      %v2291 = vsel %vm2206, %v2284, %v2290
      %2292 = vrot.lane.b32.xlu0 %v2279, 16
      %v2293 = vpop.permute.xlu0 %2292
      %2294 = vrot.lane.b32.xlu0 %v2282, 16
      %v2295 = vpop.permute.xlu0 %2294
      %2296 = vrot.lane.b32.xlu0 %v2285, 16
      %v2297 = vpop.permute.xlu0 %2296
      %2298 = vrot.lane.b32.xlu0 %v2287, 16
      %v2299 = vpop.permute.xlu0 %2298
      %2300 = vrot.lane.b32.xlu0 %v2289, 16
      %v2301 = vpop.permute.xlu0 %2300
      %2302 = vrot.lane.b32.xlu0 %v2291, 16
      %v2303 = vpop.permute.xlu0 %2302
      %v2304 = vsel %vm436, %v2293, %v2295
      %v2305 = vsel %vm436, %v2295, %v2297
      %v2306 = vsel %vm436, %v2299, %v2301
      %v2307 = vsel %vm436, %v2301, %v2303
      %v2312 = vadd.f32 %v2242, %v2304
      %v2313 = vadd.f32 %v2243, %v2305
      %v2314 = vadd.f32 %v2244, %v2306
      %v2315 = vadd.f32 %v2245, %v2307
      %s2316 = scalar_lea.vmem %s5, 38
      %v2317 = vld [vmem:[%s2316] ss:$8 sm:$0x3]
      %v2319 = vperm.slane %v2317, 0
      %v2320 = vperm.slane %v2317, 1
      %v2323 = vmul.f32 %v2170, %v2319
      %v2324 = vmul.f32 %v2171, %v2320
      %v2325 = vmul.f32 %v1630, %v2319
      %v2326 = vmul.f32 %v1631, %v2320
      %v2327 = vmul.f32 %v2173, %v2319
      %v2328 = vmul.f32 %v2174, %v2320
      %v2335 = vrot.slane %v2323, 2
      %v2336 = vrot.slane %v2325, 2
      %v2337 = vsel %vm2206, %v2335, %v2336
      %v2338 = vrot.slane %v2324, 2
      %v2339 = vrot.slane %v2326, 2
      %v2340 = vsel %vm2206, %v2338, %v2339
      %v2341 = vrot.slane %v2327, 2
      %v2342 = vsel %vm2206, %v2336, %v2341
      %v2343 = vrot.slane %v2328, 2
      %v2344 = vsel %vm2206, %v2339, %v2343
      %v2349 = vadd.f32 %v2312, %v2337
      %v2350 = vadd.f32 %v2313, %v2340
      %v2351 = vadd.f32 %v2314, %v2342
      %v2352 = vadd.f32 %v2315, %v2344
      %v2353 = vld [vmem:[#allocation3 + $0x38] sm:$0xfc]
      %v2354 = vld [vmem:[#allocation3 + $0x78] sm:$0x3]
      %s2355 = scalar_lea.vmem %s5, 39
      %v2356 = vld [vmem:[%s2355] ss:$8 sm:$0x3]
      %v2358 = vperm.slane %v2356, 0
      %v2359 = vperm.slane %v2356, 1
      %2360 = vrot.lane.b32.xlu0 %v2358, 16
      %v2361 = vpop.permute.xlu0 %2360
      %2362 = vrot.lane.b32.xlu0 %v2359, 16
      %v2363 = vpop.permute.xlu0 %2362
      %v2364 = vsel %vm436, %v2361, %v2363
      %v2368 = vmul.f32 %v2170, %v2361
      %v2369 = vmul.f32 %v2171, %v2364
      %v2370 = vmul.f32 %v2353, %v2363
      %v2371 = vmul.f32 %v1630, %v2361
      %v2372 = vmul.f32 %v1631, %v2364
      %v2373 = vmul.f32 %v1745, %v2363
      %v2374 = vmul.f32 %v2173, %v2361
      %v2375 = vmul.f32 %v2174, %v2364
      %v2376 = vmul.f32 %v2354, %v2363
      %v2386 = vrot.slane %v2368, 2
      %v2387 = vrot.slane %v2371, 2
      %v2388 = vsel %vm2206, %v2386, %v2387
      %v2389 = vrot.slane %v2369, 2
      %v2390 = vrot.slane %v2372, 2
      %v2391 = vsel %vm2206, %v2389, %v2390
      %v2392 = vrot.slane %v2370, 2
      %v2393 = vrot.slane %v2373, 2
      %v2394 = vsel %vm2206, %v2392, %v2393
      %v2395 = vrot.slane %v2374, 2
      %v2396 = vsel %vm2206, %v2387, %v2395
      %v2397 = vrot.slane %v2375, 2
      %v2398 = vsel %vm2206, %v2390, %v2397
      %v2399 = vrot.slane %v2376, 2
      %v2400 = vsel %vm2206, %v2393, %v2399
      %2401 = vrot.lane.b32.xlu0 %v2388, 112
      %v2402 = vpop.permute.xlu0 %2401
      %2403 = vrot.lane.b32.xlu0 %v2391, 112
      %v2404 = vpop.permute.xlu0 %2403
      %2405 = vrot.lane.b32.xlu0 %v2394, 112
      %v2406 = vpop.permute.xlu0 %2405
      %2407 = vrot.lane.b32.xlu0 %v2396, 112
      %v2408 = vpop.permute.xlu0 %2407
      %2409 = vrot.lane.b32.xlu0 %v2398, 112
      %v2410 = vpop.permute.xlu0 %2409
      %2411 = vrot.lane.b32.xlu0 %v2400, 112
      %v2412 = vpop.permute.xlu0 %2411
      %v2413 = vsel %vm466, %v2402, %v2404
      %v2414 = vsel %vm466, %v2404, %v2406
      %v2415 = vsel %vm466, %v2408, %v2410
      %v2416 = vsel %vm466, %v2410, %v2412
      %v2421 = vadd.f32 %v2349, %v2413
      %v2422 = vadd.f32 %v2350, %v2414
      %v2423 = vadd.f32 %v2351, %v2415
      %v2424 = vadd.f32 %v2352, %v2416
      %s2425 = scalar_lea.vmem %s5, 48
      %v2426 = vld [vmem:[%s2425] ss:$8 sm:$0x3]
      %v2428 = vperm.slane %v2426, 0
      %v2429 = vperm.slane %v2426, 1
      %2430 = vrot.lane.b32.xlu0 %v2428, 32
      %v2431 = vpop.permute.xlu0 %2430
      %2432 = vrot.lane.b32.xlu0 %v2429, 32
      %v2433 = vpop.permute.xlu0 %2432
      %v2434 = vsel %vm961, %v2431, %v2433
      %v2438 = vmul.f32 %v2170, %v2431
      %v2439 = vmul.f32 %v2171, %v2434
      %v2440 = vmul.f32 %v2353, %v2433
      %v2441 = vmul.f32 %v1630, %v2431
      %v2442 = vmul.f32 %v1631, %v2434
      %v2443 = vmul.f32 %v1745, %v2433
      %v2444 = vmul.f32 %v2173, %v2431
      %v2445 = vmul.f32 %v2174, %v2434
      %v2446 = vmul.f32 %v2354, %v2433
      %v2456 = vrot.slane %v2438, 2
      %v2457 = vrot.slane %v2441, 2
      %v2458 = vsel %vm2206, %v2456, %v2457
      %v2459 = vrot.slane %v2439, 2
      %v2460 = vrot.slane %v2442, 2
      %v2461 = vsel %vm2206, %v2459, %v2460
      %v2462 = vrot.slane %v2440, 2
      %v2463 = vrot.slane %v2443, 2
      %v2464 = vsel %vm2206, %v2462, %v2463
      %v2465 = vrot.slane %v2444, 2
      %v2466 = vsel %vm2206, %v2457, %v2465
      %v2467 = vrot.slane %v2445, 2
      %v2468 = vsel %vm2206, %v2460, %v2467
      %v2469 = vrot.slane %v2446, 2
      %v2470 = vsel %vm2206, %v2463, %v2469
      %2471 = vrot.lane.b32.xlu0 %v2458, 96
      %v2472 = vpop.permute.xlu0 %2471
      %2473 = vrot.lane.b32.xlu0 %v2461, 96
      %v2474 = vpop.permute.xlu0 %2473
      %2475 = vrot.lane.b32.xlu0 %v2464, 96
      %v2476 = vpop.permute.xlu0 %2475
      %2477 = vrot.lane.b32.xlu0 %v2466, 96
      %v2478 = vpop.permute.xlu0 %2477
      %2479 = vrot.lane.b32.xlu0 %v2468, 96
      %v2480 = vpop.permute.xlu0 %2479
      %2481 = vrot.lane.b32.xlu0 %v2470, 96
      %v2482 = vpop.permute.xlu0 %2481
      %v2483 = vsel %vm991, %v2472, %v2474
      %v2484 = vsel %vm991, %v2474, %v2476
      %v2485 = vsel %vm991, %v2478, %v2480
      %v2486 = vsel %vm991, %v2480, %v2482
      %v2491 = vadd.f32 %v2421, %v2483
      %v2492 = vadd.f32 %v2422, %v2484
      %v2493 = vadd.f32 %v2423, %v2485
      %v2494 = vadd.f32 %v2424, %v2486
      %v2495 = vmax.f32 %v2491, 0.0
      %v2496 = vmax.f32 %v2492, 0.0
      %v2497 = vmax.f32 %v2493, 0.0
      %v2498 = vmax.f32 %v2494, 0.0
      %v2499 = vld [vmem:[%s7] sm:$0xff]
      %v2500 = vld [vmem:[%s7 + $0x8] sm:$0xff]
      %v2501 = vld [vmem:[%s7 + $0x10] sm:$0xff]
      %v2502 = vld [vmem:[%s7 + $0x18] sm:$0xff]
      %v2503 = vld [vmem:[%s7 + $0x20] sm:$0xff]
      %v2504 = vld [vmem:[%s7 + $0x28] sm:$0xff]
      %v2505 = vld [vmem:[%s7 + $0x30] sm:$0xff]
      %v2506 = vld [vmem:[%s7 + $0x38] sm:$0xff]
      %v2507 = vld [vmem:[%s7 + $0x40] sm:$0xff]
      %v2508 = vld [vmem:[%s7 + $0x48] sm:$0xff]
      %v2509 = vld [vmem:[%s7 + $0x50] sm:$0xff]
      %v2510 = vld [vmem:[%s7 + $0x58] sm:$0xff]
      %v2511 = vld [vmem:[%s7 + $0x60] sm:$0xff]
      %v2512 = vld [vmem:[%s7 + $0x68] sm:$0xff]
      %v2513 = vld [vmem:[%s7 + $0x70] sm:$0xff]
      %v2514 = vld [vmem:[%s7 + $0x78] sm:$0xff]
      %v2515 = vld [vmem:[%s7 + $0x80] sm:$0xff]
      %v2516 = vld [vmem:[%s7 + $0x88] sm:$0xff]
      %v2517 = vld [vmem:[%s7 + $0x90] sm:$0xff]
      %v2518 = vld [vmem:[%s7 + $0x98] sm:$0xff]
      %v2519 = vld [vmem:[%s7 + $0xa0] sm:$0xff]
      %v2520 = vld [vmem:[%s7 + $0xa8] sm:$0xff]
      %v2521 = vld [vmem:[%s7 + $0xb0] sm:$0xff]
      %v2522 = vld [vmem:[%s7 + $0xb8] sm:$0xff]
      %v2523 = vld [vmem:[%s7 + $0xc0] sm:$0xff]
      %v2524 = vld [vmem:[%s7 + $0xc8] sm:$0xff]
      %v2525 = vld [vmem:[%s7 + $0xd0] sm:$0xff]
      %v2526 = vld [vmem:[%s7 + $0xd8] sm:$0xff]
      %v2527 = vld [vmem:[%s7 + $0xe0] sm:$0xff]
      %v2528 = vld [vmem:[%s7 + $0xe8] sm:$0xff]
      %v2529 = vld [vmem:[%s7 + $0xf0] sm:$0xff]
      %v2530 = vld [vmem:[%s7 + $0xf8] sm:$0xff]
      %v2531 = vld [vmem:[%s8] sm:$0x1]
      %v2533 = vperm.slane %v2531, 0
      %2535 = vmatpush.msra.mxu0 %v2514
      %2536 = vmatpush.msra.mxu0 %v2513
      %2537 = vmatpush.msra.mxu0 %v2512
      %2538 = vmatpush.msra.mxu0 %v2511
      %2539 = vmatpush.msra.mxu0 %v2510
      %2540 = vmatpush.msra.mxu0 %v2509
      %2541 = vmatpush.msra.mxu0 %v2508
      %2542 = vmatpush.msra.mxu0 %v2507
      %2543 = vmatpush.msra.mxu0 %v2506
      %2544 = vmatpush.msra.mxu0 %v2505
      %2545 = vmatpush.msra.mxu0 %v2504
      %2546 = vmatpush.msra.mxu0 %v2503
      %2547 = vmatpush.msra.mxu0 %v2502
      %2548 = vmatpush.msra.mxu0 %v2501
      %2549 = vmatpush.msra.mxu0 %v2500
      %2550 = vmatpush.msra.mxu0 %v2499
      %2551 = vmatmul.f32.gmra.mxu0 %v2495
      %v2552 = vpop.f32.mrf.mxu0
      %v2553 = vadd.f32 %v2533, %v2552
      %2554 = vmatmul.f32.gmra.mxu0 %v2497
      %v2555 = vpop.f32.mrf.mxu0
      %v2556 = vadd.f32 %v2533, %v2555
      %2557 = vdwg.mxu0
      %2558 = vmatpush.msra.mxu0 %v2530
      %2559 = vmatpush.msra.mxu0 %v2529
      %2560 = vmatpush.msra.mxu0 %v2528
      %2561 = vmatpush.msra.mxu0 %v2527
      %2562 = vmatpush.msra.mxu0 %v2526
      %2563 = vmatpush.msra.mxu0 %v2525
      %2564 = vmatpush.msra.mxu0 %v2524
      %2565 = vmatpush.msra.mxu0 %v2523
      %2566 = vmatpush.msra.mxu0 %v2522
      %2567 = vmatpush.msra.mxu0 %v2521
      %2568 = vmatpush.msra.mxu0 %v2520
      %2569 = vmatpush.msra.mxu0 %v2519
      %2570 = vmatpush.msra.mxu0 %v2518
      %2571 = vmatpush.msra.mxu0 %v2517
      %2572 = vmatpush.msra.mxu0 %v2516
      %2573 = vmatpush.msra.mxu0 %v2515
      %2574 = vmatmul.f32.gmra.mxu0 %v2496
      %v2575 = vpop.f32.mrf.mxu0
      %v2576 = vadd.f32 %v2553, %v2575
      %2577 = vmatmul.f32.gmra.mxu0 %v2498
      %v2578 = vpop.f32.mrf.mxu0
      %v2579 = vadd.f32 %v2556, %v2578
      %2580 = vdwg.mxu0
      %v2581 = vadd.f32 %v2576, %v333
      %v2582 = vadd.f32 %v2579, %v334
      %2583 = vst [vmem:[%s332] sm:$0xff] %v2581
      %2584 = vst [vmem:[%s332 + $0x8] sm:$0xff] %v2582
      %p2585 = scmp.lt.s32.totalorder %s20, 1
      %s2586 = scalar_select %p2585, %s20, 1
      %s2587 = smul.addr %s2586, 2
      %s2588 = smul.addr %s2587, 8
      %s2589 = scalar_lea.vmem %s9, %s2588
      // Predicated region
      $region57: #{mnv4_extra_dw_block.1} parent=55 // pred_check
        %p2590 = pneg %p232
      $region58: #{mnv4_extra_dw_block.1} parent=55 // pred_check_branch
        %2592 = sbr.rel (%p2590) target = $region60
      $region59: #{mnv4_extra_dw_block.1} parent=55 // pred_region
        _
      $region60: #{mnv4_extra_dw_block.1} parent=55 // pred_fallthru
        _
    $region56: #{mnv4_extra_dw_block.1} parent=5 // pred_fallthru
      _
    %p2593 = scmp.le.s32.totalorder 2, %s15
    // Predicated region
    $region61: #{mnv4_extra_dw_block.1} parent=5 // pred_check
      %p2594 = pneg %p2593
    $region62: #{mnv4_extra_dw_block.1} parent=5 // pred_check_branch
      %2596 = sbr.rel (%p2594) target = $region64
    $region63: #{mnv4_extra_dw_block.1} parent=5 // pred_region
      %s2597 = ssub.s32 %s15, 2
      // Predicated region
      $region65: #{mnv4_extra_dw_block.1} parent=63 // pred_check
        %p2598 = pneg %p238
      $region66: #{mnv4_extra_dw_block.1} parent=63 // pred_check_branch
        %2600 = sbr.rel (%p2598) target = $region68
      $region67: #{mnv4_extra_dw_block.1} parent=63 // pred_region
        %p2601 = scmp.lt.s32.totalorder %s21, 1
        %s2602 = scalar_select %p2601, %s21, 1
        %s2603 = smul.addr %s2602, 2
        %s2604 = smul.addr %s2603, 8
        %s2605 = scalar_lea.vmem %s9, %s2604
      $region68: #{mnv4_extra_dw_block.1} parent=63 // pred_fallthru
        _
    $region64: #{mnv4_extra_dw_block.1} parent=5 // pred_fallthru
      _
  $region6: #{mnv4_extra_dw_block.1} parent=0 // loop_footer
    %s19 = sadd.s32 1, %s15
  $region7: #{mnv4_extra_dw_block.1} parent=0 // loop_footer_branch
    %14 = sbr.rel target = $region3
  $region8: #{mnv4_extra_dw_block.1} parent=0 // loop_exit
    _

</llo_original>
